<compile_context>
chip_gen: v7x
topology: tpu7x:2x2x1
jax: 0.10.0
libtpu: 0.0.40
codegen_flags: <defaults>
</compile_context>

<pallas_src>
import math

import jax
import jax.numpy as jnp
from jax.experimental import pallas as pl
from jax.experimental.pallas import tpu as pltpu

N_EXERCISES = 13523
NINP = 32            # embedding dim (d_model)
NHEAD = 4
HD = NINP // NHEAD   # head dim = 8
NHID = 64            # feed-forward dim
NLAYERS = 2
NCLS = 2             # decoder output dim
NCLS_PAD = 128       # lane-dense padded decoder output width
VEC_W = 128          # packed bias/LN slab width
EPS = 1e-5           # LayerNorm eps (PyTorch default)


def _layernorm(x, w, b):
    mu = jnp.mean(x, axis=-1, keepdims=True)
    var = jnp.mean((x - mu) ** 2, axis=-1, keepdims=True)
    return (x - mu) * jax.lax.rsqrt(var + EPS) * w + b


def transformer_kernel(x_ref, mask_ref,
                       win_ref, wout_ref, w1_ref, w2_ref, vec_ref,
                       dec_w_ref, dec_b_ref,
                       o_ref):
    B, S, E = x_ref.shape
    BS = B * S

    # (B, S, E) -> (B*S, E) rows; scale by sqrt(d_model)
    x = x_ref[...].reshape(BS, E) * jnp.float32(math.sqrt(NINP))

    # Hoisted additive key-padding bias, broadcast once to (B, S, S).
    # NOTE: fully-masked rows get -1e9 (near-uniform softmax) rather than
    # PyTorch's -inf/NaN behaviour — intentional NaN-free edge case.
    mask_b = jnp.broadcast_to(mask_ref[...], (B, S, S))

    inv_sqrt_hd = jnp.float32(1.0 / math.sqrt(HD))

    for l in range(NLAYERS):  # static unroll over encoder layers
        vl = vec_ref[l]                      # (8, 128) packed vectors
        in_b = vl[0:1, :3 * E]               # (1, 96)
        out_b = vl[1:2, :E]
        b1 = vl[2:3, :NHID]
        b2 = vl[3:4, :E]
        ln1w = vl[4:5, :E]
        ln1b = vl[5:6, :E]
        ln2w = vl[6:7, :E]
        ln2b = vl[7:8, :E]

        # ---- multi-head self-attention (post-norm encoder layer) ----
        # single big QKV projection: (B*S, E) @ (E, 3E)
        qkv = jnp.dot(x, win_ref[l], preferred_element_type=jnp.float32) + in_b
        wout_l = wout_ref[l]                 # (E, E), pre-transposed

        attn = None
        for h in range(NHEAD):               # static unroll over heads
            qh = qkv[:, h * HD:(h + 1) * HD].reshape(B, S, HD)
            kh = qkv[:, E + h * HD:E + (h + 1) * HD].reshape(B, S, HD)
            vh = qkv[:, 2 * E + h * HD:2 * E + (h + 1) * HD].reshape(B, S, HD)

            s = jnp.einsum('bqd,bkd->bqk', qh, kh,
                           preferred_element_type=jnp.float32)
            s = s * inv_sqrt_hd + mask_b
            s = s - jnp.max(s, axis=-1, keepdims=True)       # stable softmax
            p = jnp.exp(s)
            p = p * pl.reciprocal(jnp.sum(p, axis=-1, keepdims=True),
                                  approx=True)
            oh = jnp.einsum('bqk,bkd->bqd', p, vh,
                            preferred_element_type=jnp.float32)

            # out_proj(concat(heads)) == sum_h heads_h @ Wout[h*HD:(h+1)*HD, :]
            contrib = jnp.dot(oh.reshape(BS, HD),
                              wout_l[h * HD:(h + 1) * HD, :],
                              preferred_element_type=jnp.float32)
            attn = contrib if attn is None else attn + contrib
        attn = attn + out_b

        # residual + norm1 (dropout = identity at inference)
        x = _layernorm(x + attn, ln1w, ln1b)

        # ---- feed-forward (relu) ----
        h1 = jnp.maximum(
            jnp.dot(x, w1_ref[l], preferred_element_type=jnp.float32) + b1, 0.0)
        ff = jnp.dot(h1, w2_ref[l], preferred_element_type=jnp.float32) + b2

        # residual + norm2
        x = _layernorm(x + ff, ln2w, ln2b)

    # ---- decoder Linear(ninp -> 2), zero-padded to 128 cols (lane-dense) ----
    out = jnp.dot(x, dec_w_ref[...], preferred_element_type=jnp.float32) + dec_b_ref[...]
    o_ref[...] = out.reshape(B, S, NCLS_PAD)


def transformer_forward(x_embed, mask_bias, params, block_b=16):
    """x_embed: (N, S, E) f32, mask_bias: (N, 1, S) f32 additive key bias."""
    N, S, E = x_embed.shape
    assert E == NINP

    B = min(block_b, N)
    n_blocks = pl.cdiv(N, B)
    n_pad = n_blocks * B
    if n_pad != N:
        pad = n_pad - N
        x_embed = jnp.pad(x_embed, ((0, pad), (0, 0), (0, 0)))
        mask_bias = jnp.pad(mask_bias, ((0, pad), (0, 0), (0, 0)))

    weight_args = (params["win_t"], params["wout_t"], params["w1_t"],
                   params["w2_t"], params["vecs"],
                   params["dec_w_p"], params["dec_b_p"])

    def full_spec(a):
        return pl.BlockSpec(a.shape, lambda b, n=a.ndim: (0,) * n)

    in_specs = [pl.BlockSpec((B, S, E), lambda b: (b, 0, 0)),
                pl.BlockSpec((B, 1, S), lambda b: (b, 0, 0))]
    in_specs += [full_spec(a) for a in weight_args]

    out = pl.pallas_call(
        transformer_kernel,
        out_shape=jax.ShapeDtypeStruct((n_pad, S, NCLS_PAD), jnp.float32),
        grid_spec=pltpu.PrefetchScalarGridSpec(
            num_scalar_prefetch=0,
            grid=(n_blocks,),
            in_specs=in_specs,
            out_specs=pl.BlockSpec((B, S, NCLS_PAD), lambda b: (b, 0, 0)),
        ),
        compiler_params=pltpu.CompilerParams(
            dimension_semantics=("parallel",)),
    )(x_embed, mask_bias, *weight_args)

    return out[:N, :, :NCLS]


def init_params(key):
    ks = iter(jax.random.split(key, 32))

    def u(shape, r=0.1):
        return jax.random.uniform(next(ks), shape, jnp.float32, -r, r)

    p = {}
    # embedding tables (module init: uniform(-0.1, 0.1); pos_embedding default N(0,1))
    p["ex_emb"] = u((N_EXERCISES, NINP))
    p["pos_emb"] = jax.random.normal(next(ks), (NINP, NINP), jnp.float32)
    p["part_emb"] = u((7 + 1, NINP))
    p["time_emb"] = u((301, NINP))

    # stacked per-layer encoder weights, PRE-TRANSPOSED for x @ W layout
    p["win_t"] = u((NLAYERS, NINP, 3 * NINP))   # in_proj_weight.T
    p["wout_t"] = u((NLAYERS, NINP, NINP))      # out_proj.weight.T
    p["w1_t"] = u((NLAYERS, NINP, NHID))        # linear1.weight.T
    p["w2_t"] = u((NLAYERS, NHID, NINP))        # linear2.weight.T

    # packed per-layer bias / LayerNorm vectors: (L, 8, 128) rows =
    #   [in_b(96), out_b(32), b1(64), b2(32), ln1w, ln1b, ln2w, ln2b]
    in_b = u((NLAYERS, 3 * NINP))
    out_b = u((NLAYERS, NINP))
    b1 = u((NLAYERS, NHID))
    b2 = u((NLAYERS, NINP))
    ln1w = jnp.ones((NLAYERS, NINP), jnp.float32)
    ln1b = jnp.zeros((NLAYERS, NINP), jnp.float32)
    ln2w = jnp.ones((NLAYERS, NINP), jnp.float32)
    ln2b = jnp.zeros((NLAYERS, NINP), jnp.float32)

    def row(v):
        return jnp.pad(v, ((0, 0), (0, VEC_W - v.shape[-1])))

    p["vecs"] = jnp.stack(
        [row(in_b), row(out_b), row(b1), row(b2),
         row(ln1w), row(ln1b), row(ln2w), row(ln2b)], axis=1)  # (L, 8, 128)

    # decoder Linear(32, 2): weight uniform(-0.1, 0.1), bias zero;
    # pre-transposed and zero-padded to 128 output columns (lane-dense store)
    dec_w = u((NCLS, NINP))
    p["dec_w_p"] = jnp.pad(dec_w.T, ((0, 0), (0, NCLS_PAD - NCLS)))
    p["dec_b_p"] = jnp.zeros((1, NCLS_PAD), jnp.float32)
    return p


if __name__ == "__main__":
    key = jax.random.PRNGKey(0)
    pkey, dkey = jax.random.split(key)
    params = init_params(pkey)

    N, S = 2, 8  # batch, sequence length
    assert S <= NINP, "pos_embedding table is (ninp, ninp): requires S <= ninp"

    k1, k2, k3 = jax.random.split(dkey, 3)
    content_id = jax.random.randint(k1, (N, S), 0, N_EXERCISES, dtype=jnp.int32)
    part_id = jax.random.randint(k2, (N, S), 0, 8, dtype=jnp.int32)
    prior_time = jax.random.randint(k3, (N, S), 0, 301, dtype=jnp.int32)
    mask_padding = jnp.zeros((N, S), jnp.bool_).at[1, S - 1].set(True)

    # --- plain-JAX glue: embedding gathers (sum of 4 embeddings), (N, S, E) ---
    x_embed = (jnp.take(params["ex_emb"], content_id, axis=0)
               + params["pos_emb"][jnp.arange(S)][None, :, :]
               + jnp.take(params["part_emb"], part_id, axis=0)
               + jnp.take(params["time_emb"], prior_time, axis=0)).astype(jnp.float32)
    # key_padding_mask -> additive bias over keys (module passes no src_mask)
    mask_bias = jnp.where(mask_padding, -1e9, 0.0).astype(jnp.float32).reshape(N, 1, S)

    # TODO(synk): dropout (p=0.3) is implemented as identity (inference mode).
    out = transformer_forward(x_embed, mask_bias, params)
    jax.block_until_ready(out)
    assert out.shape == (N, S, NCLS), out.shape
    print("KERNEL_OK")
</pallas_src>

<mosaic_0001>
module attributes {stable_mosaic.version = 11 : i64} {
  func.func @transformer_kernel(%arg0: i32, %arg1: memref<2x8x32xf32, #tpu.memory_space<vmem>>, %arg2: memref<2x1x8xf32, #tpu.memory_space<vmem>>, %arg3: memref<2x32x96xf32, #tpu.memory_space<vmem>>, %arg4: memref<2x32x32xf32, #tpu.memory_space<vmem>>, %arg5: memref<2x32x64xf32, #tpu.memory_space<vmem>>, %arg6: memref<2x64x32xf32, #tpu.memory_space<vmem>>, %arg7: memref<2x8x128xf32, #tpu.memory_space<vmem>>, %arg8: memref<32x128xf32, #tpu.memory_space<vmem>>, %arg9: memref<1x128xf32, #tpu.memory_space<vmem>>, %arg10: memref<2x8x128xf32, #tpu.memory_space<vmem>>) attributes {dimension_semantics = [#tpu.dimension_semantics<parallel>], iteration_bounds = array<i64: 1>, scalar_prefetch = 0 : i64, scratch_operands = 0 : i64, tpu.core_type = #tpu.core_type<tc>, window_params = [{transform_indices = @transform_0, window_bounds = array<i64: 2, 8, 32>}, {transform_indices = @transform_1, window_bounds = array<i64: 2, 1, 8>}, {pipeline_mode = #tpu.pipeline_mode<synchronous>, transform_indices = @transform_2, window_bounds = array<i64: 2, 32, 96>}, {pipeline_mode = #tpu.pipeline_mode<synchronous>, transform_indices = @transform_3, window_bounds = array<i64: 2, 32, 32>}, {pipeline_mode = #tpu.pipeline_mode<synchronous>, transform_indices = @transform_4, window_bounds = array<i64: 2, 32, 64>}, {pipeline_mode = #tpu.pipeline_mode<synchronous>, transform_indices = @transform_5, window_bounds = array<i64: 2, 64, 32>}, {pipeline_mode = #tpu.pipeline_mode<synchronous>, transform_indices = @transform_6, window_bounds = array<i64: 2, 8, 128>}, {pipeline_mode = #tpu.pipeline_mode<synchronous>, transform_indices = @transform_7, window_bounds = array<i64: 32, 128>}, {pipeline_mode = #tpu.pipeline_mode<synchronous>, transform_indices = @transform_8, window_bounds = array<i64: 1, 128>}, {transform_indices = @transform_9, window_bounds = array<i64: 2, 8, 128>}]} {
    %c0 = arith.constant 0 : index
    %c0_0 = arith.constant 0 : index
    %c0_1 = arith.constant 0 : index
    %0 = vector.load %arg1[%c0, %c0_0, %c0_1] : memref<2x8x32xf32, #tpu.memory_space<vmem>>, vector<2x8x32xf32>
    %1 = vector.shape_cast %0 : vector<2x8x32xf32> to vector<16x32xf32>
    %cst = arith.constant 5.65685415 : f32
    %2 = vector.broadcast %cst : f32 to vector<16x32xf32>
    %3 = arith.mulf %1, %2 : vector<16x32xf32>
    %c0_2 = arith.constant 0 : index
    %c0_3 = arith.constant 0 : index
    %c0_4 = arith.constant 0 : index
    %4 = vector.load %arg2[%c0_2, %c0_3, %c0_4] : memref<2x1x8xf32, #tpu.memory_space<vmem>>, vector<2x1x8xf32>
    %5 = vector.shape_cast %4 : vector<2x1x8xf32> to vector<2x1x8xf32>
    %6 = vector.broadcast %5 : vector<2x1x8xf32> to vector<2x8x8xf32>
    %c0_5 = arith.constant 0 : index
    %c0_6 = arith.constant 0 : index
    %c0_7 = arith.constant 0 : index
    %7 = vector.load %arg7[%c0_5, %c0_6, %c0_7] : memref<2x8x128xf32, #tpu.memory_space<vmem>>, vector<1x8x128xf32>
    %8 = vector.shape_cast %7 : vector<1x8x128xf32> to vector<8x128xf32>
    %9 = vector.extract_strided_slice %8 {offsets = [0, 0], sizes = [1, 96], strides = [1, 1]} : vector<8x128xf32> to vector<1x96xf32>
    %10 = vector.extract_strided_slice %8 {offsets = [1, 0], sizes = [1, 32], strides = [1, 1]} : vector<8x128xf32> to vector<1x32xf32>
    %11 = vector.extract_strided_slice %8 {offsets = [2, 0], sizes = [1, 64], strides = [1, 1]} : vector<8x128xf32> to vector<1x64xf32>
    %12 = vector.extract_strided_slice %8 {offsets = [3, 0], sizes = [1, 32], strides = [1, 1]} : vector<8x128xf32> to vector<1x32xf32>
    %13 = vector.extract_strided_slice %8 {offsets = [4, 0], sizes = [1, 32], strides = [1, 1]} : vector<8x128xf32> to vector<1x32xf32>
    %14 = vector.extract_strided_slice %8 {offsets = [5, 0], sizes = [1, 32], strides = [1, 1]} : vector<8x128xf32> to vector<1x32xf32>
    %15 = vector.extract_strided_slice %8 {offsets = [6, 0], sizes = [1, 32], strides = [1, 1]} : vector<8x128xf32> to vector<1x32xf32>
    %16 = vector.extract_strided_slice %8 {offsets = [7, 0], sizes = [1, 32], strides = [1, 1]} : vector<8x128xf32> to vector<1x32xf32>
    %c0_8 = arith.constant 0 : index
    %c0_9 = arith.constant 0 : index
    %c0_10 = arith.constant 0 : index
    %17 = vector.load %arg3[%c0_8, %c0_9, %c0_10] : memref<2x32x96xf32, #tpu.memory_space<vmem>>, vector<1x32x96xf32>
    %18 = vector.shape_cast %17 : vector<1x32x96xf32> to vector<32x96xf32>
    %cst_11 = arith.constant dense<0.000000e+00> : vector<16x96xf32>
    %19 = tpu.matmul %3, %18, %cst_11 {dimension_numbers = #tpu.dot_dimension_numbers<[1], [0], [0], [1], [0, 0, 1, 1], [], []>} : vector<16x32xf32>, vector<32x96xf32>, vector<16x96xf32> -> vector<16x96xf32>
    %20 = vector.broadcast %9 : vector<1x96xf32> to vector<16x96xf32>
    %21 = arith.addf %19, %20 : vector<16x96xf32>
    %c0_12 = arith.constant 0 : index
    %c0_13 = arith.constant 0 : index
    %c0_14 = arith.constant 0 : index
    %22 = vector.load %arg4[%c0_12, %c0_13, %c0_14] : memref<2x32x32xf32, #tpu.memory_space<vmem>>, vector<1x32x32xf32>
    %23 = vector.shape_cast %22 : vector<1x32x32xf32> to vector<32x32xf32>
    %24 = vector.extract_strided_slice %21 {offsets = [0, 0], sizes = [16, 8], strides = [1, 1]} : vector<16x96xf32> to vector<16x8xf32>
    %25 = vector.shape_cast %24 : vector<16x8xf32> to vector<2x8x8xf32>
    %26 = vector.extract_strided_slice %21 {offsets = [0, 32], sizes = [16, 8], strides = [1, 1]} : vector<16x96xf32> to vector<16x8xf32>
    %27 = vector.shape_cast %26 : vector<16x8xf32> to vector<2x8x8xf32>
    %28 = vector.extract_strided_slice %21 {offsets = [0, 64], sizes = [16, 8], strides = [1, 1]} : vector<16x96xf32> to vector<16x8xf32>
    %29 = vector.shape_cast %28 : vector<16x8xf32> to vector<2x8x8xf32>
    "tpu.trace_start"() <{level = 10 : i32, message = "bqd,bkd->bqk"}> : () -> ()
    %cst_15 = arith.constant dense<0.000000e+00> : vector<2x8x8xf32>
    %30 = tpu.matmul %25, %27, %cst_15 {dimension_numbers = #tpu.dot_dimension_numbers<[2], [2], [1], [1], [0, 0, 0, 1, 1, 1], [0], [0]>} : vector<2x8x8xf32>, vector<2x8x8xf32>, vector<2x8x8xf32> -> vector<2x8x8xf32>
    "tpu.trace_stop"() : () -> ()
    %cst_16 = arith.constant 0.353553385 : f32
    %31 = vector.broadcast %cst_16 : f32 to vector<2x8x8xf32>
    %32 = arith.mulf %30, %31 : vector<2x8x8xf32>
    %33 = arith.addf %32, %6 : vector<2x8x8xf32>
    %cst_17 = arith.constant dense<0xFF800000> : vector<2x8xf32>
    %34 = vector.multi_reduction <maximumf>, %33, %cst_17 [2] : vector<2x8x8xf32> to vector<2x8xf32>
    %35 = vector.shape_cast %34 : vector<2x8xf32> to vector<2x8x1xf32>
    %36 = vector.broadcast %35 : vector<2x8x1xf32> to vector<2x8x8xf32>
    %37 = arith.subf %33, %36 : vector<2x8x8xf32>
    %38 = math.exp %37 : vector<2x8x8xf32>
    %cst_18 = arith.constant dense<0.000000e+00> : vector<2x8xf32>
    %39 = vector.multi_reduction <add>, %38, %cst_18 [2] : vector<2x8x8xf32> to vector<2x8xf32>
    %40 = vector.shape_cast %39 : vector<2x8xf32> to vector<2x8x1xf32>
    %41 = tpu.reciprocal %40 {approx = true} : vector<2x8x1xf32> -> vector<2x8x1xf32>
    %42 = vector.broadcast %41 : vector<2x8x1xf32> to vector<2x8x8xf32>
    %43 = arith.mulf %38, %42 : vector<2x8x8xf32>
    "tpu.trace_start"() <{level = 10 : i32, message = "bqk,bkd->bqd"}> : () -> ()
    %cst_19 = arith.constant dense<0.000000e+00> : vector<2x8x8xf32>
    %44 = tpu.matmul %43, %29, %cst_19 {dimension_numbers = #tpu.dot_dimension_numbers<[2], [1], [1], [2], [0, 0, 0, 1, 1, 2], [0], [0]>} : vector<2x8x8xf32>, vector<2x8x8xf32>, vector<2x8x8xf32> -> vector<2x8x8xf32>
    "tpu.trace_stop"() : () -> ()
    %45 = vector.shape_cast %44 : vector<2x8x8xf32> to vector<16x8xf32>
    %46 = vector.extract_strided_slice %23 {offsets = [0, 0], sizes = [8, 32], strides = [1, 1]} : vector<32x32xf32> to vector<8x32xf32>
    %cst_20 = arith.constant dense<0.000000e+00> : vector<16x32xf32>
    %47 = tpu.matmul %45, %46, %cst_20 {dimension_numbers = #tpu.dot_dimension_numbers<[1], [0], [0], [1], [0, 0, 1, 1], [], []>} : vector<16x8xf32>, vector<8x32xf32>, vector<16x32xf32> -> vector<16x32xf32>
    %48 = vector.extract_strided_slice %21 {offsets = [0, 8], sizes = [16, 8], strides = [1, 1]} : vector<16x96xf32> to vector<16x8xf32>
    %49 = vector.shape_cast %48 : vector<16x8xf32> to vector<2x8x8xf32>
    %50 = vector.extract_strided_slice %21 {offsets = [0, 40], sizes = [16, 8], strides = [1, 1]} : vector<16x96xf32> to vector<16x8xf32>
    %51 = vector.shape_cast %50 : vector<16x8xf32> to vector<2x8x8xf32>
    %52 = vector.extract_strided_slice %21 {offsets = [0, 72], sizes = [16, 8], strides = [1, 1]} : vector<16x96xf32> to vector<16x8xf32>
    %53 = vector.shape_cast %52 : vector<16x8xf32> to vector<2x8x8xf32>
    "tpu.trace_start"() <{level = 10 : i32, message = "bqd,bkd->bqk"}> : () -> ()
    %cst_21 = arith.constant dense<0.000000e+00> : vector<2x8x8xf32>
    %54 = tpu.matmul %49, %51, %cst_21 {dimension_numbers = #tpu.dot_dimension_numbers<[2], [2], [1], [1], [0, 0, 0, 1, 1, 1], [0], [0]>} : vector<2x8x8xf32>, vector<2x8x8xf32>, vector<2x8x8xf32> -> vector<2x8x8xf32>
    "tpu.trace_stop"() : () -> ()
    %cst_22 = arith.constant 0.353553385 : f32
    %55 = vector.broadcast %cst_22 : f32 to vector<2x8x8xf32>
    %56 = arith.mulf %54, %55 : vector<2x8x8xf32>
    %57 = arith.addf %56, %6 : vector<2x8x8xf32>
    %cst_23 = arith.constant dense<0xFF800000> : vector<2x8xf32>
    %58 = vector.multi_reduction <maximumf>, %57, %cst_23 [2] : vector<2x8x8xf32> to vector<2x8xf32>
    %59 = vector.shape_cast %58 : vector<2x8xf32> to vector<2x8x1xf32>
    %60 = vector.broadcast %59 : vector<2x8x1xf32> to vector<2x8x8xf32>
    %61 = arith.subf %57, %60 : vector<2x8x8xf32>
    %62 = math.exp %61 : vector<2x8x8xf32>
    %cst_24 = arith.constant dense<0.000000e+00> : vector<2x8xf32>
    %63 = vector.multi_reduction <add>, %62, %cst_24 [2] : vector<2x8x8xf32> to vector<2x8xf32>
    %64 = vector.shape_cast %63 : vector<2x8xf32> to vector<2x8x1xf32>
    %65 = tpu.reciprocal %64 {approx = true} : vector<2x8x1xf32> -> vector<2x8x1xf32>
    %66 = vector.broadcast %65 : vector<2x8x1xf32> to vector<2x8x8xf32>
    %67 = arith.mulf %62, %66 : vector<2x8x8xf32>
    "tpu.trace_start"() <{level = 10 : i32, message = "bqk,bkd->bqd"}> : () -> ()
    %cst_25 = arith.constant dense<0.000000e+00> : vector<2x8x8xf32>
    %68 = tpu.matmul %67, %53, %cst_25 {dimension_numbers = #tpu.dot_dimension_numbers<[2], [1], [1], [2], [0, 0, 0, 1, 1, 2], [0], [0]>} : vector<2x8x8xf32>, vector<2x8x8xf32>, vector<2x8x8xf32> -> vector<2x8x8xf32>
    "tpu.trace_stop"() : () -> ()
    %69 = vector.shape_cast %68 : vector<2x8x8xf32> to vector<16x8xf32>
    %70 = vector.extract_strided_slice %23 {offsets = [8, 0], sizes = [8, 32], strides = [1, 1]} : vector<32x32xf32> to vector<8x32xf32>
    %cst_26 = arith.constant dense<0.000000e+00> : vector<16x32xf32>
    %71 = tpu.matmul %69, %70, %cst_26 {dimension_numbers = #tpu.dot_dimension_numbers<[1], [0], [0], [1], [0, 0, 1, 1], [], []>} : vector<16x8xf32>, vector<8x32xf32>, vector<16x32xf32> -> vector<16x32xf32>
    %72 = arith.addf %47, %71 : vector<16x32xf32>
    %73 = vector.extract_strided_slice %21 {offsets = [0, 16], sizes = [16, 8], strides = [1, 1]} : vector<16x96xf32> to vector<16x8xf32>
    %74 = vector.shape_cast %73 : vector<16x8xf32> to vector<2x8x8xf32>
    %75 = vector.extract_strided_slice %21 {offsets = [0, 48], sizes = [16, 8], strides = [1, 1]} : vector<16x96xf32> to vector<16x8xf32>
    %76 = vector.shape_cast %75 : vector<16x8xf32> to vector<2x8x8xf32>
    %77 = vector.extract_strided_slice %21 {offsets = [0, 80], sizes = [16, 8], strides = [1, 1]} : vector<16x96xf32> to vector<16x8xf32>
    %78 = vector.shape_cast %77 : vector<16x8xf32> to vector<2x8x8xf32>
    "tpu.trace_start"() <{level = 10 : i32, message = "bqd,bkd->bqk"}> : () -> ()
    %cst_27 = arith.constant dense<0.000000e+00> : vector<2x8x8xf32>
    %79 = tpu.matmul %74, %76, %cst_27 {dimension_numbers = #tpu.dot_dimension_numbers<[2], [2], [1], [1], [0, 0, 0, 1, 1, 1], [0], [0]>} : vector<2x8x8xf32>, vector<2x8x8xf32>, vector<2x8x8xf32> -> vector<2x8x8xf32>
    "tpu.trace_stop"() : () -> ()
    %cst_28 = arith.constant 0.353553385 : f32
    %80 = vector.broadcast %cst_28 : f32 to vector<2x8x8xf32>
    %81 = arith.mulf %79, %80 : vector<2x8x8xf32>
    %82 = arith.addf %81, %6 : vector<2x8x8xf32>
    %cst_29 = arith.constant dense<0xFF800000> : vector<2x8xf32>
    %83 = vector.multi_reduction <maximumf>, %82, %cst_29 [2] : vector<2x8x8xf32> to vector<2x8xf32>
    %84 = vector.shape_cast %83 : vector<2x8xf32> to vector<2x8x1xf32>
    %85 = vector.broadcast %84 : vector<2x8x1xf32> to vector<2x8x8xf32>
    %86 = arith.subf %82, %85 : vector<2x8x8xf32>
    %87 = math.exp %86 : vector<2x8x8xf32>
    %cst_30 = arith.constant dense<0.000000e+00> : vector<2x8xf32>
    %88 = vector.multi_reduction <add>, %87, %cst_30 [2] : vector<2x8x8xf32> to vector<2x8xf32>
    %89 = vector.shape_cast %88 : vector<2x8xf32> to vector<2x8x1xf32>
    %90 = tpu.reciprocal %89 {approx = true} : vector<2x8x1xf32> -> vector<2x8x1xf32>
    %91 = vector.broadcast %90 : vector<2x8x1xf32> to vector<2x8x8xf32>
    %92 = arith.mulf %87, %91 : vector<2x8x8xf32>
    "tpu.trace_start"() <{level = 10 : i32, message = "bqk,bkd->bqd"}> : () -> ()
    %cst_31 = arith.constant dense<0.000000e+00> : vector<2x8x8xf32>
    %93 = tpu.matmul %92, %78, %cst_31 {dimension_numbers = #tpu.dot_dimension_numbers<[2], [1], [1], [2], [0, 0, 0, 1, 1, 2], [0], [0]>} : vector<2x8x8xf32>, vector<2x8x8xf32>, vector<2x8x8xf32> -> vector<2x8x8xf32>
    "tpu.trace_stop"() : () -> ()
    %94 = vector.shape_cast %93 : vector<2x8x8xf32> to vector<16x8xf32>
    %95 = vector.extract_strided_slice %23 {offsets = [16, 0], sizes = [8, 32], strides = [1, 1]} : vector<32x32xf32> to vector<8x32xf32>
    %cst_32 = arith.constant dense<0.000000e+00> : vector<16x32xf32>
    %96 = tpu.matmul %94, %95, %cst_32 {dimension_numbers = #tpu.dot_dimension_numbers<[1], [0], [0], [1], [0, 0, 1, 1], [], []>} : vector<16x8xf32>, vector<8x32xf32>, vector<16x32xf32> -> vector<16x32xf32>
    %97 = arith.addf %72, %96 : vector<16x32xf32>
    %98 = vector.extract_strided_slice %21 {offsets = [0, 24], sizes = [16, 8], strides = [1, 1]} : vector<16x96xf32> to vector<16x8xf32>
    %99 = vector.shape_cast %98 : vector<16x8xf32> to vector<2x8x8xf32>
    %100 = vector.extract_strided_slice %21 {offsets = [0, 56], sizes = [16, 8], strides = [1, 1]} : vector<16x96xf32> to vector<16x8xf32>
    %101 = vector.shape_cast %100 : vector<16x8xf32> to vector<2x8x8xf32>
    %102 = vector.extract_strided_slice %21 {offsets = [0, 88], sizes = [16, 8], strides = [1, 1]} : vector<16x96xf32> to vector<16x8xf32>
    %103 = vector.shape_cast %102 : vector<16x8xf32> to vector<2x8x8xf32>
    "tpu.trace_start"() <{level = 10 : i32, message = "bqd,bkd->bqk"}> : () -> ()
    %cst_33 = arith.constant dense<0.000000e+00> : vector<2x8x8xf32>
    %104 = tpu.matmul %99, %101, %cst_33 {dimension_numbers = #tpu.dot_dimension_numbers<[2], [2], [1], [1], [0, 0, 0, 1, 1, 1], [0], [0]>} : vector<2x8x8xf32>, vector<2x8x8xf32>, vector<2x8x8xf32> -> vector<2x8x8xf32>
    "tpu.trace_stop"() : () -> ()
    %cst_34 = arith.constant 0.353553385 : f32
    %105 = vector.broadcast %cst_34 : f32 to vector<2x8x8xf32>
    %106 = arith.mulf %104, %105 : vector<2x8x8xf32>
    %107 = arith.addf %106, %6 : vector<2x8x8xf32>
    %cst_35 = arith.constant dense<0xFF800000> : vector<2x8xf32>
    %108 = vector.multi_reduction <maximumf>, %107, %cst_35 [2] : vector<2x8x8xf32> to vector<2x8xf32>
    %109 = vector.shape_cast %108 : vector<2x8xf32> to vector<2x8x1xf32>
    %110 = vector.broadcast %109 : vector<2x8x1xf32> to vector<2x8x8xf32>
    %111 = arith.subf %107, %110 : vector<2x8x8xf32>
    %112 = math.exp %111 : vector<2x8x8xf32>
    %cst_36 = arith.constant dense<0.000000e+00> : vector<2x8xf32>
    %113 = vector.multi_reduction <add>, %112, %cst_36 [2] : vector<2x8x8xf32> to vector<2x8xf32>
    %114 = vector.shape_cast %113 : vector<2x8xf32> to vector<2x8x1xf32>
    %115 = tpu.reciprocal %114 {approx = true} : vector<2x8x1xf32> -> vector<2x8x1xf32>
    %116 = vector.broadcast %115 : vector<2x8x1xf32> to vector<2x8x8xf32>
    %117 = arith.mulf %112, %116 : vector<2x8x8xf32>
    "tpu.trace_start"() <{level = 10 : i32, message = "bqk,bkd->bqd"}> : () -> ()
    %cst_37 = arith.constant dense<0.000000e+00> : vector<2x8x8xf32>
    %118 = tpu.matmul %117, %103, %cst_37 {dimension_numbers = #tpu.dot_dimension_numbers<[2], [1], [1], [2], [0, 0, 0, 1, 1, 2], [0], [0]>} : vector<2x8x8xf32>, vector<2x8x8xf32>, vector<2x8x8xf32> -> vector<2x8x8xf32>
    "tpu.trace_stop"() : () -> ()
    %119 = vector.shape_cast %118 : vector<2x8x8xf32> to vector<16x8xf32>
    %120 = vector.extract_strided_slice %23 {offsets = [24, 0], sizes = [8, 32], strides = [1, 1]} : vector<32x32xf32> to vector<8x32xf32>
    %cst_38 = arith.constant dense<0.000000e+00> : vector<16x32xf32>
    %121 = tpu.matmul %119, %120, %cst_38 {dimension_numbers = #tpu.dot_dimension_numbers<[1], [0], [0], [1], [0, 0, 1, 1], [], []>} : vector<16x8xf32>, vector<8x32xf32>, vector<16x32xf32> -> vector<16x32xf32>
    %122 = arith.addf %97, %121 : vector<16x32xf32>
    %123 = vector.broadcast %10 : vector<1x32xf32> to vector<16x32xf32>
    %124 = arith.addf %122, %123 : vector<16x32xf32>
    %125 = arith.addf %3, %124 : vector<16x32xf32>
    %cst_39 = arith.constant dense<0.000000e+00> : vector<16xf32>
    %126 = vector.multi_reduction <add>, %125, %cst_39 [1] : vector<16x32xf32> to vector<16xf32>
    %127 = vector.shape_cast %126 : vector<16xf32> to vector<16x1xf32>
    %cst_40 = arith.constant 3.200000e+01 : f32
    %128 = vector.broadcast %cst_40 : f32 to vector<16x1xf32>
    %129 = arith.divf %127, %128 : vector<16x1xf32>
    %130 = vector.broadcast %129 : vector<16x1xf32> to vector<16x32xf32>
    %131 = arith.subf %125, %130 : vector<16x32xf32>
    %132 = arith.mulf %131, %131 : vector<16x32xf32>
    %cst_41 = arith.constant dense<0.000000e+00> : vector<16xf32>
    %133 = vector.multi_reduction <add>, %132, %cst_41 [1] : vector<16x32xf32> to vector<16xf32>
    %134 = vector.shape_cast %133 : vector<16xf32> to vector<16x1xf32>
    %cst_42 = arith.constant 3.200000e+01 : f32
    %135 = vector.broadcast %cst_42 : f32 to vector<16x1xf32>
    %136 = arith.divf %134, %135 : vector<16x1xf32>
    %137 = vector.broadcast %129 : vector<16x1xf32> to vector<16x32xf32>
    %138 = arith.subf %125, %137 : vector<16x32xf32>
    %cst_43 = arith.constant 9.99999974E-6 : f32
    %139 = vector.broadcast %cst_43 : f32 to vector<16x1xf32>
    %140 = arith.addf %136, %139 : vector<16x1xf32>
    %141 = math.rsqrt %140 : vector<16x1xf32>
    %142 = vector.broadcast %141 : vector<16x1xf32> to vector<16x32xf32>
    %143 = arith.mulf %138, %142 : vector<16x32xf32>
    %144 = vector.broadcast %13 : vector<1x32xf32> to vector<16x32xf32>
    %145 = arith.mulf %143, %144 : vector<16x32xf32>
    %146 = vector.broadcast %14 : vector<1x32xf32> to vector<16x32xf32>
    %147 = arith.addf %145, %146 : vector<16x32xf32>
    %c0_44 = arith.constant 0 : index
    %c0_45 = arith.constant 0 : index
    %c0_46 = arith.constant 0 : index
    %148 = vector.load %arg5[%c0_44, %c0_45, %c0_46] : memref<2x32x64xf32, #tpu.memory_space<vmem>>, vector<1x32x64xf32>
    %149 = vector.shape_cast %148 : vector<1x32x64xf32> to vector<32x64xf32>
    %cst_47 = arith.constant dense<0.000000e+00> : vector<16x64xf32>
    %150 = tpu.matmul %147, %149, %cst_47 {dimension_numbers = #tpu.dot_dimension_numbers<[1], [0], [0], [1], [0, 0, 1, 1], [], []>} : vector<16x32xf32>, vector<32x64xf32>, vector<16x64xf32> -> vector<16x64xf32>
    %151 = vector.broadcast %11 : vector<1x64xf32> to vector<16x64xf32>
    %152 = arith.addf %150, %151 : vector<16x64xf32>
    %cst_48 = arith.constant 0.000000e+00 : f32
    %153 = vector.broadcast %cst_48 : f32 to vector<16x64xf32>
    %154 = arith.maximumf %152, %153 : vector<16x64xf32>
    %c0_49 = arith.constant 0 : index
    %c0_50 = arith.constant 0 : index
    %c0_51 = arith.constant 0 : index
    %155 = vector.load %arg6[%c0_49, %c0_50, %c0_51] : memref<2x64x32xf32, #tpu.memory_space<vmem>>, vector<1x64x32xf32>
    %156 = vector.shape_cast %155 : vector<1x64x32xf32> to vector<64x32xf32>
    %cst_52 = arith.constant dense<0.000000e+00> : vector<16x32xf32>
    %157 = tpu.matmul %154, %156, %cst_52 {dimension_numbers = #tpu.dot_dimension_numbers<[1], [0], [0], [1], [0, 0, 1, 1], [], []>} : vector<16x64xf32>, vector<64x32xf32>, vector<16x32xf32> -> vector<16x32xf32>
    %158 = vector.broadcast %12 : vector<1x32xf32> to vector<16x32xf32>
    %159 = arith.addf %157, %158 : vector<16x32xf32>
    %160 = arith.addf %147, %159 : vector<16x32xf32>
    %cst_53 = arith.constant dense<0.000000e+00> : vector<16xf32>
    %161 = vector.multi_reduction <add>, %160, %cst_53 [1] : vector<16x32xf32> to vector<16xf32>
    %162 = vector.shape_cast %161 : vector<16xf32> to vector<16x1xf32>
    %cst_54 = arith.constant 3.200000e+01 : f32
    %163 = vector.broadcast %cst_54 : f32 to vector<16x1xf32>
    %164 = arith.divf %162, %163 : vector<16x1xf32>
    %165 = vector.broadcast %164 : vector<16x1xf32> to vector<16x32xf32>
    %166 = arith.subf %160, %165 : vector<16x32xf32>
    %167 = arith.mulf %166, %166 : vector<16x32xf32>
    %cst_55 = arith.constant dense<0.000000e+00> : vector<16xf32>
    %168 = vector.multi_reduction <add>, %167, %cst_55 [1] : vector<16x32xf32> to vector<16xf32>
    %169 = vector.shape_cast %168 : vector<16xf32> to vector<16x1xf32>
    %cst_56 = arith.constant 3.200000e+01 : f32
    %170 = vector.broadcast %cst_56 : f32 to vector<16x1xf32>
    %171 = arith.divf %169, %170 : vector<16x1xf32>
    %172 = vector.broadcast %164 : vector<16x1xf32> to vector<16x32xf32>
    %173 = arith.subf %160, %172 : vector<16x32xf32>
    %cst_57 = arith.constant 9.99999974E-6 : f32
    %174 = vector.broadcast %cst_57 : f32 to vector<16x1xf32>
    %175 = arith.addf %171, %174 : vector<16x1xf32>
    %176 = math.rsqrt %175 : vector<16x1xf32>
    %177 = vector.broadcast %176 : vector<16x1xf32> to vector<16x32xf32>
    %178 = arith.mulf %173, %177 : vector<16x32xf32>
    %179 = vector.broadcast %15 : vector<1x32xf32> to vector<16x32xf32>
    %180 = arith.mulf %178, %179 : vector<16x32xf32>
    %181 = vector.broadcast %16 : vector<1x32xf32> to vector<16x32xf32>
    %182 = arith.addf %180, %181 : vector<16x32xf32>
    %c1 = arith.constant 1 : index
    %c0_58 = arith.constant 0 : index
    %c0_59 = arith.constant 0 : index
    %183 = vector.load %arg7[%c1, %c0_58, %c0_59] : memref<2x8x128xf32, #tpu.memory_space<vmem>>, vector<1x8x128xf32>
    %184 = vector.shape_cast %183 : vector<1x8x128xf32> to vector<8x128xf32>
    %185 = vector.extract_strided_slice %184 {offsets = [0, 0], sizes = [1, 96], strides = [1, 1]} : vector<8x128xf32> to vector<1x96xf32>
    %186 = vector.extract_strided_slice %184 {offsets = [1, 0], sizes = [1, 32], strides = [1, 1]} : vector<8x128xf32> to vector<1x32xf32>
    %187 = vector.extract_strided_slice %184 {offsets = [2, 0], sizes = [1, 64], strides = [1, 1]} : vector<8x128xf32> to vector<1x64xf32>
    %188 = vector.extract_strided_slice %184 {offsets = [3, 0], sizes = [1, 32], strides = [1, 1]} : vector<8x128xf32> to vector<1x32xf32>
    %189 = vector.extract_strided_slice %184 {offsets = [4, 0], sizes = [1, 32], strides = [1, 1]} : vector<8x128xf32> to vector<1x32xf32>
    %190 = vector.extract_strided_slice %184 {offsets = [5, 0], sizes = [1, 32], strides = [1, 1]} : vector<8x128xf32> to vector<1x32xf32>
    %191 = vector.extract_strided_slice %184 {offsets = [6, 0], sizes = [1, 32], strides = [1, 1]} : vector<8x128xf32> to vector<1x32xf32>
    %192 = vector.extract_strided_slice %184 {offsets = [7, 0], sizes = [1, 32], strides = [1, 1]} : vector<8x128xf32> to vector<1x32xf32>
    %c1_60 = arith.constant 1 : index
    %c0_61 = arith.constant 0 : index
    %c0_62 = arith.constant 0 : index
    %193 = vector.load %arg3[%c1_60, %c0_61, %c0_62] : memref<2x32x96xf32, #tpu.memory_space<vmem>>, vector<1x32x96xf32>
    %194 = vector.shape_cast %193 : vector<1x32x96xf32> to vector<32x96xf32>
    %cst_63 = arith.constant dense<0.000000e+00> : vector<16x96xf32>
    %195 = tpu.matmul %182, %194, %cst_63 {dimension_numbers = #tpu.dot_dimension_numbers<[1], [0], [0], [1], [0, 0, 1, 1], [], []>} : vector<16x32xf32>, vector<32x96xf32>, vector<16x96xf32> -> vector<16x96xf32>
    %196 = vector.broadcast %185 : vector<1x96xf32> to vector<16x96xf32>
    %197 = arith.addf %195, %196 : vector<16x96xf32>
    %c1_64 = arith.constant 1 : index
    %c0_65 = arith.constant 0 : index
    %c0_66 = arith.constant 0 : index
    %198 = vector.load %arg4[%c1_64, %c0_65, %c0_66] : memref<2x32x32xf32, #tpu.memory_space<vmem>>, vector<1x32x32xf32>
    %199 = vector.shape_cast %198 : vector<1x32x32xf32> to vector<32x32xf32>
    %200 = vector.extract_strided_slice %197 {offsets = [0, 0], sizes = [16, 8], strides = [1, 1]} : vector<16x96xf32> to vector<16x8xf32>
    %201 = vector.shape_cast %200 : vector<16x8xf32> to vector<2x8x8xf32>
    %202 = vector.extract_strided_slice %197 {offsets = [0, 32], sizes = [16, 8], strides = [1, 1]} : vector<16x96xf32> to vector<16x8xf32>
    %203 = vector.shape_cast %202 : vector<16x8xf32> to vector<2x8x8xf32>
    %204 = vector.extract_strided_slice %197 {offsets = [0, 64], sizes = [16, 8], strides = [1, 1]} : vector<16x96xf32> to vector<16x8xf32>
    %205 = vector.shape_cast %204 : vector<16x8xf32> to vector<2x8x8xf32>
    "tpu.trace_start"() <{level = 10 : i32, message = "bqd,bkd->bqk"}> : () -> ()
    %cst_67 = arith.constant dense<0.000000e+00> : vector<2x8x8xf32>
    %206 = tpu.matmul %201, %203, %cst_67 {dimension_numbers = #tpu.dot_dimension_numbers<[2], [2], [1], [1], [0, 0, 0, 1, 1, 1], [0], [0]>} : vector<2x8x8xf32>, vector<2x8x8xf32>, vector<2x8x8xf32> -> vector<2x8x8xf32>
    "tpu.trace_stop"() : () -> ()
    %cst_68 = arith.constant 0.353553385 : f32
    %207 = vector.broadcast %cst_68 : f32 to vector<2x8x8xf32>
    %208 = arith.mulf %206, %207 : vector<2x8x8xf32>
    %209 = arith.addf %208, %6 : vector<2x8x8xf32>
    %cst_69 = arith.constant dense<0xFF800000> : vector<2x8xf32>
    %210 = vector.multi_reduction <maximumf>, %209, %cst_69 [2] : vector<2x8x8xf32> to vector<2x8xf32>
    %211 = vector.shape_cast %210 : vector<2x8xf32> to vector<2x8x1xf32>
    %212 = vector.broadcast %211 : vector<2x8x1xf32> to vector<2x8x8xf32>
    %213 = arith.subf %209, %212 : vector<2x8x8xf32>
    %214 = math.exp %213 : vector<2x8x8xf32>
    %cst_70 = arith.constant dense<0.000000e+00> : vector<2x8xf32>
    %215 = vector.multi_reduction <add>, %214, %cst_70 [2] : vector<2x8x8xf32> to vector<2x8xf32>
    %216 = vector.shape_cast %215 : vector<2x8xf32> to vector<2x8x1xf32>
    %217 = tpu.reciprocal %216 {approx = true} : vector<2x8x1xf32> -> vector<2x8x1xf32>
    %218 = vector.broadcast %217 : vector<2x8x1xf32> to vector<2x8x8xf32>
    %219 = arith.mulf %214, %218 : vector<2x8x8xf32>
    "tpu.trace_start"() <{level = 10 : i32, message = "bqk,bkd->bqd"}> : () -> ()
    %cst_71 = arith.constant dense<0.000000e+00> : vector<2x8x8xf32>
    %220 = tpu.matmul %219, %205, %cst_71 {dimension_numbers = #tpu.dot_dimension_numbers<[2], [1], [1], [2], [0, 0, 0, 1, 1, 2], [0], [0]>} : vector<2x8x8xf32>, vector<2x8x8xf32>, vector<2x8x8xf32> -> vector<2x8x8xf32>
    "tpu.trace_stop"() : () -> ()
    %221 = vector.shape_cast %220 : vector<2x8x8xf32> to vector<16x8xf32>
    %222 = vector.extract_strided_slice %199 {offsets = [0, 0], sizes = [8, 32], strides = [1, 1]} : vector<32x32xf32> to vector<8x32xf32>
    %cst_72 = arith.constant dense<0.000000e+00> : vector<16x32xf32>
    %223 = tpu.matmul %221, %222, %cst_72 {dimension_numbers = #tpu.dot_dimension_numbers<[1], [0], [0], [1], [0, 0, 1, 1], [], []>} : vector<16x8xf32>, vector<8x32xf32>, vector<16x32xf32> -> vector<16x32xf32>
    %224 = vector.extract_strided_slice %197 {offsets = [0, 8], sizes = [16, 8], strides = [1, 1]} : vector<16x96xf32> to vector<16x8xf32>
    %225 = vector.shape_cast %224 : vector<16x8xf32> to vector<2x8x8xf32>
    %226 = vector.extract_strided_slice %197 {offsets = [0, 40], sizes = [16, 8], strides = [1, 1]} : vector<16x96xf32> to vector<16x8xf32>
    %227 = vector.shape_cast %226 : vector<16x8xf32> to vector<2x8x8xf32>
    %228 = vector.extract_strided_slice %197 {offsets = [0, 72], sizes = [16, 8], strides = [1, 1]} : vector<16x96xf32> to vector<16x8xf32>
    %229 = vector.shape_cast %228 : vector<16x8xf32> to vector<2x8x8xf32>
    "tpu.trace_start"() <{level = 10 : i32, message = "bqd,bkd->bqk"}> : () -> ()
    %cst_73 = arith.constant dense<0.000000e+00> : vector<2x8x8xf32>
    %230 = tpu.matmul %225, %227, %cst_73 {dimension_numbers = #tpu.dot_dimension_numbers<[2], [2], [1], [1], [0, 0, 0, 1, 1, 1], [0], [0]>} : vector<2x8x8xf32>, vector<2x8x8xf32>, vector<2x8x8xf32> -> vector<2x8x8xf32>
    "tpu.trace_stop"() : () -> ()
    %cst_74 = arith.constant 0.353553385 : f32
    %231 = vector.broadcast %cst_74 : f32 to vector<2x8x8xf32>
    %232 = arith.mulf %230, %231 : vector<2x8x8xf32>
    %233 = arith.addf %232, %6 : vector<2x8x8xf32>
    %cst_75 = arith.constant dense<0xFF800000> : vector<2x8xf32>
    %234 = vector.multi_reduction <maximumf>, %233, %cst_75 [2] : vector<2x8x8xf32> to vector<2x8xf32>
    %235 = vector.shape_cast %234 : vector<2x8xf32> to vector<2x8x1xf32>
    %236 = vector.broadcast %235 : vector<2x8x1xf32> to vector<2x8x8xf32>
    %237 = arith.subf %233, %236 : vector<2x8x8xf32>
    %238 = math.exp %237 : vector<2x8x8xf32>
    %cst_76 = arith.constant dense<0.000000e+00> : vector<2x8xf32>
    %239 = vector.multi_reduction <add>, %238, %cst_76 [2] : vector<2x8x8xf32> to vector<2x8xf32>
    %240 = vector.shape_cast %239 : vector<2x8xf32> to vector<2x8x1xf32>
    %241 = tpu.reciprocal %240 {approx = true} : vector<2x8x1xf32> -> vector<2x8x1xf32>
    %242 = vector.broadcast %241 : vector<2x8x1xf32> to vector<2x8x8xf32>
    %243 = arith.mulf %238, %242 : vector<2x8x8xf32>
    "tpu.trace_start"() <{level = 10 : i32, message = "bqk,bkd->bqd"}> : () -> ()
    %cst_77 = arith.constant dense<0.000000e+00> : vector<2x8x8xf32>
    %244 = tpu.matmul %243, %229, %cst_77 {dimension_numbers = #tpu.dot_dimension_numbers<[2], [1], [1], [2], [0, 0, 0, 1, 1, 2], [0], [0]>} : vector<2x8x8xf32>, vector<2x8x8xf32>, vector<2x8x8xf32> -> vector<2x8x8xf32>
    "tpu.trace_stop"() : () -> ()
    %245 = vector.shape_cast %244 : vector<2x8x8xf32> to vector<16x8xf32>
    %246 = vector.extract_strided_slice %199 {offsets = [8, 0], sizes = [8, 32], strides = [1, 1]} : vector<32x32xf32> to vector<8x32xf32>
    %cst_78 = arith.constant dense<0.000000e+00> : vector<16x32xf32>
    %247 = tpu.matmul %245, %246, %cst_78 {dimension_numbers = #tpu.dot_dimension_numbers<[1], [0], [0], [1], [0, 0, 1, 1], [], []>} : vector<16x8xf32>, vector<8x32xf32>, vector<16x32xf32> -> vector<16x32xf32>
    %248 = arith.addf %223, %247 : vector<16x32xf32>
    %249 = vector.extract_strided_slice %197 {offsets = [0, 16], sizes = [16, 8], strides = [1, 1]} : vector<16x96xf32> to vector<16x8xf32>
    %250 = vector.shape_cast %249 : vector<16x8xf32> to vector<2x8x8xf32>
    %251 = vector.extract_strided_slice %197 {offsets = [0, 48], sizes = [16, 8], strides = [1, 1]} : vector<16x96xf32> to vector<16x8xf32>
    %252 = vector.shape_cast %251 : vector<16x8xf32> to vector<2x8x8xf32>
    %253 = vector.extract_strided_slice %197 {offsets = [0, 80], sizes = [16, 8], strides = [1, 1]} : vector<16x96xf32> to vector<16x8xf32>
    %254 = vector.shape_cast %253 : vector<16x8xf32> to vector<2x8x8xf32>
    "tpu.trace_start"() <{level = 10 : i32, message = "bqd,bkd->bqk"}> : () -> ()
    %cst_79 = arith.constant dense<0.000000e+00> : vector<2x8x8xf32>
    %255 = tpu.matmul %250, %252, %cst_79 {dimension_numbers = #tpu.dot_dimension_numbers<[2], [2], [1], [1], [0, 0, 0, 1, 1, 1], [0], [0]>} : vector<2x8x8xf32>, vector<2x8x8xf32>, vector<2x8x8xf32> -> vector<2x8x8xf32>
    "tpu.trace_stop"() : () -> ()
    %cst_80 = arith.constant 0.353553385 : f32
    %256 = vector.broadcast %cst_80 : f32 to vector<2x8x8xf32>
    %257 = arith.mulf %255, %256 : vector<2x8x8xf32>
    %258 = arith.addf %257, %6 : vector<2x8x8xf32>
    %cst_81 = arith.constant dense<0xFF800000> : vector<2x8xf32>
    %259 = vector.multi_reduction <maximumf>, %258, %cst_81 [2] : vector<2x8x8xf32> to vector<2x8xf32>
    %260 = vector.shape_cast %259 : vector<2x8xf32> to vector<2x8x1xf32>
    %261 = vector.broadcast %260 : vector<2x8x1xf32> to vector<2x8x8xf32>
    %262 = arith.subf %258, %261 : vector<2x8x8xf32>
    %263 = math.exp %262 : vector<2x8x8xf32>
    %cst_82 = arith.constant dense<0.000000e+00> : vector<2x8xf32>
    %264 = vector.multi_reduction <add>, %263, %cst_82 [2] : vector<2x8x8xf32> to vector<2x8xf32>
    %265 = vector.shape_cast %264 : vector<2x8xf32> to vector<2x8x1xf32>
    %266 = tpu.reciprocal %265 {approx = true} : vector<2x8x1xf32> -> vector<2x8x1xf32>
    %267 = vector.broadcast %266 : vector<2x8x1xf32> to vector<2x8x8xf32>
    %268 = arith.mulf %263, %267 : vector<2x8x8xf32>
    "tpu.trace_start"() <{level = 10 : i32, message = "bqk,bkd->bqd"}> : () -> ()
    %cst_83 = arith.constant dense<0.000000e+00> : vector<2x8x8xf32>
    %269 = tpu.matmul %268, %254, %cst_83 {dimension_numbers = #tpu.dot_dimension_numbers<[2], [1], [1], [2], [0, 0, 0, 1, 1, 2], [0], [0]>} : vector<2x8x8xf32>, vector<2x8x8xf32>, vector<2x8x8xf32> -> vector<2x8x8xf32>
    "tpu.trace_stop"() : () -> ()
    %270 = vector.shape_cast %269 : vector<2x8x8xf32> to vector<16x8xf32>
    %271 = vector.extract_strided_slice %199 {offsets = [16, 0], sizes = [8, 32], strides = [1, 1]} : vector<32x32xf32> to vector<8x32xf32>
    %cst_84 = arith.constant dense<0.000000e+00> : vector<16x32xf32>
    %272 = tpu.matmul %270, %271, %cst_84 {dimension_numbers = #tpu.dot_dimension_numbers<[1], [0], [0], [1], [0, 0, 1, 1], [], []>} : vector<16x8xf32>, vector<8x32xf32>, vector<16x32xf32> -> vector<16x32xf32>
    %273 = arith.addf %248, %272 : vector<16x32xf32>
    %274 = vector.extract_strided_slice %197 {offsets = [0, 24], sizes = [16, 8], strides = [1, 1]} : vector<16x96xf32> to vector<16x8xf32>
    %275 = vector.shape_cast %274 : vector<16x8xf32> to vector<2x8x8xf32>
    %276 = vector.extract_strided_slice %197 {offsets = [0, 56], sizes = [16, 8], strides = [1, 1]} : vector<16x96xf32> to vector<16x8xf32>
    %277 = vector.shape_cast %276 : vector<16x8xf32> to vector<2x8x8xf32>
    %278 = vector.extract_strided_slice %197 {offsets = [0, 88], sizes = [16, 8], strides = [1, 1]} : vector<16x96xf32> to vector<16x8xf32>
    %279 = vector.shape_cast %278 : vector<16x8xf32> to vector<2x8x8xf32>
    "tpu.trace_start"() <{level = 10 : i32, message = "bqd,bkd->bqk"}> : () -> ()
    %cst_85 = arith.constant dense<0.000000e+00> : vector<2x8x8xf32>
    %280 = tpu.matmul %275, %277, %cst_85 {dimension_numbers = #tpu.dot_dimension_numbers<[2], [2], [1], [1], [0, 0, 0, 1, 1, 1], [0], [0]>} : vector<2x8x8xf32>, vector<2x8x8xf32>, vector<2x8x8xf32> -> vector<2x8x8xf32>
    "tpu.trace_stop"() : () -> ()
    %cst_86 = arith.constant 0.353553385 : f32
    %281 = vector.broadcast %cst_86 : f32 to vector<2x8x8xf32>
    %282 = arith.mulf %280, %281 : vector<2x8x8xf32>
    %283 = arith.addf %282, %6 : vector<2x8x8xf32>
    %cst_87 = arith.constant dense<0xFF800000> : vector<2x8xf32>
    %284 = vector.multi_reduction <maximumf>, %283, %cst_87 [2] : vector<2x8x8xf32> to vector<2x8xf32>
    %285 = vector.shape_cast %284 : vector<2x8xf32> to vector<2x8x1xf32>
    %286 = vector.broadcast %285 : vector<2x8x1xf32> to vector<2x8x8xf32>
    %287 = arith.subf %283, %286 : vector<2x8x8xf32>
    %288 = math.exp %287 : vector<2x8x8xf32>
    %cst_88 = arith.constant dense<0.000000e+00> : vector<2x8xf32>
    %289 = vector.multi_reduction <add>, %288, %cst_88 [2] : vector<2x8x8xf32> to vector<2x8xf32>
    %290 = vector.shape_cast %289 : vector<2x8xf32> to vector<2x8x1xf32>
    %291 = tpu.reciprocal %290 {approx = true} : vector<2x8x1xf32> -> vector<2x8x1xf32>
    %292 = vector.broadcast %291 : vector<2x8x1xf32> to vector<2x8x8xf32>
    %293 = arith.mulf %288, %292 : vector<2x8x8xf32>
    "tpu.trace_start"() <{level = 10 : i32, message = "bqk,bkd->bqd"}> : () -> ()
    %cst_89 = arith.constant dense<0.000000e+00> : vector<2x8x8xf32>
    %294 = tpu.matmul %293, %279, %cst_89 {dimension_numbers = #tpu.dot_dimension_numbers<[2], [1], [1], [2], [0, 0, 0, 1, 1, 2], [0], [0]>} : vector<2x8x8xf32>, vector<2x8x8xf32>, vector<2x8x8xf32> -> vector<2x8x8xf32>
    "tpu.trace_stop"() : () -> ()
    %295 = vector.shape_cast %294 : vector<2x8x8xf32> to vector<16x8xf32>
    %296 = vector.extract_strided_slice %199 {offsets = [24, 0], sizes = [8, 32], strides = [1, 1]} : vector<32x32xf32> to vector<8x32xf32>
    %cst_90 = arith.constant dense<0.000000e+00> : vector<16x32xf32>
    %297 = tpu.matmul %295, %296, %cst_90 {dimension_numbers = #tpu.dot_dimension_numbers<[1], [0], [0], [1], [0, 0, 1, 1], [], []>} : vector<16x8xf32>, vector<8x32xf32>, vector<16x32xf32> -> vector<16x32xf32>
    %298 = arith.addf %273, %297 : vector<16x32xf32>
    %299 = vector.broadcast %186 : vector<1x32xf32> to vector<16x32xf32>
    %300 = arith.addf %298, %299 : vector<16x32xf32>
    %301 = arith.addf %182, %300 : vector<16x32xf32>
    %cst_91 = arith.constant dense<0.000000e+00> : vector<16xf32>
    %302 = vector.multi_reduction <add>, %301, %cst_91 [1] : vector<16x32xf32> to vector<16xf32>
    %303 = vector.shape_cast %302 : vector<16xf32> to vector<16x1xf32>
    %cst_92 = arith.constant 3.200000e+01 : f32
    %304 = vector.broadcast %cst_92 : f32 to vector<16x1xf32>
    %305 = arith.divf %303, %304 : vector<16x1xf32>
    %306 = vector.broadcast %305 : vector<16x1xf32> to vector<16x32xf32>
    %307 = arith.subf %301, %306 : vector<16x32xf32>
    %308 = arith.mulf %307, %307 : vector<16x32xf32>
    %cst_93 = arith.constant dense<0.000000e+00> : vector<16xf32>
    %309 = vector.multi_reduction <add>, %308, %cst_93 [1] : vector<16x32xf32> to vector<16xf32>
    %310 = vector.shape_cast %309 : vector<16xf32> to vector<16x1xf32>
    %cst_94 = arith.constant 3.200000e+01 : f32
    %311 = vector.broadcast %cst_94 : f32 to vector<16x1xf32>
    %312 = arith.divf %310, %311 : vector<16x1xf32>
    %313 = vector.broadcast %305 : vector<16x1xf32> to vector<16x32xf32>
    %314 = arith.subf %301, %313 : vector<16x32xf32>
    %cst_95 = arith.constant 9.99999974E-6 : f32
    %315 = vector.broadcast %cst_95 : f32 to vector<16x1xf32>
    %316 = arith.addf %312, %315 : vector<16x1xf32>
    %317 = math.rsqrt %316 : vector<16x1xf32>
    %318 = vector.broadcast %317 : vector<16x1xf32> to vector<16x32xf32>
    %319 = arith.mulf %314, %318 : vector<16x32xf32>
    %320 = vector.broadcast %189 : vector<1x32xf32> to vector<16x32xf32>
    %321 = arith.mulf %319, %320 : vector<16x32xf32>
    %322 = vector.broadcast %190 : vector<1x32xf32> to vector<16x32xf32>
    %323 = arith.addf %321, %322 : vector<16x32xf32>
    %c1_96 = arith.constant 1 : index
    %c0_97 = arith.constant 0 : index
    %c0_98 = arith.constant 0 : index
    %324 = vector.load %arg5[%c1_96, %c0_97, %c0_98] : memref<2x32x64xf32, #tpu.memory_space<vmem>>, vector<1x32x64xf32>
    %325 = vector.shape_cast %324 : vector<1x32x64xf32> to vector<32x64xf32>
    %cst_99 = arith.constant dense<0.000000e+00> : vector<16x64xf32>
    %326 = tpu.matmul %323, %325, %cst_99 {dimension_numbers = #tpu.dot_dimension_numbers<[1], [0], [0], [1], [0, 0, 1, 1], [], []>} : vector<16x32xf32>, vector<32x64xf32>, vector<16x64xf32> -> vector<16x64xf32>
    %327 = vector.broadcast %187 : vector<1x64xf32> to vector<16x64xf32>
    %328 = arith.addf %326, %327 : vector<16x64xf32>
    %cst_100 = arith.constant 0.000000e+00 : f32
    %329 = vector.broadcast %cst_100 : f32 to vector<16x64xf32>
    %330 = arith.maximumf %328, %329 : vector<16x64xf32>
    %c1_101 = arith.constant 1 : index
    %c0_102 = arith.constant 0 : index
    %c0_103 = arith.constant 0 : index
    %331 = vector.load %arg6[%c1_101, %c0_102, %c0_103] : memref<2x64x32xf32, #tpu.memory_space<vmem>>, vector<1x64x32xf32>
    %332 = vector.shape_cast %331 : vector<1x64x32xf32> to vector<64x32xf32>
    %cst_104 = arith.constant dense<0.000000e+00> : vector<16x32xf32>
    %333 = tpu.matmul %330, %332, %cst_104 {dimension_numbers = #tpu.dot_dimension_numbers<[1], [0], [0], [1], [0, 0, 1, 1], [], []>} : vector<16x64xf32>, vector<64x32xf32>, vector<16x32xf32> -> vector<16x32xf32>
    %334 = vector.broadcast %188 : vector<1x32xf32> to vector<16x32xf32>
    %335 = arith.addf %333, %334 : vector<16x32xf32>
    %336 = arith.addf %323, %335 : vector<16x32xf32>
    %cst_105 = arith.constant dense<0.000000e+00> : vector<16xf32>
    %337 = vector.multi_reduction <add>, %336, %cst_105 [1] : vector<16x32xf32> to vector<16xf32>
    %338 = vector.shape_cast %337 : vector<16xf32> to vector<16x1xf32>
    %cst_106 = arith.constant 3.200000e+01 : f32
    %339 = vector.broadcast %cst_106 : f32 to vector<16x1xf32>
    %340 = arith.divf %338, %339 : vector<16x1xf32>
    %341 = vector.broadcast %340 : vector<16x1xf32> to vector<16x32xf32>
    %342 = arith.subf %336, %341 : vector<16x32xf32>
    %343 = arith.mulf %342, %342 : vector<16x32xf32>
    %cst_107 = arith.constant dense<0.000000e+00> : vector<16xf32>
    %344 = vector.multi_reduction <add>, %343, %cst_107 [1] : vector<16x32xf32> to vector<16xf32>
    %345 = vector.shape_cast %344 : vector<16xf32> to vector<16x1xf32>
    %cst_108 = arith.constant 3.200000e+01 : f32
    %346 = vector.broadcast %cst_108 : f32 to vector<16x1xf32>
    %347 = arith.divf %345, %346 : vector<16x1xf32>
    %348 = vector.broadcast %340 : vector<16x1xf32> to vector<16x32xf32>
    %349 = arith.subf %336, %348 : vector<16x32xf32>
    %cst_109 = arith.constant 9.99999974E-6 : f32
    %350 = vector.broadcast %cst_109 : f32 to vector<16x1xf32>
    %351 = arith.addf %347, %350 : vector<16x1xf32>
    %352 = math.rsqrt %351 : vector<16x1xf32>
    %353 = vector.broadcast %352 : vector<16x1xf32> to vector<16x32xf32>
    %354 = arith.mulf %349, %353 : vector<16x32xf32>
    %355 = vector.broadcast %191 : vector<1x32xf32> to vector<16x32xf32>
    %356 = arith.mulf %354, %355 : vector<16x32xf32>
    %357 = vector.broadcast %192 : vector<1x32xf32> to vector<16x32xf32>
    %358 = arith.addf %356, %357 : vector<16x32xf32>
    %c0_110 = arith.constant 0 : index
    %c0_111 = arith.constant 0 : index
    %359 = vector.load %arg8[%c0_110, %c0_111] : memref<32x128xf32, #tpu.memory_space<vmem>>, vector<32x128xf32>
    %cst_112 = arith.constant dense<0.000000e+00> : vector<16x128xf32>
    %360 = tpu.matmul %358, %359, %cst_112 {dimension_numbers = #tpu.dot_dimension_numbers<[1], [0], [0], [1], [0, 0, 1, 1], [], []>} : vector<16x32xf32>, vector<32x128xf32>, vector<16x128xf32> -> vector<16x128xf32>
    %c0_113 = arith.constant 0 : index
    %c0_114 = arith.constant 0 : index
    %361 = vector.load %arg9[%c0_113, %c0_114] : memref<1x128xf32, #tpu.memory_space<vmem>>, vector<1x128xf32>
    %362 = vector.broadcast %361 : vector<1x128xf32> to vector<16x128xf32>
    %363 = arith.addf %360, %362 : vector<16x128xf32>
    %364 = vector.shape_cast %363 : vector<16x128xf32> to vector<2x8x128xf32>
    %c0_115 = arith.constant 0 : index
    %c0_116 = arith.constant 0 : index
    %c0_117 = arith.constant 0 : index
    %365 = vector.load %arg10[%c0_115, %c0_116, %c0_117] : memref<2x8x128xf32, #tpu.memory_space<vmem>>, vector<2x8x128xf32>
    tpu.vector_store %arg10[%c0_115, %c0_116, %c0_117], %364 {strides = array<i32>} : memref<2x8x128xf32, #tpu.memory_space<vmem>>, vector<2x8x128xf32>,
    return
  }
  func.func @transform_0(%arg0: i32) -> (i32, i32, i32) {
    %c0_i32 = arith.constant 0 : i32
    %c0_i32_0 = arith.constant 0 : i32
    %c0_i32_1 = arith.constant 0 : i32
    return %arg0, %c0_i32, %c0_i32_0 : i32, i32, i32
  }
  func.func @transform_1(%arg0: i32) -> (i32, i32, i32) {
    %c0_i32 = arith.constant 0 : i32
    %c0_i32_0 = arith.constant 0 : i32
    %c0_i32_1 = arith.constant 0 : i32
    return %arg0, %c0_i32, %c0_i32_0 : i32, i32, i32
  }
  func.func @transform_2(%arg0: i32) -> (i32, i32, i32) {
    %c0_i32 = arith.constant 0 : i32
    %c0_i32_0 = arith.constant 0 : i32
    %c0_i32_1 = arith.constant 0 : i32
    %c0_i32_2 = arith.constant 0 : i32
    return %c0_i32, %c0_i32_0, %c0_i32_1 : i32, i32, i32
  }
  func.func @transform_3(%arg0: i32) -> (i32, i32, i32) {
    %c0_i32 = arith.constant 0 : i32
    %c0_i32_0 = arith.constant 0 : i32
    %c0_i32_1 = arith.constant 0 : i32
    %c0_i32_2 = arith.constant 0 : i32
    return %c0_i32, %c0_i32_0, %c0_i32_1 : i32, i32, i32
  }
  func.func @transform_4(%arg0: i32) -> (i32, i32, i32) {
    %c0_i32 = arith.constant 0 : i32
    %c0_i32_0 = arith.constant 0 : i32
    %c0_i32_1 = arith.constant 0 : i32
    %c0_i32_2 = arith.constant 0 : i32
    return %c0_i32, %c0_i32_0, %c0_i32_1 : i32, i32, i32
  }
  func.func @transform_5(%arg0: i32) -> (i32, i32, i32) {
    %c0_i32 = arith.constant 0 : i32
    %c0_i32_0 = arith.constant 0 : i32
    %c0_i32_1 = arith.constant 0 : i32
    %c0_i32_2 = arith.constant 0 : i32
    return %c0_i32, %c0_i32_0, %c0_i32_1 : i32, i32, i32
  }
  func.func @transform_6(%arg0: i32) -> (i32, i32, i32) {
    %c0_i32 = arith.constant 0 : i32
    %c0_i32_0 = arith.constant 0 : i32
    %c0_i32_1 = arith.constant 0 : i32
    %c0_i32_2 = arith.constant 0 : i32
    return %c0_i32, %c0_i32_0, %c0_i32_1 : i32, i32, i32
  }
  func.func @transform_7(%arg0: i32) -> (i32, i32) {
    %c0_i32 = arith.constant 0 : i32
    %c0_i32_0 = arith.constant 0 : i32
    %c0_i32_1 = arith.constant 0 : i32
    return %c0_i32, %c0_i32_0 : i32, i32
  }
  func.func @transform_8(%arg0: i32) -> (i32, i32) {
    %c0_i32 = arith.constant 0 : i32
    %c0_i32_0 = arith.constant 0 : i32
    %c0_i32_1 = arith.constant 0 : i32
    return %c0_i32, %c0_i32_0 : i32, i32
  }
  func.func @transform_9(%arg0: i32) -> (i32, i32, i32) {
    %c0_i32 = arith.constant 0 : i32
    %c0_i32_0 = arith.constant 0 : i32
    %c0_i32_1 = arith.constant 0 : i32
    return %arg0, %c0_i32, %c0_i32_0 : i32, i32, i32
  }
}

</mosaic_0001>

<llo_original>
// kernel: tpu_custom_call.1
$region0: #{tpu_custom_call.1}
  #allocation0 [shape = 'u32[]', space=smem, size = 0x4, offset = 0x4, fixed_abs, tag = 'smem constant byte address 0x4 - core index']
  #allocation1 [shape = 'u32[144,128]{1,0:T(1,128)}', space=vmem, size = 0x12000, scoped, tag = 'internal scratch']
  %s0 = inlined_call_operand.hbm [shape: f32[2,8,32], index: 0, kind: input, shape index: {}]
  %s1 = inlined_call_operand.vmem [shape: f32[2,1,8], index: 1, kind: input, shape index: {}]
  %s2 = inlined_call_operand.vmem [shape: f32[2,32,96], index: 2, kind: input, shape index: {}]
  %s3 = inlined_call_operand.vmem [shape: f32[2,32,32], index: 3, kind: input, shape index: {}]
  %s4 = inlined_call_operand.vmem [shape: f32[2,32,64], index: 4, kind: input, shape index: {}]
  %s5 = inlined_call_operand.vmem [shape: f32[2,64,32], index: 5, kind: input, shape index: {}]
  %s6 = inlined_call_operand.vmem [shape: f32[2,8,128], index: 6, kind: input, shape index: {}]
  %s7 = inlined_call_operand.hbm [shape: f32[32,128], index: 7, kind: input, shape index: {}]
  %s8 = inlined_call_operand.vmem [shape: f32[1,128], index: 8, kind: input, shape index: {}]
  %s9 = inlined_call_operand.hbm [shape: f32[2,8,128], index: 9, kind: output, shape index: {}]
  %s10 = sld [smem:[#allocation0]]
  $region54: #{tpu_custom_call.1} parent=0
    _
  %s12 = ssub.s32 1, %s10
  %s13 = scalar_select 0, %s12, %s10
  $region1: #{tpu_custom_call.1} parent=0
    #allocation2 [shape = 'u8[8192]{0}', space=vmem, size = 0x2000, scoped, tag = 'input window, operand 0, single buffered']
    #allocation3 [shape = 's32[1]{0}', space=sflag, size = 0x4, scoped, tag = 'scoped memory for tpu_custom_call.1']
    #allocation4 [shape = 's32[1]{0}', space=sflag, size = 0x4, scoped, tag = 'scoped memory for tpu_custom_call.1']
    #allocation5 [shape = 'u8[16384]{0}', space=vmem, size = 0x4000, scoped, tag = 'input window, operand 7, single buffered']
    #allocation6 [shape = 's32[1]{0}', space=sflag, size = 0x4, scoped, tag = 'scoped memory for tpu_custom_call.1']
    #allocation7 [shape = 'u8[8192]{0}', space=vmem, size = 0x2000, scoped, tag = 'output window, operand 0, single buffered']
    %14 = vsyncpa [#allocation3], 0
    %15 = vsyncpa [#allocation6], 0
    %16 = vsyncpa [#allocation4], 0
    // Predicated region
    $region2: #{tpu_custom_call.1} parent=1 // pred_check
      _
    $region3: #{tpu_custom_call.1} parent=1 // pred_check_branch
      %18 = sbr.rel (0) target = $region5
    $region4: #{tpu_custom_call.1} parent=1 // pred_region
      %s20 = ssub.s32 256, 256
      %21 = vsyncadd [#allocation3], %s20
      %s22 = sshll.u32 [#allocation2], 4
      %s23 = int_to_ptr.vmem [resolvable:$true] %s22
      %28 = dma.hbm_to_vmem [thread:$0]  %s0, 256, %s23, [#allocation3], 128, 128, 8
    $region5: #{tpu_custom_call.1} parent=1 // pred_fallthru
      _
    // Predicated region
    $region6: #{tpu_custom_call.1} parent=1 // pred_check
      _
    $region7: #{tpu_custom_call.1} parent=1 // pred_check_branch
      %30 = sbr.rel (0) target = $region9
    $region8: #{tpu_custom_call.1} parent=1 // pred_region
      _
    $region9: #{tpu_custom_call.1} parent=1 // pred_fallthru
      _
    // Predicated region
    $region10: #{tpu_custom_call.1} parent=1 // pred_check
      _
    $region11: #{tpu_custom_call.1} parent=1 // pred_check_branch
      %32 = sbr.rel (0) target = $region13
    $region12: #{tpu_custom_call.1} parent=1 // pred_region
      _
    $region13: #{tpu_custom_call.1} parent=1 // pred_fallthru
      _
    // Predicated region
    $region14: #{tpu_custom_call.1} parent=1 // pred_check
      _
    $region15: #{tpu_custom_call.1} parent=1 // pred_check_branch
      %34 = sbr.rel (0) target = $region17
    $region16: #{tpu_custom_call.1} parent=1 // pred_region
      _
    $region17: #{tpu_custom_call.1} parent=1 // pred_fallthru
      _
    // Predicated region
    $region18: #{tpu_custom_call.1} parent=1 // pred_check
      _
    $region19: #{tpu_custom_call.1} parent=1 // pred_check_branch
      %36 = sbr.rel (0) target = $region21
    $region20: #{tpu_custom_call.1} parent=1 // pred_region
      _
    $region21: #{tpu_custom_call.1} parent=1 // pred_fallthru
      _
    // Predicated region
    $region22: #{tpu_custom_call.1} parent=1 // pred_check
      _
    $region23: #{tpu_custom_call.1} parent=1 // pred_check_branch
      %38 = sbr.rel (0) target = $region25
    $region24: #{tpu_custom_call.1} parent=1 // pred_region
      _
    $region25: #{tpu_custom_call.1} parent=1 // pred_fallthru
      _
    // Predicated region
    $region26: #{tpu_custom_call.1} parent=1 // pred_check
      _
    $region27: #{tpu_custom_call.1} parent=1 // pred_check_branch
      %40 = sbr.rel (0) target = $region29
    $region28: #{tpu_custom_call.1} parent=1 // pred_region
      _
    $region29: #{tpu_custom_call.1} parent=1 // pred_fallthru
      _
    // Predicated region
    $region30: #{tpu_custom_call.1} parent=1 // pred_check
      _
    $region31: #{tpu_custom_call.1} parent=1 // pred_check_branch
      %42 = sbr.rel (0) target = $region33
    $region32: #{tpu_custom_call.1} parent=1 // pred_region
      %s44 = ssub.s32 512, 512
      %45 = vsyncadd [#allocation6], %s44
      %s46 = sshll.u32 [#allocation5], 4
      %s47 = int_to_ptr.vmem [resolvable:$true] %s46
      %52 = dma.hbm_to_vmem [thread:$0]  %s7, 512, %s47, [#allocation6], 128, 128, 8
    $region33: #{tpu_custom_call.1} parent=1 // pred_fallthru
      _
    // Predicated region
    $region34: #{tpu_custom_call.1} parent=1 // pred_check
      _
    $region35: #{tpu_custom_call.1} parent=1 // pred_check_branch
      %54 = sbr.rel (0) target = $region37
    $region36: #{tpu_custom_call.1} parent=1 // pred_region
      _
    $region37: #{tpu_custom_call.1} parent=1 // pred_fallthru
      _
    // Predicated region
    $region38: #{tpu_custom_call.1} parent=1 // pred_check
      _
    $region39: #{tpu_custom_call.1} parent=1 // pred_check_branch
      %56 = sbr.rel (0) target = $region41
    $region40: #{tpu_custom_call.1} parent=1 // pred_region
      %57 = dma.done [#allocation3], 256
    $region41: #{tpu_custom_call.1} parent=1 // pred_fallthru
      _
    // Predicated region
    $region42: #{tpu_custom_call.1} parent=1 // pred_check
      _
    $region43: #{tpu_custom_call.1} parent=1 // pred_check_branch
      %59 = sbr.rel (0) target = $region45
    $region44: #{tpu_custom_call.1} parent=1 // pred_region
      %60 = dma.done [#allocation6], 512
    $region45: #{tpu_custom_call.1} parent=1 // pred_fallthru
      _
    %v61 = vld [vmem:[#allocation2] sm:$0xff]
    %v62 = vld [vmem:[#allocation2 + $0x8] sm:$0xff]
    %v63 = vmul.f32 %v61, 5.656854
    %v64 = vmul.f32 %v62, 5.656854
    %v65 = vld [vmem:[%s1] sm:$0x1]
    %v66 = vld [vmem:[%s1 + $0x1] sm:$0x1]
    %v69 = vlaneseq
    %v70 = vshrl.u32 %v69, 7
    %v71 = vsub.s32 0, %v70
    %v72 = vrot.slane %v65, %v71
    %v73 = vlaneseq
    %v74 = vshrl.u32 %v73, 7
    %v75 = vsub.s32 0, %v74
    %v76 = vrot.slane %v66, %v75
    %v79 = vld [vmem:[%s6] sm:$0xff]
    %v80 = vld [vmem:[%s2] sm:$0xff]
    %v81 = vld [vmem:[%s2 + $0x8] sm:$0xff]
    %v82 = vld [vmem:[%s2 + $0x10] sm:$0xff]
    %v83 = vld [vmem:[%s2 + $0x18] sm:$0xff]
    %v84 = vlaneseq
    %v85 = vshrl.u32 %v84, 7
    %v86 = vsub.s32 0, %v85
    %v87 = vrot.slane %v79, %v86
    %vm88 = vcmask 261120
    %v90 = vsel %vm88, %v63, 0
    %v93 = vsel %vm88, %v64, 0
    %95 = vmatprep.subr.mxu0 0.0
    %96 = vmatpush1.msra.mxu0 %v80
    %97 = vmatprep.subr.mxu0 0.0
    %98 = vmatpush1.msra.mxu0 %v81
    %99 = vmatprep.subr.mxu0 0.0
    %100 = vmatpush1.msra.mxu0 %v82
    %101 = vmatprep.subr.mxu0 0.0
    %102 = vmatpush1.msra.mxu0 %v83
    %103 = vmatprep.subr.mxu0 0.0
    %104 = vmatpush1.msra.mxu0 0.0
    %105 = vmatprep.subr.mxu0 0.0
    %106 = vmatpush1.msra.mxu0 0.0
    %107 = vmatprep.subr.mxu0 0.0
    %108 = vmatpush1.msra.mxu0 0.0
    %109 = vmatprep.subr.mxu0 0.0
    %110 = vmatpush1.msra.mxu0 0.0
    %111 = vmatprep.subr.mxu0 0.0
    %112 = vmatpush1.msra.mxu0 0.0
    %113 = vmatprep.subr.mxu0 0.0
    %114 = vmatpush1.msra.mxu0 0.0
    %115 = vmatprep.subr.mxu0 0.0
    %116 = vmatpush1.msra.mxu0 0.0
    %117 = vmatprep.subr.mxu0 0.0
    %118 = vmatpush1.msra.mxu0 0.0
    %119 = vmatprep.subr.mxu0 0.0
    %120 = vmatpush1.msra.mxu0 0.0
    %121 = vmatprep.subr.mxu0 0.0
    %122 = vmatpush1.msra.mxu0 0.0
    %123 = vmatprep.subr.mxu0 0.0
    %124 = vmatpush1.msra.mxu0 0.0
    %125 = vmatprep.subr.mxu0 0.0
    %126 = vmatpush1.msra.mxu0 0.0
    %127 = vmatprep.subr.mxu0 0.0
    %128 = vmatpush1.msra.mxu0 0.0
    %129 = vmatprep.subr.mxu0 0.0
    %130 = vmatpush1.msra.mxu0 0.0
    %131 = vmatprep.subr.mxu0 0.0
    %132 = vmatpush1.msra.mxu0 0.0
    %133 = vmatprep.subr.mxu0 0.0
    %134 = vmatpush1.msra.mxu0 0.0
    %135 = vmatprep.subr.mxu0 0.0
    %136 = vmatpush1.msra.mxu0 0.0
    %137 = vmatprep.subr.mxu0 0.0
    %138 = vmatpush1.msra.mxu0 0.0
    %139 = vmatprep.subr.mxu0 0.0
    %140 = vmatpush1.msra.mxu0 0.0
    %141 = vmatprep.subr.mxu0 0.0
    %142 = vmatpush1.msra.mxu0 0.0
    %143 = vmatprep.subr.mxu0 0.0
    %144 = vmatpush1.msra.mxu0 0.0
    %145 = vmatprep.subr.mxu0 0.0
    %146 = vmatpush1.msra.mxu0 0.0
    %147 = vmatprep.subr.mxu0 0.0
    %148 = vmatpush1.msra.mxu0 0.0
    %149 = vmatprep.subr.mxu0 0.0
    %150 = vmatpush1.msra.mxu0 0.0
    %151 = vmatprep.subr.mxu0 0.0
    %152 = vmatpush1.msra.mxu0 0.0
    %153 = vmatprep.subr.mxu0 0.0
    %154 = vmatpush1.msra.mxu0 0.0
    %155 = vmatprep.subr.mxu0 0.0
    %156 = vmatpush1.msra.mxu0 0.0
    %157 = vmatprep.subr.mxu0 0.0
    %158 = vmatpush1.msra.mxu0 0.0
    %159 = vmatprep.mubr.f32.mxu0 0.0
    %160 = vmatmul.mubr.f32.gmra.mrb[0].mxu0 %v90
    %v161 = vpop.f32.mrb[0].mxu0
    %v162 = vadd.f32 %v87, %v161
    %v163 = vpop.f32.mrb[0].mxu0
    %164 = vmatprep.mubr.f32.mxu0 0.0
    %165 = vmatmul.mubr.f32.gmra.mrb[0].mxu0 %v93
    %v166 = vpop.f32.mrb[0].mxu0
    %v167 = vadd.f32 %v87, %v166
    %v168 = vpop.f32.mrb[0].mxu0
    %169 = vdwg.mxu0
    %v170 = vld [vmem:[%s3] sm:$0xff]
    %v171 = vld [vmem:[%s3 + $0x8] sm:$0xff]
    %v172 = vld [vmem:[%s3 + $0x10] sm:$0xff]
    %v173 = vld [vmem:[%s3 + $0x18] sm:$0xff]
    %175 = vrot.lane.b32.xlu0 %v162, 96
    %v176 = vpop.permute.xlu0 %175
    %vm177 = vcmask 64512
    %v178 = vsel %vm177, %v162, 0
    %v180 = vsel %vm177, %v176, 0
    %182 = vmatprep.subr.mxu0 0.0
    %183 = vmatpush1.xpose.msra.mxu0 %v180
    %184 = vmatprep.subr.mxu0 0.0
    %185 = vmatpush1.xpose.msra.mxu0 0.0
    %186 = vmatprep.subr.mxu0 0.0
    %187 = vmatpush1.xpose.msra.mxu0 0.0
    %188 = vmatprep.subr.mxu0 0.0
    %189 = vmatpush1.xpose.msra.mxu0 0.0
    %190 = vmatprep.subr.mxu0 0.0
    %191 = vmatpush1.xpose.msra.mxu0 0.0
    %192 = vmatprep.subr.mxu0 0.0
    %193 = vmatpush1.xpose.msra.mxu0 0.0
    %194 = vmatprep.subr.mxu0 0.0
    %195 = vmatpush1.xpose.msra.mxu0 0.0
    %196 = vmatprep.subr.mxu0 0.0
    %197 = vmatpush1.xpose.msra.mxu0 0.0
    %198 = vmatprep.subr.mxu0 0.0
    %199 = vmatpush1.xpose.msra.mxu0 0.0
    %200 = vmatprep.subr.mxu0 0.0
    %201 = vmatpush1.xpose.msra.mxu0 0.0
    %202 = vmatprep.subr.mxu0 0.0
    %203 = vmatpush1.xpose.msra.mxu0 0.0
    %204 = vmatprep.subr.mxu0 0.0
    %205 = vmatpush1.xpose.msra.mxu0 0.0
    %206 = vmatprep.subr.mxu0 0.0
    %207 = vmatpush1.xpose.msra.mxu0 0.0
    %208 = vmatprep.subr.mxu0 0.0
    %209 = vmatpush1.xpose.msra.mxu0 0.0
    %210 = vmatprep.subr.mxu0 0.0
    %211 = vmatpush1.xpose.msra.mxu0 0.0
    %212 = vmatprep.subr.mxu0 0.0
    %213 = vmatpush1.xpose.msra.mxu0 0.0
    %214 = vmatprep.subr.mxu0 0.0
    %215 = vmatpush1.xpose.msra.mxu0 0.0
    %216 = vmatprep.subr.mxu0 0.0
    %217 = vmatpush1.xpose.msra.mxu0 0.0
    %218 = vmatprep.subr.mxu0 0.0
    %219 = vmatpush1.xpose.msra.mxu0 0.0
    %220 = vmatprep.subr.mxu0 0.0
    %221 = vmatpush1.xpose.msra.mxu0 0.0
    %222 = vmatprep.subr.mxu0 0.0
    %223 = vmatpush1.xpose.msra.mxu0 0.0
    %224 = vmatprep.subr.mxu0 0.0
    %225 = vmatpush1.xpose.msra.mxu0 0.0
    %226 = vmatprep.subr.mxu0 0.0
    %227 = vmatpush1.xpose.msra.mxu0 0.0
    %228 = vmatprep.subr.mxu0 0.0
    %229 = vmatpush1.xpose.msra.mxu0 0.0
    %230 = vmatprep.subr.mxu0 0.0
    %231 = vmatpush1.xpose.msra.mxu0 0.0
    %232 = vmatprep.subr.mxu0 0.0
    %233 = vmatpush1.xpose.msra.mxu0 0.0
    %234 = vmatprep.subr.mxu0 0.0
    %235 = vmatpush1.xpose.msra.mxu0 0.0
    %236 = vmatprep.subr.mxu0 0.0
    %237 = vmatpush1.xpose.msra.mxu0 0.0
    %238 = vmatprep.subr.mxu0 0.0
    %239 = vmatpush1.xpose.msra.mxu0 0.0
    %240 = vmatprep.subr.mxu0 0.0
    %241 = vmatpush1.xpose.msra.mxu0 0.0
    %242 = vmatprep.subr.mxu0 0.0
    %243 = vmatpush1.xpose.msra.mxu0 0.0
    %244 = vmatprep.subr.mxu0 0.0
    %245 = vmatpush1.xpose.msra.mxu0 0.0
    %246 = vmatprep.mubr.f32.mxu0 0.0
    %247 = vmatmul.mubr.f32.gmra.mrb[0].mxu0 %v178
    %v248 = vpop.f32.mrb[0].mxu0
    %v249 = vadd.f32 0.0, %v248
    %v250 = vpop.f32.mrb[0].mxu0
    %251 = vdwg.mxu0
    %253 = vrot.lane.b32.xlu0 %v167, 96
    %v254 = vpop.permute.xlu0 %253
    %v255 = vsel %vm177, %v167, 0
    %v257 = vsel %vm177, %v254, 0
    %259 = vmatprep.subr.mxu0 0.0
    %260 = vmatpush1.xpose.msra.mxu0 %v257
    %261 = vmatprep.subr.mxu0 0.0
    %262 = vmatpush1.xpose.msra.mxu0 0.0
    %263 = vmatprep.subr.mxu0 0.0
    %264 = vmatpush1.xpose.msra.mxu0 0.0
    %265 = vmatprep.subr.mxu0 0.0
    %266 = vmatpush1.xpose.msra.mxu0 0.0
    %267 = vmatprep.subr.mxu0 0.0
    %268 = vmatpush1.xpose.msra.mxu0 0.0
    %269 = vmatprep.subr.mxu0 0.0
    %270 = vmatpush1.xpose.msra.mxu0 0.0
    %271 = vmatprep.subr.mxu0 0.0
    %272 = vmatpush1.xpose.msra.mxu0 0.0
    %273 = vmatprep.subr.mxu0 0.0
    %274 = vmatpush1.xpose.msra.mxu0 0.0
    %275 = vmatprep.subr.mxu0 0.0
    %276 = vmatpush1.xpose.msra.mxu0 0.0
    %277 = vmatprep.subr.mxu0 0.0
    %278 = vmatpush1.xpose.msra.mxu0 0.0
    %279 = vmatprep.subr.mxu0 0.0
    %280 = vmatpush1.xpose.msra.mxu0 0.0
    %281 = vmatprep.subr.mxu0 0.0
    %282 = vmatpush1.xpose.msra.mxu0 0.0
    %283 = vmatprep.subr.mxu0 0.0
    %284 = vmatpush1.xpose.msra.mxu0 0.0
    %285 = vmatprep.subr.mxu0 0.0
    %286 = vmatpush1.xpose.msra.mxu0 0.0
    %287 = vmatprep.subr.mxu0 0.0
    %288 = vmatpush1.xpose.msra.mxu0 0.0
    %289 = vmatprep.subr.mxu0 0.0
    %290 = vmatpush1.xpose.msra.mxu0 0.0
    %291 = vmatprep.subr.mxu0 0.0
    %292 = vmatpush1.xpose.msra.mxu0 0.0
    %293 = vmatprep.subr.mxu0 0.0
    %294 = vmatpush1.xpose.msra.mxu0 0.0
    %295 = vmatprep.subr.mxu0 0.0
    %296 = vmatpush1.xpose.msra.mxu0 0.0
    %297 = vmatprep.subr.mxu0 0.0
    %298 = vmatpush1.xpose.msra.mxu0 0.0
    %299 = vmatprep.subr.mxu0 0.0
    %300 = vmatpush1.xpose.msra.mxu0 0.0
    %301 = vmatprep.subr.mxu0 0.0
    %302 = vmatpush1.xpose.msra.mxu0 0.0
    %303 = vmatprep.subr.mxu0 0.0
    %304 = vmatpush1.xpose.msra.mxu0 0.0
    %305 = vmatprep.subr.mxu0 0.0
    %306 = vmatpush1.xpose.msra.mxu0 0.0
    %307 = vmatprep.subr.mxu0 0.0
    %308 = vmatpush1.xpose.msra.mxu0 0.0
    %309 = vmatprep.subr.mxu0 0.0
    %310 = vmatpush1.xpose.msra.mxu0 0.0
    %311 = vmatprep.subr.mxu0 0.0
    %312 = vmatpush1.xpose.msra.mxu0 0.0
    %313 = vmatprep.subr.mxu0 0.0
    %314 = vmatpush1.xpose.msra.mxu0 0.0
    %315 = vmatprep.subr.mxu0 0.0
    %316 = vmatpush1.xpose.msra.mxu0 0.0
    %317 = vmatprep.subr.mxu0 0.0
    %318 = vmatpush1.xpose.msra.mxu0 0.0
    %319 = vmatprep.subr.mxu0 0.0
    %320 = vmatpush1.xpose.msra.mxu0 0.0
    %321 = vmatprep.subr.mxu0 0.0
    %322 = vmatpush1.xpose.msra.mxu0 0.0
    %323 = vmatprep.mubr.f32.mxu0 0.0
    %324 = vmatmul.mubr.f32.gmra.mrb[0].mxu0 %v255
    %v325 = vpop.f32.mrb[0].mxu0
    %v326 = vadd.f32 0.0, %v325
    %v327 = vpop.f32.mrb[0].mxu0
    %328 = vdwg.mxu0
    %v329 = vmul.f32 %v249, 0.35355338
    %v330 = vmul.f32 %v326, 0.35355338
    %v331 = vadd.f32 %v329, %v72
    %v332 = vadd.f32 %v330, %v76
    %v333 = vsel %vm177, %v331, -inf
    %334 = vmax.xlane.f32.xlu0 %v333
    %v335 = vpop.xlane.xlu0 %334
    %v336 = vsel %vm177, %v332, -inf
    %337 = vmax.xlane.f32.xlu0 %v336
    %v338 = vpop.xlane.xlu0 %337
    %v339 = vsub.f32 %v331, %v335
    %v340 = vsub.f32 %v332, %v338
    %v341 = vmul.f32 %v339, 1.442695
    %v342 = vpow.pop %v341
    %v343 = vmul.f32 %v340, 1.442695
    %v344 = vpow.pop %v343
    %v345 = vsel %vm177, %v342, 0.0
    %346 = vadd.xlane.f32.xlu0 %v345
    %v347 = vpop.xlane.xlu0 %346
    %v348 = vsel %vm177, %v344, 0.0
    %349 = vadd.xlane.f32.xlu0 %v348
    %v350 = vpop.xlane.xlu0 %349
    %v351 = vrcp.pop %v347
    %v352 = vrcp.pop %v350
    %v353 = vmul.f32 %v342, %v351
    %v354 = vmul.f32 %v344, %v352
    %355 = vrot.lane.b32.xlu0 %v162, 64
    %v356 = vpop.permute.xlu0 %355
    %v359 = vsel %vm177, %v353, 0
    %361 = vmatprep.subr.mxu0 0.0
    %362 = vmatpush1.msra.mxu0 %v356
    %363 = vmatprep.subr.mxu0 0.0
    %364 = vmatpush1.msra.mxu0 0.0
    %365 = vmatprep.subr.mxu0 0.0
    %366 = vmatpush1.msra.mxu0 0.0
    %367 = vmatprep.subr.mxu0 0.0
    %368 = vmatpush1.msra.mxu0 0.0
    %369 = vmatprep.subr.mxu0 0.0
    %370 = vmatpush1.msra.mxu0 0.0
    %371 = vmatprep.subr.mxu0 0.0
    %372 = vmatpush1.msra.mxu0 0.0
    %373 = vmatprep.subr.mxu0 0.0
    %374 = vmatpush1.msra.mxu0 0.0
    %375 = vmatprep.subr.mxu0 0.0
    %376 = vmatpush1.msra.mxu0 0.0
    %377 = vmatprep.subr.mxu0 0.0
    %378 = vmatpush1.msra.mxu0 0.0
    %379 = vmatprep.subr.mxu0 0.0
    %380 = vmatpush1.msra.mxu0 0.0
    %381 = vmatprep.subr.mxu0 0.0
    %382 = vmatpush1.msra.mxu0 0.0
    %383 = vmatprep.subr.mxu0 0.0
    %384 = vmatpush1.msra.mxu0 0.0
    %385 = vmatprep.subr.mxu0 0.0
    %386 = vmatpush1.msra.mxu0 0.0
    %387 = vmatprep.subr.mxu0 0.0
    %388 = vmatpush1.msra.mxu0 0.0
    %389 = vmatprep.subr.mxu0 0.0
    %390 = vmatpush1.msra.mxu0 0.0
    %391 = vmatprep.subr.mxu0 0.0
    %392 = vmatpush1.msra.mxu0 0.0
    %393 = vmatprep.subr.mxu0 0.0
    %394 = vmatpush1.msra.mxu0 0.0
    %395 = vmatprep.subr.mxu0 0.0
    %396 = vmatpush1.msra.mxu0 0.0
    %397 = vmatprep.subr.mxu0 0.0
    %398 = vmatpush1.msra.mxu0 0.0
    %399 = vmatprep.subr.mxu0 0.0
    %400 = vmatpush1.msra.mxu0 0.0
    %401 = vmatprep.subr.mxu0 0.0
    %402 = vmatpush1.msra.mxu0 0.0
    %403 = vmatprep.subr.mxu0 0.0
    %404 = vmatpush1.msra.mxu0 0.0
    %405 = vmatprep.subr.mxu0 0.0
    %406 = vmatpush1.msra.mxu0 0.0
    %407 = vmatprep.subr.mxu0 0.0
    %408 = vmatpush1.msra.mxu0 0.0
    %409 = vmatprep.subr.mxu0 0.0
    %410 = vmatpush1.msra.mxu0 0.0
    %411 = vmatprep.subr.mxu0 0.0
    %412 = vmatpush1.msra.mxu0 0.0
    %413 = vmatprep.subr.mxu0 0.0
    %414 = vmatpush1.msra.mxu0 0.0
    %415 = vmatprep.subr.mxu0 0.0
    %416 = vmatpush1.msra.mxu0 0.0
    %417 = vmatprep.subr.mxu0 0.0
    %418 = vmatpush1.msra.mxu0 0.0
    %419 = vmatprep.subr.mxu0 0.0
    %420 = vmatpush1.msra.mxu0 0.0
    %421 = vmatprep.subr.mxu0 0.0
    %422 = vmatpush1.msra.mxu0 0.0
    %423 = vmatprep.subr.mxu0 0.0
    %424 = vmatpush1.msra.mxu0 0.0
    %425 = vmatprep.mubr.f32.mxu0 0.0
    %426 = vmatmul.mubr.f32.gmra.mrb[0].mxu0 %v359
    %v427 = vpop.f32.mrb[0].mxu0
    %v428 = vadd.f32 0.0, %v427
    %v429 = vpop.f32.mrb[0].mxu0
    %430 = vdwg.mxu0
    %431 = vrot.lane.b32.xlu0 %v167, 64
    %v432 = vpop.permute.xlu0 %431
    %v435 = vsel %vm177, %v354, 0
    %437 = vmatprep.subr.mxu0 0.0
    %438 = vmatpush1.msra.mxu0 %v432
    %439 = vmatprep.subr.mxu0 0.0
    %440 = vmatpush1.msra.mxu0 0.0
    %441 = vmatprep.subr.mxu0 0.0
    %442 = vmatpush1.msra.mxu0 0.0
    %443 = vmatprep.subr.mxu0 0.0
    %444 = vmatpush1.msra.mxu0 0.0
    %445 = vmatprep.subr.mxu0 0.0
    %446 = vmatpush1.msra.mxu0 0.0
    %447 = vmatprep.subr.mxu0 0.0
    %448 = vmatpush1.msra.mxu0 0.0
    %449 = vmatprep.subr.mxu0 0.0
    %450 = vmatpush1.msra.mxu0 0.0
    %451 = vmatprep.subr.mxu0 0.0
    %452 = vmatpush1.msra.mxu0 0.0
    %453 = vmatprep.subr.mxu0 0.0
    %454 = vmatpush1.msra.mxu0 0.0
    %455 = vmatprep.subr.mxu0 0.0
    %456 = vmatpush1.msra.mxu0 0.0
    %457 = vmatprep.subr.mxu0 0.0
    %458 = vmatpush1.msra.mxu0 0.0
    %459 = vmatprep.subr.mxu0 0.0
    %460 = vmatpush1.msra.mxu0 0.0
    %461 = vmatprep.subr.mxu0 0.0
    %462 = vmatpush1.msra.mxu0 0.0
    %463 = vmatprep.subr.mxu0 0.0
    %464 = vmatpush1.msra.mxu0 0.0
    %465 = vmatprep.subr.mxu0 0.0
    %466 = vmatpush1.msra.mxu0 0.0
    %467 = vmatprep.subr.mxu0 0.0
    %468 = vmatpush1.msra.mxu0 0.0
    %469 = vmatprep.subr.mxu0 0.0
    %470 = vmatpush1.msra.mxu0 0.0
    %471 = vmatprep.subr.mxu0 0.0
    %472 = vmatpush1.msra.mxu0 0.0
    %473 = vmatprep.subr.mxu0 0.0
    %474 = vmatpush1.msra.mxu0 0.0
    %475 = vmatprep.subr.mxu0 0.0
    %476 = vmatpush1.msra.mxu0 0.0
    %477 = vmatprep.subr.mxu0 0.0
    %478 = vmatpush1.msra.mxu0 0.0
    %479 = vmatprep.subr.mxu0 0.0
    %480 = vmatpush1.msra.mxu0 0.0
    %481 = vmatprep.subr.mxu0 0.0
    %482 = vmatpush1.msra.mxu0 0.0
    %483 = vmatprep.subr.mxu0 0.0
    %484 = vmatpush1.msra.mxu0 0.0
    %485 = vmatprep.subr.mxu0 0.0
    %486 = vmatpush1.msra.mxu0 0.0
    %487 = vmatprep.subr.mxu0 0.0
    %488 = vmatpush1.msra.mxu0 0.0
    %489 = vmatprep.subr.mxu0 0.0
    %490 = vmatpush1.msra.mxu0 0.0
    %491 = vmatprep.subr.mxu0 0.0
    %492 = vmatpush1.msra.mxu0 0.0
    %493 = vmatprep.subr.mxu0 0.0
    %494 = vmatpush1.msra.mxu0 0.0
    %495 = vmatprep.subr.mxu0 0.0
    %496 = vmatpush1.msra.mxu0 0.0
    %497 = vmatprep.subr.mxu0 0.0
    %498 = vmatpush1.msra.mxu0 0.0
    %499 = vmatprep.subr.mxu0 0.0
    %500 = vmatpush1.msra.mxu0 0.0
    %501 = vmatprep.mubr.f32.mxu0 0.0
    %502 = vmatmul.mubr.f32.gmra.mrb[0].mxu0 %v435
    %v503 = vpop.f32.mrb[0].mxu0
    %v504 = vadd.f32 0.0, %v503
    %v505 = vpop.f32.mrb[0].mxu0
    %506 = vdwg.mxu0
    %507 = vrot.lane.b32.xlu0 %v162, 120
    %v508 = vpop.permute.xlu0 %507
    %509 = vrot.lane.b32.xlu0 %v162, 88
    %v510 = vpop.permute.xlu0 %509
    %v511 = vsel %vm177, %v508, 0
    %v513 = vsel %vm177, %v510, 0
    %515 = vmatprep.subr.mxu0 0.0
    %516 = vmatpush1.xpose.msra.mxu0 %v513
    %517 = vmatprep.subr.mxu0 0.0
    %518 = vmatpush1.xpose.msra.mxu0 0.0
    %519 = vmatprep.subr.mxu0 0.0
    %520 = vmatpush1.xpose.msra.mxu0 0.0
    %521 = vmatprep.subr.mxu0 0.0
    %522 = vmatpush1.xpose.msra.mxu0 0.0
    %523 = vmatprep.subr.mxu0 0.0
    %524 = vmatpush1.xpose.msra.mxu0 0.0
    %525 = vmatprep.subr.mxu0 0.0
    %526 = vmatpush1.xpose.msra.mxu0 0.0
    %527 = vmatprep.subr.mxu0 0.0
    %528 = vmatpush1.xpose.msra.mxu0 0.0
    %529 = vmatprep.subr.mxu0 0.0
    %530 = vmatpush1.xpose.msra.mxu0 0.0
    %531 = vmatprep.subr.mxu0 0.0
    %532 = vmatpush1.xpose.msra.mxu0 0.0
    %533 = vmatprep.subr.mxu0 0.0
    %534 = vmatpush1.xpose.msra.mxu0 0.0
    %535 = vmatprep.subr.mxu0 0.0
    %536 = vmatpush1.xpose.msra.mxu0 0.0
    %537 = vmatprep.subr.mxu0 0.0
    %538 = vmatpush1.xpose.msra.mxu0 0.0
    %539 = vmatprep.subr.mxu0 0.0
    %540 = vmatpush1.xpose.msra.mxu0 0.0
    %541 = vmatprep.subr.mxu0 0.0
    %542 = vmatpush1.xpose.msra.mxu0 0.0
    %543 = vmatprep.subr.mxu0 0.0
    %544 = vmatpush1.xpose.msra.mxu0 0.0
    %545 = vmatprep.subr.mxu0 0.0
    %546 = vmatpush1.xpose.msra.mxu0 0.0
    %547 = vmatprep.subr.mxu0 0.0
    %548 = vmatpush1.xpose.msra.mxu0 0.0
    %549 = vmatprep.subr.mxu0 0.0
    %550 = vmatpush1.xpose.msra.mxu0 0.0
    %551 = vmatprep.subr.mxu0 0.0
    %552 = vmatpush1.xpose.msra.mxu0 0.0
    %553 = vmatprep.subr.mxu0 0.0
    %554 = vmatpush1.xpose.msra.mxu0 0.0
    %555 = vmatprep.subr.mxu0 0.0
    %556 = vmatpush1.xpose.msra.mxu0 0.0
    %557 = vmatprep.subr.mxu0 0.0
    %558 = vmatpush1.xpose.msra.mxu0 0.0
    %559 = vmatprep.subr.mxu0 0.0
    %560 = vmatpush1.xpose.msra.mxu0 0.0
    %561 = vmatprep.subr.mxu0 0.0
    %562 = vmatpush1.xpose.msra.mxu0 0.0
    %563 = vmatprep.subr.mxu0 0.0
    %564 = vmatpush1.xpose.msra.mxu0 0.0
    %565 = vmatprep.subr.mxu0 0.0
    %566 = vmatpush1.xpose.msra.mxu0 0.0
    %567 = vmatprep.subr.mxu0 0.0
    %568 = vmatpush1.xpose.msra.mxu0 0.0
    %569 = vmatprep.subr.mxu0 0.0
    %570 = vmatpush1.xpose.msra.mxu0 0.0
    %571 = vmatprep.subr.mxu0 0.0
    %572 = vmatpush1.xpose.msra.mxu0 0.0
    %573 = vmatprep.subr.mxu0 0.0
    %574 = vmatpush1.xpose.msra.mxu0 0.0
    %575 = vmatprep.subr.mxu0 0.0
    %576 = vmatpush1.xpose.msra.mxu0 0.0
    %577 = vmatprep.subr.mxu0 0.0
    %578 = vmatpush1.xpose.msra.mxu0 0.0
    %579 = vmatprep.mubr.f32.mxu0 0.0
    %580 = vmatmul.mubr.f32.gmra.mrb[0].mxu0 %v511
    %v581 = vpop.f32.mrb[0].mxu0
    %v582 = vadd.f32 0.0, %v581
    %v583 = vpop.f32.mrb[0].mxu0
    %584 = vdwg.mxu0
    %585 = vrot.lane.b32.xlu0 %v167, 120
    %v586 = vpop.permute.xlu0 %585
    %587 = vrot.lane.b32.xlu0 %v167, 88
    %v588 = vpop.permute.xlu0 %587
    %v589 = vsel %vm177, %v586, 0
    %v591 = vsel %vm177, %v588, 0
    %593 = vmatprep.subr.mxu0 0.0
    %594 = vmatpush1.xpose.msra.mxu0 %v591
    %595 = vmatprep.subr.mxu0 0.0
    %596 = vmatpush1.xpose.msra.mxu0 0.0
    %597 = vmatprep.subr.mxu0 0.0
    %598 = vmatpush1.xpose.msra.mxu0 0.0
    %599 = vmatprep.subr.mxu0 0.0
    %600 = vmatpush1.xpose.msra.mxu0 0.0
    %601 = vmatprep.subr.mxu0 0.0
    %602 = vmatpush1.xpose.msra.mxu0 0.0
    %603 = vmatprep.subr.mxu0 0.0
    %604 = vmatpush1.xpose.msra.mxu0 0.0
    %605 = vmatprep.subr.mxu0 0.0
    %606 = vmatpush1.xpose.msra.mxu0 0.0
    %607 = vmatprep.subr.mxu0 0.0
    %608 = vmatpush1.xpose.msra.mxu0 0.0
    %609 = vmatprep.subr.mxu0 0.0
    %610 = vmatpush1.xpose.msra.mxu0 0.0
    %611 = vmatprep.subr.mxu0 0.0
    %612 = vmatpush1.xpose.msra.mxu0 0.0
    %613 = vmatprep.subr.mxu0 0.0
    %614 = vmatpush1.xpose.msra.mxu0 0.0
    %615 = vmatprep.subr.mxu0 0.0
    %616 = vmatpush1.xpose.msra.mxu0 0.0
    %617 = vmatprep.subr.mxu0 0.0
    %618 = vmatpush1.xpose.msra.mxu0 0.0
    %619 = vmatprep.subr.mxu0 0.0
    %620 = vmatpush1.xpose.msra.mxu0 0.0
    %621 = vmatprep.subr.mxu0 0.0
    %622 = vmatpush1.xpose.msra.mxu0 0.0
    %623 = vmatprep.subr.mxu0 0.0
    %624 = vmatpush1.xpose.msra.mxu0 0.0
    %625 = vmatprep.subr.mxu0 0.0
    %626 = vmatpush1.xpose.msra.mxu0 0.0
    %627 = vmatprep.subr.mxu0 0.0
    %628 = vmatpush1.xpose.msra.mxu0 0.0
    %629 = vmatprep.subr.mxu0 0.0
    %630 = vmatpush1.xpose.msra.mxu0 0.0
    %631 = vmatprep.subr.mxu0 0.0
    %632 = vmatpush1.xpose.msra.mxu0 0.0
    %633 = vmatprep.subr.mxu0 0.0
    %634 = vmatpush1.xpose.msra.mxu0 0.0
    %635 = vmatprep.subr.mxu0 0.0
    %636 = vmatpush1.xpose.msra.mxu0 0.0
    %637 = vmatprep.subr.mxu0 0.0
    %638 = vmatpush1.xpose.msra.mxu0 0.0
    %639 = vmatprep.subr.mxu0 0.0
    %640 = vmatpush1.xpose.msra.mxu0 0.0
    %641 = vmatprep.subr.mxu0 0.0
    %642 = vmatpush1.xpose.msra.mxu0 0.0
    %643 = vmatprep.subr.mxu0 0.0
    %644 = vmatpush1.xpose.msra.mxu0 0.0
    %645 = vmatprep.subr.mxu0 0.0
    %646 = vmatpush1.xpose.msra.mxu0 0.0
    %647 = vmatprep.subr.mxu0 0.0
    %648 = vmatpush1.xpose.msra.mxu0 0.0
    %649 = vmatprep.subr.mxu0 0.0
    %650 = vmatpush1.xpose.msra.mxu0 0.0
    %651 = vmatprep.subr.mxu0 0.0
    %652 = vmatpush1.xpose.msra.mxu0 0.0
    %653 = vmatprep.subr.mxu0 0.0
    %654 = vmatpush1.xpose.msra.mxu0 0.0
    %655 = vmatprep.subr.mxu0 0.0
    %656 = vmatpush1.xpose.msra.mxu0 0.0
    %657 = vmatprep.mubr.f32.mxu0 0.0
    %658 = vmatmul.mubr.f32.gmra.mrb[0].mxu0 %v589
    %v659 = vpop.f32.mrb[0].mxu0
    %v660 = vadd.f32 0.0, %v659
    %v661 = vpop.f32.mrb[0].mxu0
    %662 = vdwg.mxu0
    %v663 = vmul.f32 %v582, 0.35355338
    %v664 = vmul.f32 %v660, 0.35355338
    %v665 = vadd.f32 %v663, %v72
    %v666 = vadd.f32 %v664, %v76
    %v667 = vsel %vm177, %v665, -inf
    %668 = vmax.xlane.f32.xlu0 %v667
    %v669 = vpop.xlane.xlu0 %668
    %v670 = vsel %vm177, %v666, -inf
    %671 = vmax.xlane.f32.xlu0 %v670
    %v672 = vpop.xlane.xlu0 %671
    %v673 = vsub.f32 %v665, %v669
    %v674 = vsub.f32 %v666, %v672
    %v675 = vmul.f32 %v673, 1.442695
    %v676 = vpow.pop %v675
    %v677 = vmul.f32 %v674, 1.442695
    %v678 = vpow.pop %v677
    %v679 = vsel %vm177, %v676, 0.0
    %680 = vadd.xlane.f32.xlu0 %v679
    %v681 = vpop.xlane.xlu0 %680
    %v682 = vsel %vm177, %v678, 0.0
    %683 = vadd.xlane.f32.xlu0 %v682
    %v684 = vpop.xlane.xlu0 %683
    %v685 = vrcp.pop %v681
    %v686 = vrcp.pop %v684
    %v687 = vmul.f32 %v676, %v685
    %v688 = vmul.f32 %v678, %v686
    %689 = vrot.lane.b32.xlu0 %v162, 56
    %v690 = vpop.permute.xlu0 %689
    %v693 = vsel %vm177, %v687, 0
    %695 = vmatprep.subr.mxu0 0.0
    %696 = vmatpush1.msra.mxu0 %v690
    %697 = vmatprep.subr.mxu0 0.0
    %698 = vmatpush1.msra.mxu0 0.0
    %699 = vmatprep.subr.mxu0 0.0
    %700 = vmatpush1.msra.mxu0 0.0
    %701 = vmatprep.subr.mxu0 0.0
    %702 = vmatpush1.msra.mxu0 0.0
    %703 = vmatprep.subr.mxu0 0.0
    %704 = vmatpush1.msra.mxu0 0.0
    %705 = vmatprep.subr.mxu0 0.0
    %706 = vmatpush1.msra.mxu0 0.0
    %707 = vmatprep.subr.mxu0 0.0
    %708 = vmatpush1.msra.mxu0 0.0
    %709 = vmatprep.subr.mxu0 0.0
    %710 = vmatpush1.msra.mxu0 0.0
    %711 = vmatprep.subr.mxu0 0.0
    %712 = vmatpush1.msra.mxu0 0.0
    %713 = vmatprep.subr.mxu0 0.0
    %714 = vmatpush1.msra.mxu0 0.0
    %715 = vmatprep.subr.mxu0 0.0
    %716 = vmatpush1.msra.mxu0 0.0
    %717 = vmatprep.subr.mxu0 0.0
    %718 = vmatpush1.msra.mxu0 0.0
    %719 = vmatprep.subr.mxu0 0.0
    %720 = vmatpush1.msra.mxu0 0.0
    %721 = vmatprep.subr.mxu0 0.0
    %722 = vmatpush1.msra.mxu0 0.0
    %723 = vmatprep.subr.mxu0 0.0
    %724 = vmatpush1.msra.mxu0 0.0
    %725 = vmatprep.subr.mxu0 0.0
    %726 = vmatpush1.msra.mxu0 0.0
    %727 = vmatprep.subr.mxu0 0.0
    %728 = vmatpush1.msra.mxu0 0.0
    %729 = vmatprep.subr.mxu0 0.0
    %730 = vmatpush1.msra.mxu0 0.0
    %731 = vmatprep.subr.mxu0 0.0
    %732 = vmatpush1.msra.mxu0 0.0
    %733 = vmatprep.subr.mxu0 0.0
    %734 = vmatpush1.msra.mxu0 0.0
    %735 = vmatprep.subr.mxu0 0.0
    %736 = vmatpush1.msra.mxu0 0.0
    %737 = vmatprep.subr.mxu0 0.0
    %738 = vmatpush1.msra.mxu0 0.0
    %739 = vmatprep.subr.mxu0 0.0
    %740 = vmatpush1.msra.mxu0 0.0
    %741 = vmatprep.subr.mxu0 0.0
    %742 = vmatpush1.msra.mxu0 0.0
    %743 = vmatprep.subr.mxu0 0.0
    %744 = vmatpush1.msra.mxu0 0.0
    %745 = vmatprep.subr.mxu0 0.0
    %746 = vmatpush1.msra.mxu0 0.0
    %747 = vmatprep.subr.mxu0 0.0
    %748 = vmatpush1.msra.mxu0 0.0
    %749 = vmatprep.subr.mxu0 0.0
    %750 = vmatpush1.msra.mxu0 0.0
    %751 = vmatprep.subr.mxu0 0.0
    %752 = vmatpush1.msra.mxu0 0.0
    %753 = vmatprep.subr.mxu0 0.0
    %754 = vmatpush1.msra.mxu0 0.0
    %755 = vmatprep.subr.mxu0 0.0
    %756 = vmatpush1.msra.mxu0 0.0
    %757 = vmatprep.subr.mxu0 0.0
    %758 = vmatpush1.msra.mxu0 0.0
    %759 = vmatprep.mubr.f32.mxu0 0.0
    %760 = vmatmul.mubr.f32.gmra.mrb[0].mxu0 %v693
    %v761 = vpop.f32.mrb[0].mxu0
    %v762 = vadd.f32 0.0, %v761
    %v763 = vpop.f32.mrb[0].mxu0
    %764 = vdwg.mxu0
    %765 = vrot.lane.b32.xlu0 %v167, 56
    %v766 = vpop.permute.xlu0 %765
    %v769 = vsel %vm177, %v688, 0
    %771 = vmatprep.subr.mxu0 0.0
    %772 = vmatpush1.msra.mxu0 %v766
    %773 = vmatprep.subr.mxu0 0.0
    %774 = vmatpush1.msra.mxu0 0.0
    %775 = vmatprep.subr.mxu0 0.0
    %776 = vmatpush1.msra.mxu0 0.0
    %777 = vmatprep.subr.mxu0 0.0
    %778 = vmatpush1.msra.mxu0 0.0
    %779 = vmatprep.subr.mxu0 0.0
    %780 = vmatpush1.msra.mxu0 0.0
    %781 = vmatprep.subr.mxu0 0.0
    %782 = vmatpush1.msra.mxu0 0.0
    %783 = vmatprep.subr.mxu0 0.0
    %784 = vmatpush1.msra.mxu0 0.0
    %785 = vmatprep.subr.mxu0 0.0
    %786 = vmatpush1.msra.mxu0 0.0
    %787 = vmatprep.subr.mxu0 0.0
    %788 = vmatpush1.msra.mxu0 0.0
    %789 = vmatprep.subr.mxu0 0.0
    %790 = vmatpush1.msra.mxu0 0.0
    %791 = vmatprep.subr.mxu0 0.0
    %792 = vmatpush1.msra.mxu0 0.0
    %793 = vmatprep.subr.mxu0 0.0
    %794 = vmatpush1.msra.mxu0 0.0
    %795 = vmatprep.subr.mxu0 0.0
    %796 = vmatpush1.msra.mxu0 0.0
    %797 = vmatprep.subr.mxu0 0.0
    %798 = vmatpush1.msra.mxu0 0.0
    %799 = vmatprep.subr.mxu0 0.0
    %800 = vmatpush1.msra.mxu0 0.0
    %801 = vmatprep.subr.mxu0 0.0
    %802 = vmatpush1.msra.mxu0 0.0
    %803 = vmatprep.subr.mxu0 0.0
    %804 = vmatpush1.msra.mxu0 0.0
    %805 = vmatprep.subr.mxu0 0.0
    %806 = vmatpush1.msra.mxu0 0.0
    %807 = vmatprep.subr.mxu0 0.0
    %808 = vmatpush1.msra.mxu0 0.0
    %809 = vmatprep.subr.mxu0 0.0
    %810 = vmatpush1.msra.mxu0 0.0
    %811 = vmatprep.subr.mxu0 0.0
    %812 = vmatpush1.msra.mxu0 0.0
    %813 = vmatprep.subr.mxu0 0.0
    %814 = vmatpush1.msra.mxu0 0.0
    %815 = vmatprep.subr.mxu0 0.0
    %816 = vmatpush1.msra.mxu0 0.0
    %817 = vmatprep.subr.mxu0 0.0
    %818 = vmatpush1.msra.mxu0 0.0
    %819 = vmatprep.subr.mxu0 0.0
    %820 = vmatpush1.msra.mxu0 0.0
    %821 = vmatprep.subr.mxu0 0.0
    %822 = vmatpush1.msra.mxu0 0.0
    %823 = vmatprep.subr.mxu0 0.0
    %824 = vmatpush1.msra.mxu0 0.0
    %825 = vmatprep.subr.mxu0 0.0
    %826 = vmatpush1.msra.mxu0 0.0
    %827 = vmatprep.subr.mxu0 0.0
    %828 = vmatpush1.msra.mxu0 0.0
    %829 = vmatprep.subr.mxu0 0.0
    %830 = vmatpush1.msra.mxu0 0.0
    %831 = vmatprep.subr.mxu0 0.0
    %832 = vmatpush1.msra.mxu0 0.0
    %833 = vmatprep.subr.mxu0 0.0
    %834 = vmatpush1.msra.mxu0 0.0
    %835 = vmatprep.mubr.f32.mxu0 0.0
    %836 = vmatmul.mubr.f32.gmra.mrb[0].mxu0 %v769
    %v837 = vpop.f32.mrb[0].mxu0
    %v838 = vadd.f32 0.0, %v837
    %v839 = vpop.f32.mrb[0].mxu0
    %840 = vdwg.mxu0
    %v842 = vsel %vm177, %v762, 0
    %v845 = vsel %vm177, %v838, 0
    %847 = vmatprep.subr.mxu0 0.0
    %848 = vmatpush1.msra.mxu0 %v171
    %849 = vmatprep.subr.mxu0 0.0
    %850 = vmatpush1.msra.mxu0 0.0
    %851 = vmatprep.subr.mxu0 0.0
    %852 = vmatpush1.msra.mxu0 0.0
    %853 = vmatprep.subr.mxu0 0.0
    %854 = vmatpush1.msra.mxu0 0.0
    %855 = vmatprep.subr.mxu0 0.0
    %856 = vmatpush1.msra.mxu0 0.0
    %857 = vmatprep.subr.mxu0 0.0
    %858 = vmatpush1.msra.mxu0 0.0
    %859 = vmatprep.subr.mxu0 0.0
    %860 = vmatpush1.msra.mxu0 0.0
    %861 = vmatprep.subr.mxu0 0.0
    %862 = vmatpush1.msra.mxu0 0.0
    %863 = vmatprep.subr.mxu0 0.0
    %864 = vmatpush1.msra.mxu0 0.0
    %865 = vmatprep.subr.mxu0 0.0
    %866 = vmatpush1.msra.mxu0 0.0
    %867 = vmatprep.subr.mxu0 0.0
    %868 = vmatpush1.msra.mxu0 0.0
    %869 = vmatprep.subr.mxu0 0.0
    %870 = vmatpush1.msra.mxu0 0.0
    %871 = vmatprep.subr.mxu0 0.0
    %872 = vmatpush1.msra.mxu0 0.0
    %873 = vmatprep.subr.mxu0 0.0
    %874 = vmatpush1.msra.mxu0 0.0
    %875 = vmatprep.subr.mxu0 0.0
    %876 = vmatpush1.msra.mxu0 0.0
    %877 = vmatprep.subr.mxu0 0.0
    %878 = vmatpush1.msra.mxu0 0.0
    %879 = vmatprep.subr.mxu0 0.0
    %880 = vmatpush1.msra.mxu0 0.0
    %881 = vmatprep.subr.mxu0 0.0
    %882 = vmatpush1.msra.mxu0 0.0
    %883 = vmatprep.subr.mxu0 0.0
    %884 = vmatpush1.msra.mxu0 0.0
    %885 = vmatprep.subr.mxu0 0.0
    %886 = vmatpush1.msra.mxu0 0.0
    %887 = vmatprep.subr.mxu0 0.0
    %888 = vmatpush1.msra.mxu0 0.0
    %889 = vmatprep.subr.mxu0 0.0
    %890 = vmatpush1.msra.mxu0 0.0
    %891 = vmatprep.subr.mxu0 0.0
    %892 = vmatpush1.msra.mxu0 0.0
    %893 = vmatprep.subr.mxu0 0.0
    %894 = vmatpush1.msra.mxu0 0.0
    %895 = vmatprep.subr.mxu0 0.0
    %896 = vmatpush1.msra.mxu0 0.0
    %897 = vmatprep.subr.mxu0 0.0
    %898 = vmatpush1.msra.mxu0 0.0
    %899 = vmatprep.subr.mxu0 0.0
    %900 = vmatpush1.msra.mxu0 0.0
    %901 = vmatprep.subr.mxu0 0.0
    %902 = vmatpush1.msra.mxu0 0.0
    %903 = vmatprep.subr.mxu0 0.0
    %904 = vmatpush1.msra.mxu0 0.0
    %905 = vmatprep.subr.mxu0 0.0
    %906 = vmatpush1.msra.mxu0 0.0
    %907 = vmatprep.subr.mxu0 0.0
    %908 = vmatpush1.msra.mxu0 0.0
    %909 = vmatprep.subr.mxu0 0.0
    %910 = vmatpush1.msra.mxu0 0.0
    %911 = vmatprep.mubr.f32.mxu0 0.0
    %912 = vmatmul.mubr.f32.gmra.mrb[0].mxu0 %v842
    %v913 = vpop.f32.mrb[0].mxu0
    %v914 = vadd.f32 0.0, %v913
    %v915 = vpop.f32.mrb[0].mxu0
    %916 = vmatprep.mubr.f32.mxu0 0.0
    %917 = vmatmul.mubr.f32.gmra.mrb[0].mxu0 %v845
    %v918 = vpop.f32.mrb[0].mxu0
    %v919 = vadd.f32 0.0, %v918
    %v920 = vpop.f32.mrb[0].mxu0
    %921 = vdwg.mxu0
    %v923 = vsel %vm177, %v428, 0
    %v926 = vsel %vm177, %v504, 0
    %928 = vmatprep.subr.mxu0 0.0
    %929 = vmatpush1.msra.mxu0 %v170
    %930 = vmatprep.subr.mxu0 0.0
    %931 = vmatpush1.msra.mxu0 0.0
    %932 = vmatprep.subr.mxu0 0.0
    %933 = vmatpush1.msra.mxu0 0.0
    %934 = vmatprep.subr.mxu0 0.0
    %935 = vmatpush1.msra.mxu0 0.0
    %936 = vmatprep.subr.mxu0 0.0
    %937 = vmatpush1.msra.mxu0 0.0
    %938 = vmatprep.subr.mxu0 0.0
    %939 = vmatpush1.msra.mxu0 0.0
    %940 = vmatprep.subr.mxu0 0.0
    %941 = vmatpush1.msra.mxu0 0.0
    %942 = vmatprep.subr.mxu0 0.0
    %943 = vmatpush1.msra.mxu0 0.0
    %944 = vmatprep.subr.mxu0 0.0
    %945 = vmatpush1.msra.mxu0 0.0
    %946 = vmatprep.subr.mxu0 0.0
    %947 = vmatpush1.msra.mxu0 0.0
    %948 = vmatprep.subr.mxu0 0.0
    %949 = vmatpush1.msra.mxu0 0.0
    %950 = vmatprep.subr.mxu0 0.0
    %951 = vmatpush1.msra.mxu0 0.0
    %952 = vmatprep.subr.mxu0 0.0
    %953 = vmatpush1.msra.mxu0 0.0
    %954 = vmatprep.subr.mxu0 0.0
    %955 = vmatpush1.msra.mxu0 0.0
    %956 = vmatprep.subr.mxu0 0.0
    %957 = vmatpush1.msra.mxu0 0.0
    %958 = vmatprep.subr.mxu0 0.0
    %959 = vmatpush1.msra.mxu0 0.0
    %960 = vmatprep.subr.mxu0 0.0
    %961 = vmatpush1.msra.mxu0 0.0
    %962 = vmatprep.subr.mxu0 0.0
    %963 = vmatpush1.msra.mxu0 0.0
    %964 = vmatprep.subr.mxu0 0.0
    %965 = vmatpush1.msra.mxu0 0.0
    %966 = vmatprep.subr.mxu0 0.0
    %967 = vmatpush1.msra.mxu0 0.0
    %968 = vmatprep.subr.mxu0 0.0
    %969 = vmatpush1.msra.mxu0 0.0
    %970 = vmatprep.subr.mxu0 0.0
    %971 = vmatpush1.msra.mxu0 0.0
    %972 = vmatprep.subr.mxu0 0.0
    %973 = vmatpush1.msra.mxu0 0.0
    %974 = vmatprep.subr.mxu0 0.0
    %975 = vmatpush1.msra.mxu0 0.0
    %976 = vmatprep.subr.mxu0 0.0
    %977 = vmatpush1.msra.mxu0 0.0
    %978 = vmatprep.subr.mxu0 0.0
    %979 = vmatpush1.msra.mxu0 0.0
    %980 = vmatprep.subr.mxu0 0.0
    %981 = vmatpush1.msra.mxu0 0.0
    %982 = vmatprep.subr.mxu0 0.0
    %983 = vmatpush1.msra.mxu0 0.0
    %984 = vmatprep.subr.mxu0 0.0
    %985 = vmatpush1.msra.mxu0 0.0
    %986 = vmatprep.subr.mxu0 0.0
    %987 = vmatpush1.msra.mxu0 0.0
    %988 = vmatprep.subr.mxu0 0.0
    %989 = vmatpush1.msra.mxu0 0.0
    %990 = vmatprep.subr.mxu0 0.0
    %991 = vmatpush1.msra.mxu0 0.0
    %992 = vmatprep.mubr.f32.mxu0 0.0
    %993 = vmatmul.mubr.f32.gmra.mrb[0].mxu0 %v923
    %v994 = vpop.f32.mrb[0].mxu0
    %v995 = vadd.f32 %v914, %v994
    %v996 = vpop.f32.mrb[0].mxu0
    %997 = vmatprep.mubr.f32.mxu0 0.0
    %998 = vmatmul.mubr.f32.gmra.mrb[0].mxu0 %v926
    %v999 = vpop.f32.mrb[0].mxu0
    %v1000 = vadd.f32 %v919, %v999
    %v1001 = vpop.f32.mrb[0].mxu0
    %1002 = vdwg.mxu0
    %1003 = vrot.lane.b32.xlu0 %v162, 112
    %v1004 = vpop.permute.xlu0 %1003
    %1005 = vrot.lane.b32.xlu0 %v162, 80
    %v1006 = vpop.permute.xlu0 %1005
    %v1007 = vsel %vm177, %v1004, 0
    %v1009 = vsel %vm177, %v1006, 0
    %1011 = vmatprep.subr.mxu0 0.0
    %1012 = vmatpush1.xpose.msra.mxu0 %v1009
    %1013 = vmatprep.subr.mxu0 0.0
    %1014 = vmatpush1.xpose.msra.mxu0 0.0
    %1015 = vmatprep.subr.mxu0 0.0
    %1016 = vmatpush1.xpose.msra.mxu0 0.0
    %1017 = vmatprep.subr.mxu0 0.0
    %1018 = vmatpush1.xpose.msra.mxu0 0.0
    %1019 = vmatprep.subr.mxu0 0.0
    %1020 = vmatpush1.xpose.msra.mxu0 0.0
    %1021 = vmatprep.subr.mxu0 0.0
    %1022 = vmatpush1.xpose.msra.mxu0 0.0
    %1023 = vmatprep.subr.mxu0 0.0
    %1024 = vmatpush1.xpose.msra.mxu0 0.0
    %1025 = vmatprep.subr.mxu0 0.0
    %1026 = vmatpush1.xpose.msra.mxu0 0.0
    %1027 = vmatprep.subr.mxu0 0.0
    %1028 = vmatpush1.xpose.msra.mxu0 0.0
    %1029 = vmatprep.subr.mxu0 0.0
    %1030 = vmatpush1.xpose.msra.mxu0 0.0
    %1031 = vmatprep.subr.mxu0 0.0
    %1032 = vmatpush1.xpose.msra.mxu0 0.0
    %1033 = vmatprep.subr.mxu0 0.0
    %1034 = vmatpush1.xpose.msra.mxu0 0.0
    %1035 = vmatprep.subr.mxu0 0.0
    %1036 = vmatpush1.xpose.msra.mxu0 0.0
    %1037 = vmatprep.subr.mxu0 0.0
    %1038 = vmatpush1.xpose.msra.mxu0 0.0
    %1039 = vmatprep.subr.mxu0 0.0
    %1040 = vmatpush1.xpose.msra.mxu0 0.0
    %1041 = vmatprep.subr.mxu0 0.0
    %1042 = vmatpush1.xpose.msra.mxu0 0.0
    %1043 = vmatprep.subr.mxu0 0.0
    %1044 = vmatpush1.xpose.msra.mxu0 0.0
    %1045 = vmatprep.subr.mxu0 0.0
    %1046 = vmatpush1.xpose.msra.mxu0 0.0
    %1047 = vmatprep.subr.mxu0 0.0
    %1048 = vmatpush1.xpose.msra.mxu0 0.0
    %1049 = vmatprep.subr.mxu0 0.0
    %1050 = vmatpush1.xpose.msra.mxu0 0.0
    %1051 = vmatprep.subr.mxu0 0.0
    %1052 = vmatpush1.xpose.msra.mxu0 0.0
    %1053 = vmatprep.subr.mxu0 0.0
    %1054 = vmatpush1.xpose.msra.mxu0 0.0
    %1055 = vmatprep.subr.mxu0 0.0
    %1056 = vmatpush1.xpose.msra.mxu0 0.0
    %1057 = vmatprep.subr.mxu0 0.0
    %1058 = vmatpush1.xpose.msra.mxu0 0.0
    %1059 = vmatprep.subr.mxu0 0.0
    %1060 = vmatpush1.xpose.msra.mxu0 0.0
    %1061 = vmatprep.subr.mxu0 0.0
    %1062 = vmatpush1.xpose.msra.mxu0 0.0
    %1063 = vmatprep.subr.mxu0 0.0
    %1064 = vmatpush1.xpose.msra.mxu0 0.0
    %1065 = vmatprep.subr.mxu0 0.0
    %1066 = vmatpush1.xpose.msra.mxu0 0.0
    %1067 = vmatprep.subr.mxu0 0.0
    %1068 = vmatpush1.xpose.msra.mxu0 0.0
    %1069 = vmatprep.subr.mxu0 0.0
    %1070 = vmatpush1.xpose.msra.mxu0 0.0
    %1071 = vmatprep.subr.mxu0 0.0
    %1072 = vmatpush1.xpose.msra.mxu0 0.0
    %1073 = vmatprep.subr.mxu0 0.0
    %1074 = vmatpush1.xpose.msra.mxu0 0.0
    %1075 = vmatprep.mubr.f32.mxu0 0.0
    %1076 = vmatmul.mubr.f32.gmra.mrb[0].mxu0 %v1007
    %v1077 = vpop.f32.mrb[0].mxu0
    %v1078 = vadd.f32 0.0, %v1077
    %v1079 = vpop.f32.mrb[0].mxu0
    %1080 = vdwg.mxu0
    %1081 = vrot.lane.b32.xlu0 %v167, 112
    %v1082 = vpop.permute.xlu0 %1081
    %1083 = vrot.lane.b32.xlu0 %v167, 80
    %v1084 = vpop.permute.xlu0 %1083
    %v1085 = vsel %vm177, %v1082, 0
    %v1087 = vsel %vm177, %v1084, 0
    %1089 = vmatprep.subr.mxu0 0.0
    %1090 = vmatpush1.xpose.msra.mxu0 %v1087
    %1091 = vmatprep.subr.mxu0 0.0
    %1092 = vmatpush1.xpose.msra.mxu0 0.0
    %1093 = vmatprep.subr.mxu0 0.0
    %1094 = vmatpush1.xpose.msra.mxu0 0.0
    %1095 = vmatprep.subr.mxu0 0.0
    %1096 = vmatpush1.xpose.msra.mxu0 0.0
    %1097 = vmatprep.subr.mxu0 0.0
    %1098 = vmatpush1.xpose.msra.mxu0 0.0
    %1099 = vmatprep.subr.mxu0 0.0
    %1100 = vmatpush1.xpose.msra.mxu0 0.0
    %1101 = vmatprep.subr.mxu0 0.0
    %1102 = vmatpush1.xpose.msra.mxu0 0.0
    %1103 = vmatprep.subr.mxu0 0.0
    %1104 = vmatpush1.xpose.msra.mxu0 0.0
    %1105 = vmatprep.subr.mxu0 0.0
    %1106 = vmatpush1.xpose.msra.mxu0 0.0
    %1107 = vmatprep.subr.mxu0 0.0
    %1108 = vmatpush1.xpose.msra.mxu0 0.0
    %1109 = vmatprep.subr.mxu0 0.0
    %1110 = vmatpush1.xpose.msra.mxu0 0.0
    %1111 = vmatprep.subr.mxu0 0.0
    %1112 = vmatpush1.xpose.msra.mxu0 0.0
    %1113 = vmatprep.subr.mxu0 0.0
    %1114 = vmatpush1.xpose.msra.mxu0 0.0
    %1115 = vmatprep.subr.mxu0 0.0
    %1116 = vmatpush1.xpose.msra.mxu0 0.0
    %1117 = vmatprep.subr.mxu0 0.0
    %1118 = vmatpush1.xpose.msra.mxu0 0.0
    %1119 = vmatprep.subr.mxu0 0.0
    %1120 = vmatpush1.xpose.msra.mxu0 0.0
    %1121 = vmatprep.subr.mxu0 0.0
    %1122 = vmatpush1.xpose.msra.mxu0 0.0
    %1123 = vmatprep.subr.mxu0 0.0
    %1124 = vmatpush1.xpose.msra.mxu0 0.0
    %1125 = vmatprep.subr.mxu0 0.0
    %1126 = vmatpush1.xpose.msra.mxu0 0.0
    %1127 = vmatprep.subr.mxu0 0.0
    %1128 = vmatpush1.xpose.msra.mxu0 0.0
    %1129 = vmatprep.subr.mxu0 0.0
    %1130 = vmatpush1.xpose.msra.mxu0 0.0
    %1131 = vmatprep.subr.mxu0 0.0
    %1132 = vmatpush1.xpose.msra.mxu0 0.0
    %1133 = vmatprep.subr.mxu0 0.0
    %1134 = vmatpush1.xpose.msra.mxu0 0.0
    %1135 = vmatprep.subr.mxu0 0.0
    %1136 = vmatpush1.xpose.msra.mxu0 0.0
    %1137 = vmatprep.subr.mxu0 0.0
    %1138 = vmatpush1.xpose.msra.mxu0 0.0
    %1139 = vmatprep.subr.mxu0 0.0
    %1140 = vmatpush1.xpose.msra.mxu0 0.0
    %1141 = vmatprep.subr.mxu0 0.0
    %1142 = vmatpush1.xpose.msra.mxu0 0.0
    %1143 = vmatprep.subr.mxu0 0.0
    %1144 = vmatpush1.xpose.msra.mxu0 0.0
    %1145 = vmatprep.subr.mxu0 0.0
    %1146 = vmatpush1.xpose.msra.mxu0 0.0
    %1147 = vmatprep.subr.mxu0 0.0
    %1148 = vmatpush1.xpose.msra.mxu0 0.0
    %1149 = vmatprep.subr.mxu0 0.0
    %1150 = vmatpush1.xpose.msra.mxu0 0.0
    %1151 = vmatprep.subr.mxu0 0.0
    %1152 = vmatpush1.xpose.msra.mxu0 0.0
    %1153 = vmatprep.mubr.f32.mxu0 0.0
    %1154 = vmatmul.mubr.f32.gmra.mrb[0].mxu0 %v1085
    %v1155 = vpop.f32.mrb[0].mxu0
    %v1156 = vadd.f32 0.0, %v1155
    %v1157 = vpop.f32.mrb[0].mxu0
    %1158 = vdwg.mxu0
    %v1159 = vmul.f32 %v1078, 0.35355338
    %v1160 = vmul.f32 %v1156, 0.35355338
    %v1161 = vadd.f32 %v1159, %v72
    %v1162 = vadd.f32 %v1160, %v76
    %v1163 = vsel %vm177, %v1161, -inf
    %1164 = vmax.xlane.f32.xlu0 %v1163
    %v1165 = vpop.xlane.xlu0 %1164
    %v1166 = vsel %vm177, %v1162, -inf
    %1167 = vmax.xlane.f32.xlu0 %v1166
    %v1168 = vpop.xlane.xlu0 %1167
    %v1169 = vsub.f32 %v1161, %v1165
    %v1170 = vsub.f32 %v1162, %v1168
    %v1171 = vmul.f32 %v1169, 1.442695
    %v1172 = vpow.pop %v1171
    %v1173 = vmul.f32 %v1170, 1.442695
    %v1174 = vpow.pop %v1173
    %v1175 = vsel %vm177, %v1172, 0.0
    %1176 = vadd.xlane.f32.xlu0 %v1175
    %v1177 = vpop.xlane.xlu0 %1176
    %v1178 = vsel %vm177, %v1174, 0.0
    %1179 = vadd.xlane.f32.xlu0 %v1178
    %v1180 = vpop.xlane.xlu0 %1179
    %v1181 = vrcp.pop %v1177
    %v1182 = vrcp.pop %v1180
    %v1183 = vmul.f32 %v1172, %v1181
    %v1184 = vmul.f32 %v1174, %v1182
    %1185 = vrot.lane.b32.xlu0 %v162, 48
    %v1186 = vpop.permute.xlu0 %1185
    %v1189 = vsel %vm177, %v1183, 0
    %1191 = vmatprep.subr.mxu0 0.0
    %1192 = vmatpush1.msra.mxu0 %v1186
    %1193 = vmatprep.subr.mxu0 0.0
    %1194 = vmatpush1.msra.mxu0 0.0
    %1195 = vmatprep.subr.mxu0 0.0
    %1196 = vmatpush1.msra.mxu0 0.0
    %1197 = vmatprep.subr.mxu0 0.0
    %1198 = vmatpush1.msra.mxu0 0.0
    %1199 = vmatprep.subr.mxu0 0.0
    %1200 = vmatpush1.msra.mxu0 0.0
    %1201 = vmatprep.subr.mxu0 0.0
    %1202 = vmatpush1.msra.mxu0 0.0
    %1203 = vmatprep.subr.mxu0 0.0
    %1204 = vmatpush1.msra.mxu0 0.0
    %1205 = vmatprep.subr.mxu0 0.0
    %1206 = vmatpush1.msra.mxu0 0.0
    %1207 = vmatprep.subr.mxu0 0.0
    %1208 = vmatpush1.msra.mxu0 0.0
    %1209 = vmatprep.subr.mxu0 0.0
    %1210 = vmatpush1.msra.mxu0 0.0
    %1211 = vmatprep.subr.mxu0 0.0
    %1212 = vmatpush1.msra.mxu0 0.0
    %1213 = vmatprep.subr.mxu0 0.0
    %1214 = vmatpush1.msra.mxu0 0.0
    %1215 = vmatprep.subr.mxu0 0.0
    %1216 = vmatpush1.msra.mxu0 0.0
    %1217 = vmatprep.subr.mxu0 0.0
    %1218 = vmatpush1.msra.mxu0 0.0
    %1219 = vmatprep.subr.mxu0 0.0
    %1220 = vmatpush1.msra.mxu0 0.0
    %1221 = vmatprep.subr.mxu0 0.0
    %1222 = vmatpush1.msra.mxu0 0.0
    %1223 = vmatprep.subr.mxu0 0.0
    %1224 = vmatpush1.msra.mxu0 0.0
    %1225 = vmatprep.subr.mxu0 0.0
    %1226 = vmatpush1.msra.mxu0 0.0
    %1227 = vmatprep.subr.mxu0 0.0
    %1228 = vmatpush1.msra.mxu0 0.0
    %1229 = vmatprep.subr.mxu0 0.0
    %1230 = vmatpush1.msra.mxu0 0.0
    %1231 = vmatprep.subr.mxu0 0.0
    %1232 = vmatpush1.msra.mxu0 0.0
    %1233 = vmatprep.subr.mxu0 0.0
    %1234 = vmatpush1.msra.mxu0 0.0
    %1235 = vmatprep.subr.mxu0 0.0
    %1236 = vmatpush1.msra.mxu0 0.0
    %1237 = vmatprep.subr.mxu0 0.0
    %1238 = vmatpush1.msra.mxu0 0.0
    %1239 = vmatprep.subr.mxu0 0.0
    %1240 = vmatpush1.msra.mxu0 0.0
    %1241 = vmatprep.subr.mxu0 0.0
    %1242 = vmatpush1.msra.mxu0 0.0
    %1243 = vmatprep.subr.mxu0 0.0
    %1244 = vmatpush1.msra.mxu0 0.0
    %1245 = vmatprep.subr.mxu0 0.0
    %1246 = vmatpush1.msra.mxu0 0.0
    %1247 = vmatprep.subr.mxu0 0.0
    %1248 = vmatpush1.msra.mxu0 0.0
    %1249 = vmatprep.subr.mxu0 0.0
    %1250 = vmatpush1.msra.mxu0 0.0
    %1251 = vmatprep.subr.mxu0 0.0
    %1252 = vmatpush1.msra.mxu0 0.0
    %1253 = vmatprep.subr.mxu0 0.0
    %1254 = vmatpush1.msra.mxu0 0.0
    %1255 = vmatprep.mubr.f32.mxu0 0.0
    %1256 = vmatmul.mubr.f32.gmra.mrb[0].mxu0 %v1189
    %v1257 = vpop.f32.mrb[0].mxu0
    %v1258 = vadd.f32 0.0, %v1257
    %v1259 = vpop.f32.mrb[0].mxu0
    %1260 = vdwg.mxu0
    %1261 = vrot.lane.b32.xlu0 %v167, 48
    %v1262 = vpop.permute.xlu0 %1261
    %v1265 = vsel %vm177, %v1184, 0
    %1267 = vmatprep.subr.mxu0 0.0
    %1268 = vmatpush1.msra.mxu0 %v1262
    %1269 = vmatprep.subr.mxu0 0.0
    %1270 = vmatpush1.msra.mxu0 0.0
    %1271 = vmatprep.subr.mxu0 0.0
    %1272 = vmatpush1.msra.mxu0 0.0
    %1273 = vmatprep.subr.mxu0 0.0
    %1274 = vmatpush1.msra.mxu0 0.0
    %1275 = vmatprep.subr.mxu0 0.0
    %1276 = vmatpush1.msra.mxu0 0.0
    %1277 = vmatprep.subr.mxu0 0.0
    %1278 = vmatpush1.msra.mxu0 0.0
    %1279 = vmatprep.subr.mxu0 0.0
    %1280 = vmatpush1.msra.mxu0 0.0
    %1281 = vmatprep.subr.mxu0 0.0
    %1282 = vmatpush1.msra.mxu0 0.0
    %1283 = vmatprep.subr.mxu0 0.0
    %1284 = vmatpush1.msra.mxu0 0.0
    %1285 = vmatprep.subr.mxu0 0.0
    %1286 = vmatpush1.msra.mxu0 0.0
    %1287 = vmatprep.subr.mxu0 0.0
    %1288 = vmatpush1.msra.mxu0 0.0
    %1289 = vmatprep.subr.mxu0 0.0
    %1290 = vmatpush1.msra.mxu0 0.0
    %1291 = vmatprep.subr.mxu0 0.0
    %1292 = vmatpush1.msra.mxu0 0.0
    %1293 = vmatprep.subr.mxu0 0.0
    %1294 = vmatpush1.msra.mxu0 0.0
    %1295 = vmatprep.subr.mxu0 0.0
    %1296 = vmatpush1.msra.mxu0 0.0
    %1297 = vmatprep.subr.mxu0 0.0
    %1298 = vmatpush1.msra.mxu0 0.0
    %1299 = vmatprep.subr.mxu0 0.0
    %1300 = vmatpush1.msra.mxu0 0.0
    %1301 = vmatprep.subr.mxu0 0.0
    %1302 = vmatpush1.msra.mxu0 0.0
    %1303 = vmatprep.subr.mxu0 0.0
    %1304 = vmatpush1.msra.mxu0 0.0
    %1305 = vmatprep.subr.mxu0 0.0
    %1306 = vmatpush1.msra.mxu0 0.0
    %1307 = vmatprep.subr.mxu0 0.0
    %1308 = vmatpush1.msra.mxu0 0.0
    %1309 = vmatprep.subr.mxu0 0.0
    %1310 = vmatpush1.msra.mxu0 0.0
    %1311 = vmatprep.subr.mxu0 0.0
    %1312 = vmatpush1.msra.mxu0 0.0
    %1313 = vmatprep.subr.mxu0 0.0
    %1314 = vmatpush1.msra.mxu0 0.0
    %1315 = vmatprep.subr.mxu0 0.0
    %1316 = vmatpush1.msra.mxu0 0.0
    %1317 = vmatprep.subr.mxu0 0.0
    %1318 = vmatpush1.msra.mxu0 0.0
    %1319 = vmatprep.subr.mxu0 0.0
    %1320 = vmatpush1.msra.mxu0 0.0
    %1321 = vmatprep.subr.mxu0 0.0
    %1322 = vmatpush1.msra.mxu0 0.0
    %1323 = vmatprep.subr.mxu0 0.0
    %1324 = vmatpush1.msra.mxu0 0.0
    %1325 = vmatprep.subr.mxu0 0.0
    %1326 = vmatpush1.msra.mxu0 0.0
    %1327 = vmatprep.subr.mxu0 0.0
    %1328 = vmatpush1.msra.mxu0 0.0
    %1329 = vmatprep.subr.mxu0 0.0
    %1330 = vmatpush1.msra.mxu0 0.0
    %1331 = vmatprep.mubr.f32.mxu0 0.0
    %1332 = vmatmul.mubr.f32.gmra.mrb[0].mxu0 %v1265
    %v1333 = vpop.f32.mrb[0].mxu0
    %v1334 = vadd.f32 0.0, %v1333
    %v1335 = vpop.f32.mrb[0].mxu0
    %1336 = vdwg.mxu0
    %v1338 = vsel %vm177, %v1258, 0
    %v1341 = vsel %vm177, %v1334, 0
    %1343 = vmatprep.subr.mxu0 0.0
    %1344 = vmatpush1.msra.mxu0 %v172
    %1345 = vmatprep.subr.mxu0 0.0
    %1346 = vmatpush1.msra.mxu0 0.0
    %1347 = vmatprep.subr.mxu0 0.0
    %1348 = vmatpush1.msra.mxu0 0.0
    %1349 = vmatprep.subr.mxu0 0.0
    %1350 = vmatpush1.msra.mxu0 0.0
    %1351 = vmatprep.subr.mxu0 0.0
    %1352 = vmatpush1.msra.mxu0 0.0
    %1353 = vmatprep.subr.mxu0 0.0
    %1354 = vmatpush1.msra.mxu0 0.0
    %1355 = vmatprep.subr.mxu0 0.0
    %1356 = vmatpush1.msra.mxu0 0.0
    %1357 = vmatprep.subr.mxu0 0.0
    %1358 = vmatpush1.msra.mxu0 0.0
    %1359 = vmatprep.subr.mxu0 0.0
    %1360 = vmatpush1.msra.mxu0 0.0
    %1361 = vmatprep.subr.mxu0 0.0
    %1362 = vmatpush1.msra.mxu0 0.0
    %1363 = vmatprep.subr.mxu0 0.0
    %1364 = vmatpush1.msra.mxu0 0.0
    %1365 = vmatprep.subr.mxu0 0.0
    %1366 = vmatpush1.msra.mxu0 0.0
    %1367 = vmatprep.subr.mxu0 0.0
    %1368 = vmatpush1.msra.mxu0 0.0
    %1369 = vmatprep.subr.mxu0 0.0
    %1370 = vmatpush1.msra.mxu0 0.0
    %1371 = vmatprep.subr.mxu0 0.0
    %1372 = vmatpush1.msra.mxu0 0.0
    %1373 = vmatprep.subr.mxu0 0.0
    %1374 = vmatpush1.msra.mxu0 0.0
    %1375 = vmatprep.subr.mxu0 0.0
    %1376 = vmatpush1.msra.mxu0 0.0
    %1377 = vmatprep.subr.mxu0 0.0
    %1378 = vmatpush1.msra.mxu0 0.0
    %1379 = vmatprep.subr.mxu0 0.0
    %1380 = vmatpush1.msra.mxu0 0.0
    %1381 = vmatprep.subr.mxu0 0.0
    %1382 = vmatpush1.msra.mxu0 0.0
    %1383 = vmatprep.subr.mxu0 0.0
    %1384 = vmatpush1.msra.mxu0 0.0
    %1385 = vmatprep.subr.mxu0 0.0
    %1386 = vmatpush1.msra.mxu0 0.0
    %1387 = vmatprep.subr.mxu0 0.0
    %1388 = vmatpush1.msra.mxu0 0.0
    %1389 = vmatprep.subr.mxu0 0.0
    %1390 = vmatpush1.msra.mxu0 0.0
    %1391 = vmatprep.subr.mxu0 0.0
    %1392 = vmatpush1.msra.mxu0 0.0
    %1393 = vmatprep.subr.mxu0 0.0
    %1394 = vmatpush1.msra.mxu0 0.0
    %1395 = vmatprep.subr.mxu0 0.0
    %1396 = vmatpush1.msra.mxu0 0.0
    %1397 = vmatprep.subr.mxu0 0.0
    %1398 = vmatpush1.msra.mxu0 0.0
    %1399 = vmatprep.subr.mxu0 0.0
    %1400 = vmatpush1.msra.mxu0 0.0
    %1401 = vmatprep.subr.mxu0 0.0
    %1402 = vmatpush1.msra.mxu0 0.0
    %1403 = vmatprep.subr.mxu0 0.0
    %1404 = vmatpush1.msra.mxu0 0.0
    %1405 = vmatprep.subr.mxu0 0.0
    %1406 = vmatpush1.msra.mxu0 0.0
    %1407 = vmatprep.mubr.f32.mxu0 0.0
    %1408 = vmatmul.mubr.f32.gmra.mrb[0].mxu0 %v1338
    %v1409 = vpop.f32.mrb[0].mxu0
    %v1410 = vadd.f32 0.0, %v1409
    %v1411 = vpop.f32.mrb[0].mxu0
    %1412 = vmatprep.mubr.f32.mxu0 0.0
    %1413 = vmatmul.mubr.f32.gmra.mrb[0].mxu0 %v1341
    %v1414 = vpop.f32.mrb[0].mxu0
    %v1415 = vadd.f32 0.0, %v1414
    %v1416 = vpop.f32.mrb[0].mxu0
    %1417 = vdwg.mxu0
    %v1418 = vadd.f32 %v995, %v1410
    %v1419 = vadd.f32 %v1000, %v1415
    %1420 = vrot.lane.b32.xlu0 %v162, 104
    %v1421 = vpop.permute.xlu0 %1420
    %1422 = vrot.lane.b32.xlu0 %v162, 72
    %v1423 = vpop.permute.xlu0 %1422
    %v1424 = vsel %vm177, %v1421, 0
    %v1426 = vsel %vm177, %v1423, 0
    %1428 = vmatprep.subr.mxu0 0.0
    %1429 = vmatpush1.xpose.msra.mxu0 %v1426
    %1430 = vmatprep.subr.mxu0 0.0
    %1431 = vmatpush1.xpose.msra.mxu0 0.0
    %1432 = vmatprep.subr.mxu0 0.0
    %1433 = vmatpush1.xpose.msra.mxu0 0.0
    %1434 = vmatprep.subr.mxu0 0.0
    %1435 = vmatpush1.xpose.msra.mxu0 0.0
    %1436 = vmatprep.subr.mxu0 0.0
    %1437 = vmatpush1.xpose.msra.mxu0 0.0
    %1438 = vmatprep.subr.mxu0 0.0
    %1439 = vmatpush1.xpose.msra.mxu0 0.0
    %1440 = vmatprep.subr.mxu0 0.0
    %1441 = vmatpush1.xpose.msra.mxu0 0.0
    %1442 = vmatprep.subr.mxu0 0.0
    %1443 = vmatpush1.xpose.msra.mxu0 0.0
    %1444 = vmatprep.subr.mxu0 0.0
    %1445 = vmatpush1.xpose.msra.mxu0 0.0
    %1446 = vmatprep.subr.mxu0 0.0
    %1447 = vmatpush1.xpose.msra.mxu0 0.0
    %1448 = vmatprep.subr.mxu0 0.0
    %1449 = vmatpush1.xpose.msra.mxu0 0.0
    %1450 = vmatprep.subr.mxu0 0.0
    %1451 = vmatpush1.xpose.msra.mxu0 0.0
    %1452 = vmatprep.subr.mxu0 0.0
    %1453 = vmatpush1.xpose.msra.mxu0 0.0
    %1454 = vmatprep.subr.mxu0 0.0
    %1455 = vmatpush1.xpose.msra.mxu0 0.0
    %1456 = vmatprep.subr.mxu0 0.0
    %1457 = vmatpush1.xpose.msra.mxu0 0.0
    %1458 = vmatprep.subr.mxu0 0.0
    %1459 = vmatpush1.xpose.msra.mxu0 0.0
    %1460 = vmatprep.subr.mxu0 0.0
    %1461 = vmatpush1.xpose.msra.mxu0 0.0
    %1462 = vmatprep.subr.mxu0 0.0
    %1463 = vmatpush1.xpose.msra.mxu0 0.0
    %1464 = vmatprep.subr.mxu0 0.0
    %1465 = vmatpush1.xpose.msra.mxu0 0.0
    %1466 = vmatprep.subr.mxu0 0.0
    %1467 = vmatpush1.xpose.msra.mxu0 0.0
    %1468 = vmatprep.subr.mxu0 0.0
    %1469 = vmatpush1.xpose.msra.mxu0 0.0
    %1470 = vmatprep.subr.mxu0 0.0
    %1471 = vmatpush1.xpose.msra.mxu0 0.0
    %1472 = vmatprep.subr.mxu0 0.0
    %1473 = vmatpush1.xpose.msra.mxu0 0.0
    %1474 = vmatprep.subr.mxu0 0.0
    %1475 = vmatpush1.xpose.msra.mxu0 0.0
    %1476 = vmatprep.subr.mxu0 0.0
    %1477 = vmatpush1.xpose.msra.mxu0 0.0
    %1478 = vmatprep.subr.mxu0 0.0
    %1479 = vmatpush1.xpose.msra.mxu0 0.0
    %1480 = vmatprep.subr.mxu0 0.0
    %1481 = vmatpush1.xpose.msra.mxu0 0.0
    %1482 = vmatprep.subr.mxu0 0.0
    %1483 = vmatpush1.xpose.msra.mxu0 0.0
    %1484 = vmatprep.subr.mxu0 0.0
    %1485 = vmatpush1.xpose.msra.mxu0 0.0
    %1486 = vmatprep.subr.mxu0 0.0
    %1487 = vmatpush1.xpose.msra.mxu0 0.0
    %1488 = vmatprep.subr.mxu0 0.0
    %1489 = vmatpush1.xpose.msra.mxu0 0.0
    %1490 = vmatprep.subr.mxu0 0.0
    %1491 = vmatpush1.xpose.msra.mxu0 0.0
    %1492 = vmatprep.mubr.f32.mxu0 0.0
    %1493 = vmatmul.mubr.f32.gmra.mrb[0].mxu0 %v1424
    %v1494 = vpop.f32.mrb[0].mxu0
    %v1495 = vadd.f32 0.0, %v1494
    %v1496 = vpop.f32.mrb[0].mxu0
    %1497 = vdwg.mxu0
    %1498 = vrot.lane.b32.xlu0 %v167, 104
    %v1499 = vpop.permute.xlu0 %1498
    %1500 = vrot.lane.b32.xlu0 %v167, 72
    %v1501 = vpop.permute.xlu0 %1500
    %v1502 = vsel %vm177, %v1499, 0
    %v1504 = vsel %vm177, %v1501, 0
    %1506 = vmatprep.subr.mxu0 0.0
    %1507 = vmatpush1.xpose.msra.mxu0 %v1504
    %1508 = vmatprep.subr.mxu0 0.0
    %1509 = vmatpush1.xpose.msra.mxu0 0.0
    %1510 = vmatprep.subr.mxu0 0.0
    %1511 = vmatpush1.xpose.msra.mxu0 0.0
    %1512 = vmatprep.subr.mxu0 0.0
    %1513 = vmatpush1.xpose.msra.mxu0 0.0
    %1514 = vmatprep.subr.mxu0 0.0
    %1515 = vmatpush1.xpose.msra.mxu0 0.0
    %1516 = vmatprep.subr.mxu0 0.0
    %1517 = vmatpush1.xpose.msra.mxu0 0.0
    %1518 = vmatprep.subr.mxu0 0.0
    %1519 = vmatpush1.xpose.msra.mxu0 0.0
    %1520 = vmatprep.subr.mxu0 0.0
    %1521 = vmatpush1.xpose.msra.mxu0 0.0
    %1522 = vmatprep.subr.mxu0 0.0
    %1523 = vmatpush1.xpose.msra.mxu0 0.0
    %1524 = vmatprep.subr.mxu0 0.0
    %1525 = vmatpush1.xpose.msra.mxu0 0.0
    %1526 = vmatprep.subr.mxu0 0.0
    %1527 = vmatpush1.xpose.msra.mxu0 0.0
    %1528 = vmatprep.subr.mxu0 0.0
    %1529 = vmatpush1.xpose.msra.mxu0 0.0
    %1530 = vmatprep.subr.mxu0 0.0
    %1531 = vmatpush1.xpose.msra.mxu0 0.0
    %1532 = vmatprep.subr.mxu0 0.0
    %1533 = vmatpush1.xpose.msra.mxu0 0.0
    %1534 = vmatprep.subr.mxu0 0.0
    %1535 = vmatpush1.xpose.msra.mxu0 0.0
    %1536 = vmatprep.subr.mxu0 0.0
    %1537 = vmatpush1.xpose.msra.mxu0 0.0
    %1538 = vmatprep.subr.mxu0 0.0
    %1539 = vmatpush1.xpose.msra.mxu0 0.0
    %1540 = vmatprep.subr.mxu0 0.0
    %1541 = vmatpush1.xpose.msra.mxu0 0.0
    %1542 = vmatprep.subr.mxu0 0.0
    %1543 = vmatpush1.xpose.msra.mxu0 0.0
    %1544 = vmatprep.subr.mxu0 0.0
    %1545 = vmatpush1.xpose.msra.mxu0 0.0
    %1546 = vmatprep.subr.mxu0 0.0
    %1547 = vmatpush1.xpose.msra.mxu0 0.0
    %1548 = vmatprep.subr.mxu0 0.0
    %1549 = vmatpush1.xpose.msra.mxu0 0.0
    %1550 = vmatprep.subr.mxu0 0.0
    %1551 = vmatpush1.xpose.msra.mxu0 0.0
    %1552 = vmatprep.subr.mxu0 0.0
    %1553 = vmatpush1.xpose.msra.mxu0 0.0
    %1554 = vmatprep.subr.mxu0 0.0
    %1555 = vmatpush1.xpose.msra.mxu0 0.0
    %1556 = vmatprep.subr.mxu0 0.0
    %1557 = vmatpush1.xpose.msra.mxu0 0.0
    %1558 = vmatprep.subr.mxu0 0.0
    %1559 = vmatpush1.xpose.msra.mxu0 0.0
    %1560 = vmatprep.subr.mxu0 0.0
    %1561 = vmatpush1.xpose.msra.mxu0 0.0
    %1562 = vmatprep.subr.mxu0 0.0
    %1563 = vmatpush1.xpose.msra.mxu0 0.0
    %1564 = vmatprep.subr.mxu0 0.0
    %1565 = vmatpush1.xpose.msra.mxu0 0.0
    %1566 = vmatprep.subr.mxu0 0.0
    %1567 = vmatpush1.xpose.msra.mxu0 0.0
    %1568 = vmatprep.subr.mxu0 0.0
    %1569 = vmatpush1.xpose.msra.mxu0 0.0
    %1570 = vmatprep.mubr.f32.mxu0 0.0
    %1571 = vmatmul.mubr.f32.gmra.mrb[0].mxu0 %v1502
    %v1572 = vpop.f32.mrb[0].mxu0
    %v1573 = vadd.f32 0.0, %v1572
    %v1574 = vpop.f32.mrb[0].mxu0
    %1575 = vdwg.mxu0
    %v1576 = vmul.f32 %v1495, 0.35355338
    %v1577 = vmul.f32 %v1573, 0.35355338
    %v1578 = vadd.f32 %v1576, %v72
    %v1579 = vadd.f32 %v1577, %v76
    %v1580 = vsel %vm177, %v1578, -inf
    %1581 = vmax.xlane.f32.xlu0 %v1580
    %v1582 = vpop.xlane.xlu0 %1581
    %v1583 = vsel %vm177, %v1579, -inf
    %1584 = vmax.xlane.f32.xlu0 %v1583
    %v1585 = vpop.xlane.xlu0 %1584
    %v1586 = vsub.f32 %v1578, %v1582
    %v1587 = vsub.f32 %v1579, %v1585
    %v1588 = vmul.f32 %v1586, 1.442695
    %v1589 = vpow.pop %v1588
    %v1590 = vmul.f32 %v1587, 1.442695
    %v1591 = vpow.pop %v1590
    %v1592 = vsel %vm177, %v1589, 0.0
    %1593 = vadd.xlane.f32.xlu0 %v1592
    %v1594 = vpop.xlane.xlu0 %1593
    %v1595 = vsel %vm177, %v1591, 0.0
    %1596 = vadd.xlane.f32.xlu0 %v1595
    %v1597 = vpop.xlane.xlu0 %1596
    %v1598 = vrcp.pop %v1594
    %v1599 = vrcp.pop %v1597
    %v1600 = vmul.f32 %v1589, %v1598
    %v1601 = vmul.f32 %v1591, %v1599
    %1602 = vrot.lane.b32.xlu0 %v162, 40
    %v1603 = vpop.permute.xlu0 %1602
    %v1606 = vsel %vm177, %v1600, 0
    %1608 = vmatprep.subr.mxu0 0.0
    %1609 = vmatpush1.msra.mxu0 %v1603
    %1610 = vmatprep.subr.mxu0 0.0
    %1611 = vmatpush1.msra.mxu0 0.0
    %1612 = vmatprep.subr.mxu0 0.0
    %1613 = vmatpush1.msra.mxu0 0.0
    %1614 = vmatprep.subr.mxu0 0.0
    %1615 = vmatpush1.msra.mxu0 0.0
    %1616 = vmatprep.subr.mxu0 0.0
    %1617 = vmatpush1.msra.mxu0 0.0
    %1618 = vmatprep.subr.mxu0 0.0
    %1619 = vmatpush1.msra.mxu0 0.0
    %1620 = vmatprep.subr.mxu0 0.0
    %1621 = vmatpush1.msra.mxu0 0.0
    %1622 = vmatprep.subr.mxu0 0.0
    %1623 = vmatpush1.msra.mxu0 0.0
    %1624 = vmatprep.subr.mxu0 0.0
    %1625 = vmatpush1.msra.mxu0 0.0
    %1626 = vmatprep.subr.mxu0 0.0
    %1627 = vmatpush1.msra.mxu0 0.0
    %1628 = vmatprep.subr.mxu0 0.0
    %1629 = vmatpush1.msra.mxu0 0.0
    %1630 = vmatprep.subr.mxu0 0.0
    %1631 = vmatpush1.msra.mxu0 0.0
    %1632 = vmatprep.subr.mxu0 0.0
    %1633 = vmatpush1.msra.mxu0 0.0
    %1634 = vmatprep.subr.mxu0 0.0
    %1635 = vmatpush1.msra.mxu0 0.0
    %1636 = vmatprep.subr.mxu0 0.0
    %1637 = vmatpush1.msra.mxu0 0.0
    %1638 = vmatprep.subr.mxu0 0.0
    %1639 = vmatpush1.msra.mxu0 0.0
    %1640 = vmatprep.subr.mxu0 0.0
    %1641 = vmatpush1.msra.mxu0 0.0
    %1642 = vmatprep.subr.mxu0 0.0
    %1643 = vmatpush1.msra.mxu0 0.0
    %1644 = vmatprep.subr.mxu0 0.0
    %1645 = vmatpush1.msra.mxu0 0.0
    %1646 = vmatprep.subr.mxu0 0.0
    %1647 = vmatpush1.msra.mxu0 0.0
    %1648 = vmatprep.subr.mxu0 0.0
    %1649 = vmatpush1.msra.mxu0 0.0
    %1650 = vmatprep.subr.mxu0 0.0
    %1651 = vmatpush1.msra.mxu0 0.0
    %1652 = vmatprep.subr.mxu0 0.0
    %1653 = vmatpush1.msra.mxu0 0.0
    %1654 = vmatprep.subr.mxu0 0.0
    %1655 = vmatpush1.msra.mxu0 0.0
    %1656 = vmatprep.subr.mxu0 0.0
    %1657 = vmatpush1.msra.mxu0 0.0
    %1658 = vmatprep.subr.mxu0 0.0
    %1659 = vmatpush1.msra.mxu0 0.0
    %1660 = vmatprep.subr.mxu0 0.0
    %1661 = vmatpush1.msra.mxu0 0.0
    %1662 = vmatprep.subr.mxu0 0.0
    %1663 = vmatpush1.msra.mxu0 0.0
    %1664 = vmatprep.subr.mxu0 0.0
    %1665 = vmatpush1.msra.mxu0 0.0
    %1666 = vmatprep.subr.mxu0 0.0
    %1667 = vmatpush1.msra.mxu0 0.0
    %1668 = vmatprep.subr.mxu0 0.0
    %1669 = vmatpush1.msra.mxu0 0.0
    %1670 = vmatprep.subr.mxu0 0.0
    %1671 = vmatpush1.msra.mxu0 0.0
    %1672 = vmatprep.mubr.f32.mxu0 0.0
    %1673 = vmatmul.mubr.f32.gmra.mrb[0].mxu0 %v1606
    %v1674 = vpop.f32.mrb[0].mxu0
    %v1675 = vadd.f32 0.0, %v1674
    %v1676 = vpop.f32.mrb[0].mxu0
    %1677 = vdwg.mxu0
    %1678 = vrot.lane.b32.xlu0 %v167, 40
    %v1679 = vpop.permute.xlu0 %1678
    %v1682 = vsel %vm177, %v1601, 0
    %1684 = vmatprep.subr.mxu0 0.0
    %1685 = vmatpush1.msra.mxu0 %v1679
    %1686 = vmatprep.subr.mxu0 0.0
    %1687 = vmatpush1.msra.mxu0 0.0
    %1688 = vmatprep.subr.mxu0 0.0
    %1689 = vmatpush1.msra.mxu0 0.0
    %1690 = vmatprep.subr.mxu0 0.0
    %1691 = vmatpush1.msra.mxu0 0.0
    %1692 = vmatprep.subr.mxu0 0.0
    %1693 = vmatpush1.msra.mxu0 0.0
    %1694 = vmatprep.subr.mxu0 0.0
    %1695 = vmatpush1.msra.mxu0 0.0
    %1696 = vmatprep.subr.mxu0 0.0
    %1697 = vmatpush1.msra.mxu0 0.0
    %1698 = vmatprep.subr.mxu0 0.0
    %1699 = vmatpush1.msra.mxu0 0.0
    %1700 = vmatprep.subr.mxu0 0.0
    %1701 = vmatpush1.msra.mxu0 0.0
    %1702 = vmatprep.subr.mxu0 0.0
    %1703 = vmatpush1.msra.mxu0 0.0
    %1704 = vmatprep.subr.mxu0 0.0
    %1705 = vmatpush1.msra.mxu0 0.0
    %1706 = vmatprep.subr.mxu0 0.0
    %1707 = vmatpush1.msra.mxu0 0.0
    %1708 = vmatprep.subr.mxu0 0.0
    %1709 = vmatpush1.msra.mxu0 0.0
    %1710 = vmatprep.subr.mxu0 0.0
    %1711 = vmatpush1.msra.mxu0 0.0
    %1712 = vmatprep.subr.mxu0 0.0
    %1713 = vmatpush1.msra.mxu0 0.0
    %1714 = vmatprep.subr.mxu0 0.0
    %1715 = vmatpush1.msra.mxu0 0.0
    %1716 = vmatprep.subr.mxu0 0.0
    %1717 = vmatpush1.msra.mxu0 0.0
    %1718 = vmatprep.subr.mxu0 0.0
    %1719 = vmatpush1.msra.mxu0 0.0
    %1720 = vmatprep.subr.mxu0 0.0
    %1721 = vmatpush1.msra.mxu0 0.0
    %1722 = vmatprep.subr.mxu0 0.0
    %1723 = vmatpush1.msra.mxu0 0.0
    %1724 = vmatprep.subr.mxu0 0.0
    %1725 = vmatpush1.msra.mxu0 0.0
    %1726 = vmatprep.subr.mxu0 0.0
    %1727 = vmatpush1.msra.mxu0 0.0
    %1728 = vmatprep.subr.mxu0 0.0
    %1729 = vmatpush1.msra.mxu0 0.0
    %1730 = vmatprep.subr.mxu0 0.0
    %1731 = vmatpush1.msra.mxu0 0.0
    %1732 = vmatprep.subr.mxu0 0.0
    %1733 = vmatpush1.msra.mxu0 0.0
    %1734 = vmatprep.subr.mxu0 0.0
    %1735 = vmatpush1.msra.mxu0 0.0
    %1736 = vmatprep.subr.mxu0 0.0
    %1737 = vmatpush1.msra.mxu0 0.0
    %1738 = vmatprep.subr.mxu0 0.0
    %1739 = vmatpush1.msra.mxu0 0.0
    %1740 = vmatprep.subr.mxu0 0.0
    %1741 = vmatpush1.msra.mxu0 0.0
    %1742 = vmatprep.subr.mxu0 0.0
    %1743 = vmatpush1.msra.mxu0 0.0
    %1744 = vmatprep.subr.mxu0 0.0
    %1745 = vmatpush1.msra.mxu0 0.0
    %1746 = vmatprep.subr.mxu0 0.0
    %1747 = vmatpush1.msra.mxu0 0.0
    %1748 = vmatprep.mubr.f32.mxu0 0.0
    %1749 = vmatmul.mubr.f32.gmra.mrb[0].mxu0 %v1682
    %v1750 = vpop.f32.mrb[0].mxu0
    %v1751 = vadd.f32 0.0, %v1750
    %v1752 = vpop.f32.mrb[0].mxu0
    %1753 = vdwg.mxu0
    %v1755 = vsel %vm177, %v1675, 0
    %v1758 = vsel %vm177, %v1751, 0
    %1760 = vmatprep.subr.mxu0 0.0
    %1761 = vmatpush1.msra.mxu0 %v173
    %1762 = vmatprep.subr.mxu0 0.0
    %1763 = vmatpush1.msra.mxu0 0.0
    %1764 = vmatprep.subr.mxu0 0.0
    %1765 = vmatpush1.msra.mxu0 0.0
    %1766 = vmatprep.subr.mxu0 0.0
    %1767 = vmatpush1.msra.mxu0 0.0
    %1768 = vmatprep.subr.mxu0 0.0
    %1769 = vmatpush1.msra.mxu0 0.0
    %1770 = vmatprep.subr.mxu0 0.0
    %1771 = vmatpush1.msra.mxu0 0.0
    %1772 = vmatprep.subr.mxu0 0.0
    %1773 = vmatpush1.msra.mxu0 0.0
    %1774 = vmatprep.subr.mxu0 0.0
    %1775 = vmatpush1.msra.mxu0 0.0
    %1776 = vmatprep.subr.mxu0 0.0
    %1777 = vmatpush1.msra.mxu0 0.0
    %1778 = vmatprep.subr.mxu0 0.0
    %1779 = vmatpush1.msra.mxu0 0.0
    %1780 = vmatprep.subr.mxu0 0.0
    %1781 = vmatpush1.msra.mxu0 0.0
    %1782 = vmatprep.subr.mxu0 0.0
    %1783 = vmatpush1.msra.mxu0 0.0
    %1784 = vmatprep.subr.mxu0 0.0
    %1785 = vmatpush1.msra.mxu0 0.0
    %1786 = vmatprep.subr.mxu0 0.0
    %1787 = vmatpush1.msra.mxu0 0.0
    %1788 = vmatprep.subr.mxu0 0.0
    %1789 = vmatpush1.msra.mxu0 0.0
    %1790 = vmatprep.subr.mxu0 0.0
    %1791 = vmatpush1.msra.mxu0 0.0
    %1792 = vmatprep.subr.mxu0 0.0
    %1793 = vmatpush1.msra.mxu0 0.0
    %1794 = vmatprep.subr.mxu0 0.0
    %1795 = vmatpush1.msra.mxu0 0.0
    %1796 = vmatprep.subr.mxu0 0.0
    %1797 = vmatpush1.msra.mxu0 0.0
    %1798 = vmatprep.subr.mxu0 0.0
    %1799 = vmatpush1.msra.mxu0 0.0
    %1800 = vmatprep.subr.mxu0 0.0
    %1801 = vmatpush1.msra.mxu0 0.0
    %1802 = vmatprep.subr.mxu0 0.0
    %1803 = vmatpush1.msra.mxu0 0.0
    %1804 = vmatprep.subr.mxu0 0.0
    %1805 = vmatpush1.msra.mxu0 0.0
    %1806 = vmatprep.subr.mxu0 0.0
    %1807 = vmatpush1.msra.mxu0 0.0
    %1808 = vmatprep.subr.mxu0 0.0
    %1809 = vmatpush1.msra.mxu0 0.0
    %1810 = vmatprep.subr.mxu0 0.0
    %1811 = vmatpush1.msra.mxu0 0.0
    %1812 = vmatprep.subr.mxu0 0.0
    %1813 = vmatpush1.msra.mxu0 0.0
    %1814 = vmatprep.subr.mxu0 0.0
    %1815 = vmatpush1.msra.mxu0 0.0
    %1816 = vmatprep.subr.mxu0 0.0
    %1817 = vmatpush1.msra.mxu0 0.0
    %1818 = vmatprep.subr.mxu0 0.0
    %1819 = vmatpush1.msra.mxu0 0.0
    %1820 = vmatprep.subr.mxu0 0.0
    %1821 = vmatpush1.msra.mxu0 0.0
    %1822 = vmatprep.subr.mxu0 0.0
    %1823 = vmatpush1.msra.mxu0 0.0
    %1824 = vmatprep.mubr.f32.mxu0 0.0
    %1825 = vmatmul.mubr.f32.gmra.mrb[0].mxu0 %v1755
    %v1826 = vpop.f32.mrb[0].mxu0
    %v1827 = vadd.f32 0.0, %v1826
    %v1828 = vpop.f32.mrb[0].mxu0
    %1829 = vmatprep.mubr.f32.mxu0 0.0
    %1830 = vmatmul.mubr.f32.gmra.mrb[0].mxu0 %v1758
    %v1831 = vpop.f32.mrb[0].mxu0
    %v1832 = vadd.f32 0.0, %v1831
    %v1833 = vpop.f32.mrb[0].mxu0
    %1834 = vdwg.mxu0
    %v1835 = vadd.f32 %v1418, %v1827
    %v1836 = vadd.f32 %v1419, %v1832
    %v1837 = vlaneseq
    %v1838 = vshrl.u32 %v1837, 7
    %v1839 = vsub.s32 1, %v1838
    %v1840 = vrot.slane %v79, %v1839
    %v1841 = vadd.f32 %v1835, %v1840
    %v1842 = vadd.f32 %v1836, %v1840
    %v1843 = vadd.f32 %v63, %v1841
    %v1844 = vadd.f32 %v64, %v1842
    %v1845 = vsel %vm88, %v1843, 0.0
    %1846 = vadd.xlane.f32.xlu0 %v1845
    %v1847 = vpop.xlane.xlu0 %1846
    %v1848 = vsel %vm88, %v1844, 0.0
    %1849 = vadd.xlane.f32.xlu0 %v1848
    %v1850 = vpop.xlane.xlu0 %1849
    %v1851 = vrcp.pop 32.0
    %v1852 = vmul.f32 %v1847, %v1851
    %v1853 = vmul.f32 %v1850, %v1851
    %v1854 = vsub.f32 %v1843, %v1852
    %v1855 = vsub.f32 %v1844, %v1853
    %v1856 = vmul.f32 %v1854, %v1854
    %v1857 = vmul.f32 %v1855, %v1855
    %v1858 = vsel %vm88, %v1856, 0.0
    %1859 = vadd.xlane.f32.xlu0 %v1858
    %v1860 = vpop.xlane.xlu0 %1859
    %v1861 = vsel %vm88, %v1857, 0.0
    %1862 = vadd.xlane.f32.xlu0 %v1861
    %v1863 = vpop.xlane.xlu0 %1862
    %v1864 = vmul.f32 %v1860, %v1851
    %v1865 = vmul.f32 %v1863, %v1851
    %v1866 = vadd.f32 %v1864, 1e-05
    %v1867 = vadd.f32 %v1865, 1e-05
    %v1868 = vrsqrt.pop %v1866
    %v1869 = vrsqrt.pop %v1867
    %v1870 = vmul.f32 %v1854, %v1868
    %v1871 = vmul.f32 %v1855, %v1869
    %v1872 = vlaneseq
    %v1873 = vshrl.u32 %v1872, 7
    %v1874 = vsub.s32 4, %v1873
    %v1875 = vrot.slane %v79, %v1874
    %v1876 = vmul.f32 %v1870, %v1875
    %v1877 = vmul.f32 %v1871, %v1875
    %v1878 = vlaneseq
    %v1879 = vshrl.u32 %v1878, 7
    %v1880 = vsub.s32 5, %v1879
    %v1881 = vrot.slane %v79, %v1880
    %v1882 = vadd.f32 %v1876, %v1881
    %v1883 = vadd.f32 %v1877, %v1881
    %v1884 = vld [vmem:[%s4] sm:$0xff]
    %v1885 = vld [vmem:[%s4 + $0x8] sm:$0xff]
    %v1886 = vld [vmem:[%s4 + $0x10] sm:$0xff]
    %v1887 = vld [vmem:[%s4 + $0x18] sm:$0xff]
    %v1888 = vlaneseq
    %v1889 = vshrl.u32 %v1888, 7
    %v1890 = vsub.s32 2, %v1889
    %v1891 = vrot.slane %v79, %v1890
    %v1893 = vsel %vm88, %v1882, 0
    %v1896 = vsel %vm88, %v1883, 0
    %1898 = vmatprep.subr.mxu0 0.0
    %1899 = vmatpush1.msra.mxu0 %v1884
    %1900 = vmatprep.subr.mxu0 0.0
    %1901 = vmatpush1.msra.mxu0 %v1885
    %1902 = vmatprep.subr.mxu0 0.0
    %1903 = vmatpush1.msra.mxu0 %v1886
    %1904 = vmatprep.subr.mxu0 0.0
    %1905 = vmatpush1.msra.mxu0 %v1887
    %1906 = vmatprep.subr.mxu0 0.0
    %1907 = vmatpush1.msra.mxu0 0.0
    %1908 = vmatprep.subr.mxu0 0.0
    %1909 = vmatpush1.msra.mxu0 0.0
    %1910 = vmatprep.subr.mxu0 0.0
    %1911 = vmatpush1.msra.mxu0 0.0
    %1912 = vmatprep.subr.mxu0 0.0
    %1913 = vmatpush1.msra.mxu0 0.0
    %1914 = vmatprep.subr.mxu0 0.0
    %1915 = vmatpush1.msra.mxu0 0.0
    %1916 = vmatprep.subr.mxu0 0.0
    %1917 = vmatpush1.msra.mxu0 0.0
    %1918 = vmatprep.subr.mxu0 0.0
    %1919 = vmatpush1.msra.mxu0 0.0
    %1920 = vmatprep.subr.mxu0 0.0
    %1921 = vmatpush1.msra.mxu0 0.0
    %1922 = vmatprep.subr.mxu0 0.0
    %1923 = vmatpush1.msra.mxu0 0.0
    %1924 = vmatprep.subr.mxu0 0.0
    %1925 = vmatpush1.msra.mxu0 0.0
    %1926 = vmatprep.subr.mxu0 0.0
    %1927 = vmatpush1.msra.mxu0 0.0
    %1928 = vmatprep.subr.mxu0 0.0
    %1929 = vmatpush1.msra.mxu0 0.0
    %1930 = vmatprep.subr.mxu0 0.0
    %1931 = vmatpush1.msra.mxu0 0.0
    %1932 = vmatprep.subr.mxu0 0.0
    %1933 = vmatpush1.msra.mxu0 0.0
    %1934 = vmatprep.subr.mxu0 0.0
    %1935 = vmatpush1.msra.mxu0 0.0
    %1936 = vmatprep.subr.mxu0 0.0
    %1937 = vmatpush1.msra.mxu0 0.0
    %1938 = vmatprep.subr.mxu0 0.0
    %1939 = vmatpush1.msra.mxu0 0.0
    %1940 = vmatprep.subr.mxu0 0.0
    %1941 = vmatpush1.msra.mxu0 0.0
    %1942 = vmatprep.subr.mxu0 0.0
    %1943 = vmatpush1.msra.mxu0 0.0
    %1944 = vmatprep.subr.mxu0 0.0
    %1945 = vmatpush1.msra.mxu0 0.0
    %1946 = vmatprep.subr.mxu0 0.0
    %1947 = vmatpush1.msra.mxu0 0.0
    %1948 = vmatprep.subr.mxu0 0.0
    %1949 = vmatpush1.msra.mxu0 0.0
    %1950 = vmatprep.subr.mxu0 0.0
    %1951 = vmatpush1.msra.mxu0 0.0
    %1952 = vmatprep.subr.mxu0 0.0
    %1953 = vmatpush1.msra.mxu0 0.0
    %1954 = vmatprep.subr.mxu0 0.0
    %1955 = vmatpush1.msra.mxu0 0.0
    %1956 = vmatprep.subr.mxu0 0.0
    %1957 = vmatpush1.msra.mxu0 0.0
    %1958 = vmatprep.subr.mxu0 0.0
    %1959 = vmatpush1.msra.mxu0 0.0
    %1960 = vmatprep.subr.mxu0 0.0
    %1961 = vmatpush1.msra.mxu0 0.0
    %1962 = vmatprep.mubr.f32.mxu0 0.0
    %1963 = vmatmul.mubr.f32.gmra.mrb[0].mxu0 %v1893
    %v1964 = vpop.f32.mrb[0].mxu0
    %v1965 = vadd.f32 %v1891, %v1964
    %v1966 = vpop.f32.mrb[0].mxu0
    %1967 = vmatprep.mubr.f32.mxu0 0.0
    %1968 = vmatmul.mubr.f32.gmra.mrb[0].mxu0 %v1896
    %v1969 = vpop.f32.mrb[0].mxu0
    %v1970 = vadd.f32 %v1891, %v1969
    %v1971 = vpop.f32.mrb[0].mxu0
    %1972 = vdwg.mxu0
    %v1973 = vmax.f32 %v1965, 0.0
    %v1974 = vmax.f32 %v1970, 0.0
    %v1975 = vld [vmem:[%s5] sm:$0xff]
    %v1976 = vld [vmem:[%s5 + $0x8] sm:$0xff]
    %v1977 = vld [vmem:[%s5 + $0x10] sm:$0xff]
    %v1978 = vld [vmem:[%s5 + $0x18] sm:$0xff]
    %v1979 = vld [vmem:[%s5 + $0x20] sm:$0xff]
    %v1980 = vld [vmem:[%s5 + $0x28] sm:$0xff]
    %v1981 = vld [vmem:[%s5 + $0x30] sm:$0xff]
    %v1982 = vld [vmem:[%s5 + $0x38] sm:$0xff]
    %v1983 = vlaneseq
    %v1984 = vshrl.u32 %v1983, 7
    %v1985 = vsub.s32 3, %v1984
    %v1986 = vrot.slane %v79, %v1985
    %vm1987 = vcmask 523264
    %v1989 = vsel %vm1987, %v1973, 0
    %v1992 = vsel %vm1987, %v1974, 0
    %1994 = vmatprep.subr.mxu0 0.0
    %1995 = vmatpush1.msra.mxu0 %v1975
    %1996 = vmatprep.subr.mxu0 0.0
    %1997 = vmatpush1.msra.mxu0 %v1976
    %1998 = vmatprep.subr.mxu0 0.0
    %1999 = vmatpush1.msra.mxu0 %v1977
    %2000 = vmatprep.subr.mxu0 0.0
    %2001 = vmatpush1.msra.mxu0 %v1978
    %2002 = vmatprep.subr.mxu0 0.0
    %2003 = vmatpush1.msra.mxu0 %v1979
    %2004 = vmatprep.subr.mxu0 0.0
    %2005 = vmatpush1.msra.mxu0 %v1980
    %2006 = vmatprep.subr.mxu0 0.0
    %2007 = vmatpush1.msra.mxu0 %v1981
    %2008 = vmatprep.subr.mxu0 0.0
    %2009 = vmatpush1.msra.mxu0 %v1982
    %2010 = vmatprep.subr.mxu0 0.0
    %2011 = vmatpush1.msra.mxu0 0.0
    %2012 = vmatprep.subr.mxu0 0.0
    %2013 = vmatpush1.msra.mxu0 0.0
    %2014 = vmatprep.subr.mxu0 0.0
    %2015 = vmatpush1.msra.mxu0 0.0
    %2016 = vmatprep.subr.mxu0 0.0
    %2017 = vmatpush1.msra.mxu0 0.0
    %2018 = vmatprep.subr.mxu0 0.0
    %2019 = vmatpush1.msra.mxu0 0.0
    %2020 = vmatprep.subr.mxu0 0.0
    %2021 = vmatpush1.msra.mxu0 0.0
    %2022 = vmatprep.subr.mxu0 0.0
    %2023 = vmatpush1.msra.mxu0 0.0
    %2024 = vmatprep.subr.mxu0 0.0
    %2025 = vmatpush1.msra.mxu0 0.0
    %2026 = vmatprep.subr.mxu0 0.0
    %2027 = vmatpush1.msra.mxu0 0.0
    %2028 = vmatprep.subr.mxu0 0.0
    %2029 = vmatpush1.msra.mxu0 0.0
    %2030 = vmatprep.subr.mxu0 0.0
    %2031 = vmatpush1.msra.mxu0 0.0
    %2032 = vmatprep.subr.mxu0 0.0
    %2033 = vmatpush1.msra.mxu0 0.0
    %2034 = vmatprep.subr.mxu0 0.0
    %2035 = vmatpush1.msra.mxu0 0.0
    %2036 = vmatprep.subr.mxu0 0.0
    %2037 = vmatpush1.msra.mxu0 0.0
    %2038 = vmatprep.subr.mxu0 0.0
    %2039 = vmatpush1.msra.mxu0 0.0
    %2040 = vmatprep.subr.mxu0 0.0
    %2041 = vmatpush1.msra.mxu0 0.0
    %2042 = vmatprep.subr.mxu0 0.0
    %2043 = vmatpush1.msra.mxu0 0.0
    %2044 = vmatprep.subr.mxu0 0.0
    %2045 = vmatpush1.msra.mxu0 0.0
    %2046 = vmatprep.subr.mxu0 0.0
    %2047 = vmatpush1.msra.mxu0 0.0
    %2048 = vmatprep.subr.mxu0 0.0
    %2049 = vmatpush1.msra.mxu0 0.0
    %2050 = vmatprep.subr.mxu0 0.0
    %2051 = vmatpush1.msra.mxu0 0.0
    %2052 = vmatprep.subr.mxu0 0.0
    %2053 = vmatpush1.msra.mxu0 0.0
    %2054 = vmatprep.subr.mxu0 0.0
    %2055 = vmatpush1.msra.mxu0 0.0
    %2056 = vmatprep.subr.mxu0 0.0
    %2057 = vmatpush1.msra.mxu0 0.0
    %2058 = vmatprep.mubr.f32.mxu0 0.0
    %2059 = vmatmul.mubr.f32.gmra.mrb[0].mxu0 %v1989
    %v2060 = vpop.f32.mrb[0].mxu0
    %v2061 = vadd.f32 %v1986, %v2060
    %v2062 = vpop.f32.mrb[0].mxu0
    %2063 = vmatprep.mubr.f32.mxu0 0.0
    %2064 = vmatmul.mubr.f32.gmra.mrb[0].mxu0 %v1992
    %v2065 = vpop.f32.mrb[0].mxu0
    %v2066 = vadd.f32 %v1986, %v2065
    %v2067 = vpop.f32.mrb[0].mxu0
    %2068 = vdwg.mxu0
    %v2069 = vadd.f32 %v1882, %v2061
    %v2070 = vadd.f32 %v1883, %v2066
    %v2071 = vsel %vm88, %v2069, 0.0
    %2072 = vadd.xlane.f32.xlu0 %v2071
    %v2073 = vpop.xlane.xlu0 %2072
    %v2074 = vsel %vm88, %v2070, 0.0
    %2075 = vadd.xlane.f32.xlu0 %v2074
    %v2076 = vpop.xlane.xlu0 %2075
    %v2077 = vmul.f32 %v2073, %v1851
    %v2078 = vmul.f32 %v2076, %v1851
    %v2079 = vsub.f32 %v2069, %v2077
    %v2080 = vsub.f32 %v2070, %v2078
    %v2081 = vmul.f32 %v2079, %v2079
    %v2082 = vmul.f32 %v2080, %v2080
    %v2083 = vsel %vm88, %v2081, 0.0
    %2084 = vadd.xlane.f32.xlu0 %v2083
    %v2085 = vpop.xlane.xlu0 %2084
    %v2086 = vsel %vm88, %v2082, 0.0
    %2087 = vadd.xlane.f32.xlu0 %v2086
    %v2088 = vpop.xlane.xlu0 %2087
    %v2089 = vmul.f32 %v2085, %v1851
    %v2090 = vmul.f32 %v2088, %v1851
    %v2091 = vadd.f32 %v2089, 1e-05
    %v2092 = vadd.f32 %v2090, 1e-05
    %v2093 = vrsqrt.pop %v2091
    %v2094 = vrsqrt.pop %v2092
    %v2095 = vmul.f32 %v2079, %v2093
    %v2096 = vmul.f32 %v2080, %v2094
    %v2097 = vlaneseq
    %v2098 = vshrl.u32 %v2097, 7
    %v2099 = vsub.s32 6, %v2098
    %v2100 = vrot.slane %v79, %v2099
    %v2101 = vmul.f32 %v2095, %v2100
    %v2102 = vmul.f32 %v2096, %v2100
    %v2103 = vlaneseq
    %v2104 = vshrl.u32 %v2103, 7
    %v2105 = vsub.s32 7, %v2104
    %v2106 = vrot.slane %v79, %v2105
    %v2107 = vadd.f32 %v2101, %v2106
    %v2108 = vadd.f32 %v2102, %v2106
    %s2109 = scalar_lea.vmem %s6, 8
    %v2110 = vld [vmem:[%s2109] sm:$0xff]
    %s2111 = scalar_lea.vmem %s2, 32
    %v2112 = vld [vmem:[%s2111] sm:$0xff]
    %v2113 = vld [vmem:[%s2111 + $0x8] sm:$0xff]
    %v2114 = vld [vmem:[%s2111 + $0x10] sm:$0xff]
    %v2115 = vld [vmem:[%s2111 + $0x18] sm:$0xff]
    %v2116 = vlaneseq
    %v2117 = vshrl.u32 %v2116, 7
    %v2118 = vsub.s32 0, %v2117
    %v2119 = vrot.slane %v2110, %v2118
    %v2121 = vsel %vm88, %v2107, 0
    %v2124 = vsel %vm88, %v2108, 0
    %2126 = vmatprep.subr.mxu0 0.0
    %2127 = vmatpush1.msra.mxu0 %v2112
    %2128 = vmatprep.subr.mxu0 0.0
    %2129 = vmatpush1.msra.mxu0 %v2113
    %2130 = vmatprep.subr.mxu0 0.0
    %2131 = vmatpush1.msra.mxu0 %v2114
    %2132 = vmatprep.subr.mxu0 0.0
    %2133 = vmatpush1.msra.mxu0 %v2115
    %2134 = vmatprep.subr.mxu0 0.0
    %2135 = vmatpush1.msra.mxu0 0.0
    %2136 = vmatprep.subr.mxu0 0.0
    %2137 = vmatpush1.msra.mxu0 0.0
    %2138 = vmatprep.subr.mxu0 0.0
    %2139 = vmatpush1.msra.mxu0 0.0
    %2140 = vmatprep.subr.mxu0 0.0
    %2141 = vmatpush1.msra.mxu0 0.0
    %2142 = vmatprep.subr.mxu0 0.0
    %2143 = vmatpush1.msra.mxu0 0.0
    %2144 = vmatprep.subr.mxu0 0.0
    %2145 = vmatpush1.msra.mxu0 0.0
    %2146 = vmatprep.subr.mxu0 0.0
    %2147 = vmatpush1.msra.mxu0 0.0
    %2148 = vmatprep.subr.mxu0 0.0
    %2149 = vmatpush1.msra.mxu0 0.0
    %2150 = vmatprep.subr.mxu0 0.0
    %2151 = vmatpush1.msra.mxu0 0.0
    %2152 = vmatprep.subr.mxu0 0.0
    %2153 = vmatpush1.msra.mxu0 0.0
    %2154 = vmatprep.subr.mxu0 0.0
    %2155 = vmatpush1.msra.mxu0 0.0
    %2156 = vmatprep.subr.mxu0 0.0
    %2157 = vmatpush1.msra.mxu0 0.0
    %2158 = vmatprep.subr.mxu0 0.0
    %2159 = vmatpush1.msra.mxu0 0.0
    %2160 = vmatprep.subr.mxu0 0.0
    %2161 = vmatpush1.msra.mxu0 0.0
    %2162 = vmatprep.subr.mxu0 0.0
    %2163 = vmatpush1.msra.mxu0 0.0
    %2164 = vmatprep.subr.mxu0 0.0
    %2165 = vmatpush1.msra.mxu0 0.0
    %2166 = vmatprep.subr.mxu0 0.0
    %2167 = vmatpush1.msra.mxu0 0.0
    %2168 = vmatprep.subr.mxu0 0.0
    %2169 = vmatpush1.msra.mxu0 0.0
    %2170 = vmatprep.subr.mxu0 0.0
    %2171 = vmatpush1.msra.mxu0 0.0
    %2172 = vmatprep.subr.mxu0 0.0
    %2173 = vmatpush1.msra.mxu0 0.0
    %2174 = vmatprep.subr.mxu0 0.0
    %2175 = vmatpush1.msra.mxu0 0.0
    %2176 = vmatprep.subr.mxu0 0.0
    %2177 = vmatpush1.msra.mxu0 0.0
    %2178 = vmatprep.subr.mxu0 0.0
    %2179 = vmatpush1.msra.mxu0 0.0
    %2180 = vmatprep.subr.mxu0 0.0
    %2181 = vmatpush1.msra.mxu0 0.0
    %2182 = vmatprep.subr.mxu0 0.0
    %2183 = vmatpush1.msra.mxu0 0.0
    %2184 = vmatprep.subr.mxu0 0.0
    %2185 = vmatpush1.msra.mxu0 0.0
    %2186 = vmatprep.subr.mxu0 0.0
    %2187 = vmatpush1.msra.mxu0 0.0
    %2188 = vmatprep.subr.mxu0 0.0
    %2189 = vmatpush1.msra.mxu0 0.0
    %2190 = vmatprep.mubr.f32.mxu0 0.0
    %2191 = vmatmul.mubr.f32.gmra.mrb[0].mxu0 %v2121
    %v2192 = vpop.f32.mrb[0].mxu0
    %v2193 = vadd.f32 %v2119, %v2192
    %v2194 = vpop.f32.mrb[0].mxu0
    %2195 = vmatprep.mubr.f32.mxu0 0.0
    %2196 = vmatmul.mubr.f32.gmra.mrb[0].mxu0 %v2124
    %v2197 = vpop.f32.mrb[0].mxu0
    %v2198 = vadd.f32 %v2119, %v2197
    %v2199 = vpop.f32.mrb[0].mxu0
    %2200 = vdwg.mxu0
    %s2201 = scalar_lea.vmem %s3, 32
    %v2202 = vld [vmem:[%s2201] sm:$0xff]
    %v2203 = vld [vmem:[%s2201 + $0x8] sm:$0xff]
    %v2204 = vld [vmem:[%s2201 + $0x10] sm:$0xff]
    %v2205 = vld [vmem:[%s2201 + $0x18] sm:$0xff]
    %2207 = vrot.lane.b32.xlu0 %v2193, 96
    %v2208 = vpop.permute.xlu0 %2207
    %v2209 = vsel %vm177, %v2193, 0
    %v2211 = vsel %vm177, %v2208, 0
    %2213 = vmatprep.subr.mxu0 0.0
    %2214 = vmatpush1.xpose.msra.mxu0 %v2211
    %2215 = vmatprep.subr.mxu0 0.0
    %2216 = vmatpush1.xpose.msra.mxu0 0.0
    %2217 = vmatprep.subr.mxu0 0.0
    %2218 = vmatpush1.xpose.msra.mxu0 0.0
    %2219 = vmatprep.subr.mxu0 0.0
    %2220 = vmatpush1.xpose.msra.mxu0 0.0
    %2221 = vmatprep.subr.mxu0 0.0
    %2222 = vmatpush1.xpose.msra.mxu0 0.0
    %2223 = vmatprep.subr.mxu0 0.0
    %2224 = vmatpush1.xpose.msra.mxu0 0.0
    %2225 = vmatprep.subr.mxu0 0.0
    %2226 = vmatpush1.xpose.msra.mxu0 0.0
    %2227 = vmatprep.subr.mxu0 0.0
    %2228 = vmatpush1.xpose.msra.mxu0 0.0
    %2229 = vmatprep.subr.mxu0 0.0
    %2230 = vmatpush1.xpose.msra.mxu0 0.0
    %2231 = vmatprep.subr.mxu0 0.0
    %2232 = vmatpush1.xpose.msra.mxu0 0.0
    %2233 = vmatprep.subr.mxu0 0.0
    %2234 = vmatpush1.xpose.msra.mxu0 0.0
    %2235 = vmatprep.subr.mxu0 0.0
    %2236 = vmatpush1.xpose.msra.mxu0 0.0
    %2237 = vmatprep.subr.mxu0 0.0
    %2238 = vmatpush1.xpose.msra.mxu0 0.0
    %2239 = vmatprep.subr.mxu0 0.0
    %2240 = vmatpush1.xpose.msra.mxu0 0.0
    %2241 = vmatprep.subr.mxu0 0.0
    %2242 = vmatpush1.xpose.msra.mxu0 0.0
    %2243 = vmatprep.subr.mxu0 0.0
    %2244 = vmatpush1.xpose.msra.mxu0 0.0
    %2245 = vmatprep.subr.mxu0 0.0
    %2246 = vmatpush1.xpose.msra.mxu0 0.0
    %2247 = vmatprep.subr.mxu0 0.0
    %2248 = vmatpush1.xpose.msra.mxu0 0.0
    %2249 = vmatprep.subr.mxu0 0.0
    %2250 = vmatpush1.xpose.msra.mxu0 0.0
    %2251 = vmatprep.subr.mxu0 0.0
    %2252 = vmatpush1.xpose.msra.mxu0 0.0
    %2253 = vmatprep.subr.mxu0 0.0
    %2254 = vmatpush1.xpose.msra.mxu0 0.0
    %2255 = vmatprep.subr.mxu0 0.0
    %2256 = vmatpush1.xpose.msra.mxu0 0.0
    %2257 = vmatprep.subr.mxu0 0.0
    %2258 = vmatpush1.xpose.msra.mxu0 0.0
    %2259 = vmatprep.subr.mxu0 0.0
    %2260 = vmatpush1.xpose.msra.mxu0 0.0
    %2261 = vmatprep.subr.mxu0 0.0
    %2262 = vmatpush1.xpose.msra.mxu0 0.0
    %2263 = vmatprep.subr.mxu0 0.0
    %2264 = vmatpush1.xpose.msra.mxu0 0.0
    %2265 = vmatprep.subr.mxu0 0.0
    %2266 = vmatpush1.xpose.msra.mxu0 0.0
    %2267 = vmatprep.subr.mxu0 0.0
    %2268 = vmatpush1.xpose.msra.mxu0 0.0
    %2269 = vmatprep.subr.mxu0 0.0
    %2270 = vmatpush1.xpose.msra.mxu0 0.0
    %2271 = vmatprep.subr.mxu0 0.0
    %2272 = vmatpush1.xpose.msra.mxu0 0.0
    %2273 = vmatprep.subr.mxu0 0.0
    %2274 = vmatpush1.xpose.msra.mxu0 0.0
    %2275 = vmatprep.subr.mxu0 0.0
    %2276 = vmatpush1.xpose.msra.mxu0 0.0
    %2277 = vmatprep.mubr.f32.mxu0 0.0
    %2278 = vmatmul.mubr.f32.gmra.mrb[0].mxu0 %v2209
    %v2279 = vpop.f32.mrb[0].mxu0
    %v2280 = vadd.f32 0.0, %v2279
    %v2281 = vpop.f32.mrb[0].mxu0
    %2282 = vdwg.mxu0
    %2284 = vrot.lane.b32.xlu0 %v2198, 96
    %v2285 = vpop.permute.xlu0 %2284
    %v2286 = vsel %vm177, %v2198, 0
    %v2288 = vsel %vm177, %v2285, 0
    %2290 = vmatprep.subr.mxu0 0.0
    %2291 = vmatpush1.xpose.msra.mxu0 %v2288
    %2292 = vmatprep.subr.mxu0 0.0
    %2293 = vmatpush1.xpose.msra.mxu0 0.0
    %2294 = vmatprep.subr.mxu0 0.0
    %2295 = vmatpush1.xpose.msra.mxu0 0.0
    %2296 = vmatprep.subr.mxu0 0.0
    %2297 = vmatpush1.xpose.msra.mxu0 0.0
    %2298 = vmatprep.subr.mxu0 0.0
    %2299 = vmatpush1.xpose.msra.mxu0 0.0
    %2300 = vmatprep.subr.mxu0 0.0
    %2301 = vmatpush1.xpose.msra.mxu0 0.0
    %2302 = vmatprep.subr.mxu0 0.0
    %2303 = vmatpush1.xpose.msra.mxu0 0.0
    %2304 = vmatprep.subr.mxu0 0.0
    %2305 = vmatpush1.xpose.msra.mxu0 0.0
    %2306 = vmatprep.subr.mxu0 0.0
    %2307 = vmatpush1.xpose.msra.mxu0 0.0
    %2308 = vmatprep.subr.mxu0 0.0
    %2309 = vmatpush1.xpose.msra.mxu0 0.0
    %2310 = vmatprep.subr.mxu0 0.0
    %2311 = vmatpush1.xpose.msra.mxu0 0.0
    %2312 = vmatprep.subr.mxu0 0.0
    %2313 = vmatpush1.xpose.msra.mxu0 0.0
    %2314 = vmatprep.subr.mxu0 0.0
    %2315 = vmatpush1.xpose.msra.mxu0 0.0
    %2316 = vmatprep.subr.mxu0 0.0
    %2317 = vmatpush1.xpose.msra.mxu0 0.0
    %2318 = vmatprep.subr.mxu0 0.0
    %2319 = vmatpush1.xpose.msra.mxu0 0.0
    %2320 = vmatprep.subr.mxu0 0.0
    %2321 = vmatpush1.xpose.msra.mxu0 0.0
    %2322 = vmatprep.subr.mxu0 0.0
    %2323 = vmatpush1.xpose.msra.mxu0 0.0
    %2324 = vmatprep.subr.mxu0 0.0
    %2325 = vmatpush1.xpose.msra.mxu0 0.0
    %2326 = vmatprep.subr.mxu0 0.0
    %2327 = vmatpush1.xpose.msra.mxu0 0.0
    %2328 = vmatprep.subr.mxu0 0.0
    %2329 = vmatpush1.xpose.msra.mxu0 0.0
    %2330 = vmatprep.subr.mxu0 0.0
    %2331 = vmatpush1.xpose.msra.mxu0 0.0
    %2332 = vmatprep.subr.mxu0 0.0
    %2333 = vmatpush1.xpose.msra.mxu0 0.0
    %2334 = vmatprep.subr.mxu0 0.0
    %2335 = vmatpush1.xpose.msra.mxu0 0.0
    %2336 = vmatprep.subr.mxu0 0.0
    %2337 = vmatpush1.xpose.msra.mxu0 0.0
    %2338 = vmatprep.subr.mxu0 0.0
    %2339 = vmatpush1.xpose.msra.mxu0 0.0
    %2340 = vmatprep.subr.mxu0 0.0
    %2341 = vmatpush1.xpose.msra.mxu0 0.0
    %2342 = vmatprep.subr.mxu0 0.0
    %2343 = vmatpush1.xpose.msra.mxu0 0.0
    %2344 = vmatprep.subr.mxu0 0.0
    %2345 = vmatpush1.xpose.msra.mxu0 0.0
    %2346 = vmatprep.subr.mxu0 0.0
    %2347 = vmatpush1.xpose.msra.mxu0 0.0
    %2348 = vmatprep.subr.mxu0 0.0
    %2349 = vmatpush1.xpose.msra.mxu0 0.0
    %2350 = vmatprep.subr.mxu0 0.0
    %2351 = vmatpush1.xpose.msra.mxu0 0.0
    %2352 = vmatprep.subr.mxu0 0.0
    %2353 = vmatpush1.xpose.msra.mxu0 0.0
    %2354 = vmatprep.mubr.f32.mxu0 0.0
    %2355 = vmatmul.mubr.f32.gmra.mrb[0].mxu0 %v2286
    %v2356 = vpop.f32.mrb[0].mxu0
    %v2357 = vadd.f32 0.0, %v2356
    %v2358 = vpop.f32.mrb[0].mxu0
    %2359 = vdwg.mxu0
    %v2360 = vmul.f32 %v2280, 0.35355338
    %v2361 = vmul.f32 %v2357, 0.35355338
    %v2362 = vadd.f32 %v2360, %v72
    %v2363 = vadd.f32 %v2361, %v76
    %v2364 = vsel %vm177, %v2362, -inf
    %2365 = vmax.xlane.f32.xlu0 %v2364
    %v2366 = vpop.xlane.xlu0 %2365
    %v2367 = vsel %vm177, %v2363, -inf
    %2368 = vmax.xlane.f32.xlu0 %v2367
    %v2369 = vpop.xlane.xlu0 %2368
    %v2370 = vsub.f32 %v2362, %v2366
    %v2371 = vsub.f32 %v2363, %v2369
    %v2372 = vmul.f32 %v2370, 1.442695
    %v2373 = vpow.pop %v2372
    %v2374 = vmul.f32 %v2371, 1.442695
    %v2375 = vpow.pop %v2374
    %v2376 = vsel %vm177, %v2373, 0.0
    %2377 = vadd.xlane.f32.xlu0 %v2376
    %v2378 = vpop.xlane.xlu0 %2377
    %v2379 = vsel %vm177, %v2375, 0.0
    %2380 = vadd.xlane.f32.xlu0 %v2379
    %v2381 = vpop.xlane.xlu0 %2380
    %v2382 = vrcp.pop %v2378
    %v2383 = vrcp.pop %v2381
    %v2384 = vmul.f32 %v2373, %v2382
    %v2385 = vmul.f32 %v2375, %v2383
    %2386 = vrot.lane.b32.xlu0 %v2193, 64
    %v2387 = vpop.permute.xlu0 %2386
    %v2390 = vsel %vm177, %v2384, 0
    %2392 = vmatprep.subr.mxu0 0.0
    %2393 = vmatpush1.msra.mxu0 %v2387
    %2394 = vmatprep.subr.mxu0 0.0
    %2395 = vmatpush1.msra.mxu0 0.0
    %2396 = vmatprep.subr.mxu0 0.0
    %2397 = vmatpush1.msra.mxu0 0.0
    %2398 = vmatprep.subr.mxu0 0.0
    %2399 = vmatpush1.msra.mxu0 0.0
    %2400 = vmatprep.subr.mxu0 0.0
    %2401 = vmatpush1.msra.mxu0 0.0
    %2402 = vmatprep.subr.mxu0 0.0
    %2403 = vmatpush1.msra.mxu0 0.0
    %2404 = vmatprep.subr.mxu0 0.0
    %2405 = vmatpush1.msra.mxu0 0.0
    %2406 = vmatprep.subr.mxu0 0.0
    %2407 = vmatpush1.msra.mxu0 0.0
    %2408 = vmatprep.subr.mxu0 0.0
    %2409 = vmatpush1.msra.mxu0 0.0
    %2410 = vmatprep.subr.mxu0 0.0
    %2411 = vmatpush1.msra.mxu0 0.0
    %2412 = vmatprep.subr.mxu0 0.0
    %2413 = vmatpush1.msra.mxu0 0.0
    %2414 = vmatprep.subr.mxu0 0.0
    %2415 = vmatpush1.msra.mxu0 0.0
    %2416 = vmatprep.subr.mxu0 0.0
    %2417 = vmatpush1.msra.mxu0 0.0
    %2418 = vmatprep.subr.mxu0 0.0
    %2419 = vmatpush1.msra.mxu0 0.0
    %2420 = vmatprep.subr.mxu0 0.0
    %2421 = vmatpush1.msra.mxu0 0.0
    %2422 = vmatprep.subr.mxu0 0.0
    %2423 = vmatpush1.msra.mxu0 0.0
    %2424 = vmatprep.subr.mxu0 0.0
    %2425 = vmatpush1.msra.mxu0 0.0
    %2426 = vmatprep.subr.mxu0 0.0
    %2427 = vmatpush1.msra.mxu0 0.0
    %2428 = vmatprep.subr.mxu0 0.0
    %2429 = vmatpush1.msra.mxu0 0.0
    %2430 = vmatprep.subr.mxu0 0.0
    %2431 = vmatpush1.msra.mxu0 0.0
    %2432 = vmatprep.subr.mxu0 0.0
    %2433 = vmatpush1.msra.mxu0 0.0
    %2434 = vmatprep.subr.mxu0 0.0
    %2435 = vmatpush1.msra.mxu0 0.0
    %2436 = vmatprep.subr.mxu0 0.0
    %2437 = vmatpush1.msra.mxu0 0.0
    %2438 = vmatprep.subr.mxu0 0.0
    %2439 = vmatpush1.msra.mxu0 0.0
    %2440 = vmatprep.subr.mxu0 0.0
    %2441 = vmatpush1.msra.mxu0 0.0
    %2442 = vmatprep.subr.mxu0 0.0
    %2443 = vmatpush1.msra.mxu0 0.0
    %2444 = vmatprep.subr.mxu0 0.0
    %2445 = vmatpush1.msra.mxu0 0.0
    %2446 = vmatprep.subr.mxu0 0.0
    %2447 = vmatpush1.msra.mxu0 0.0
    %2448 = vmatprep.subr.mxu0 0.0
    %2449 = vmatpush1.msra.mxu0 0.0
    %2450 = vmatprep.subr.mxu0 0.0
    %2451 = vmatpush1.msra.mxu0 0.0
    %2452 = vmatprep.subr.mxu0 0.0
    %2453 = vmatpush1.msra.mxu0 0.0
    %2454 = vmatprep.subr.mxu0 0.0
    %2455 = vmatpush1.msra.mxu0 0.0
    %2456 = vmatprep.mubr.f32.mxu0 0.0
    %2457 = vmatmul.mubr.f32.gmra.mrb[0].mxu0 %v2390
    %v2458 = vpop.f32.mrb[0].mxu0
    %v2459 = vadd.f32 0.0, %v2458
    %v2460 = vpop.f32.mrb[0].mxu0
    %2461 = vdwg.mxu0
    %2462 = vrot.lane.b32.xlu0 %v2198, 64
    %v2463 = vpop.permute.xlu0 %2462
    %v2466 = vsel %vm177, %v2385, 0
    %2468 = vmatprep.subr.mxu0 0.0
    %2469 = vmatpush1.msra.mxu0 %v2463
    %2470 = vmatprep.subr.mxu0 0.0
    %2471 = vmatpush1.msra.mxu0 0.0
    %2472 = vmatprep.subr.mxu0 0.0
    %2473 = vmatpush1.msra.mxu0 0.0
    %2474 = vmatprep.subr.mxu0 0.0
    %2475 = vmatpush1.msra.mxu0 0.0
    %2476 = vmatprep.subr.mxu0 0.0
    %2477 = vmatpush1.msra.mxu0 0.0
    %2478 = vmatprep.subr.mxu0 0.0
    %2479 = vmatpush1.msra.mxu0 0.0
    %2480 = vmatprep.subr.mxu0 0.0
    %2481 = vmatpush1.msra.mxu0 0.0
    %2482 = vmatprep.subr.mxu0 0.0
    %2483 = vmatpush1.msra.mxu0 0.0
    %2484 = vmatprep.subr.mxu0 0.0
    %2485 = vmatpush1.msra.mxu0 0.0
    %2486 = vmatprep.subr.mxu0 0.0
    %2487 = vmatpush1.msra.mxu0 0.0
    %2488 = vmatprep.subr.mxu0 0.0
    %2489 = vmatpush1.msra.mxu0 0.0
    %2490 = vmatprep.subr.mxu0 0.0
    %2491 = vmatpush1.msra.mxu0 0.0
    %2492 = vmatprep.subr.mxu0 0.0
    %2493 = vmatpush1.msra.mxu0 0.0
    %2494 = vmatprep.subr.mxu0 0.0
    %2495 = vmatpush1.msra.mxu0 0.0
    %2496 = vmatprep.subr.mxu0 0.0
    %2497 = vmatpush1.msra.mxu0 0.0
    %2498 = vmatprep.subr.mxu0 0.0
    %2499 = vmatpush1.msra.mxu0 0.0
    %2500 = vmatprep.subr.mxu0 0.0
    %2501 = vmatpush1.msra.mxu0 0.0
    %2502 = vmatprep.subr.mxu0 0.0
    %2503 = vmatpush1.msra.mxu0 0.0
    %2504 = vmatprep.subr.mxu0 0.0
    %2505 = vmatpush1.msra.mxu0 0.0
    %2506 = vmatprep.subr.mxu0 0.0
    %2507 = vmatpush1.msra.mxu0 0.0
    %2508 = vmatprep.subr.mxu0 0.0
    %2509 = vmatpush1.msra.mxu0 0.0
    %2510 = vmatprep.subr.mxu0 0.0
    %2511 = vmatpush1.msra.mxu0 0.0
    %2512 = vmatprep.subr.mxu0 0.0
    %2513 = vmatpush1.msra.mxu0 0.0
    %2514 = vmatprep.subr.mxu0 0.0
    %2515 = vmatpush1.msra.mxu0 0.0
    %2516 = vmatprep.subr.mxu0 0.0
    %2517 = vmatpush1.msra.mxu0 0.0
    %2518 = vmatprep.subr.mxu0 0.0
    %2519 = vmatpush1.msra.mxu0 0.0
    %2520 = vmatprep.subr.mxu0 0.0
    %2521 = vmatpush1.msra.mxu0 0.0
    %2522 = vmatprep.subr.mxu0 0.0
    %2523 = vmatpush1.msra.mxu0 0.0
    %2524 = vmatprep.subr.mxu0 0.0
    %2525 = vmatpush1.msra.mxu0 0.0
    %2526 = vmatprep.subr.mxu0 0.0
    %2527 = vmatpush1.msra.mxu0 0.0
    %2528 = vmatprep.subr.mxu0 0.0
    %2529 = vmatpush1.msra.mxu0 0.0
    %2530 = vmatprep.subr.mxu0 0.0
    %2531 = vmatpush1.msra.mxu0 0.0
    %2532 = vmatprep.mubr.f32.mxu0 0.0
    %2533 = vmatmul.mubr.f32.gmra.mrb[0].mxu0 %v2466
    %v2534 = vpop.f32.mrb[0].mxu0
    %v2535 = vadd.f32 0.0, %v2534
    %v2536 = vpop.f32.mrb[0].mxu0
    %2537 = vdwg.mxu0
    %2538 = vrot.lane.b32.xlu0 %v2193, 120
    %v2539 = vpop.permute.xlu0 %2538
    %2540 = vrot.lane.b32.xlu0 %v2193, 88
    %v2541 = vpop.permute.xlu0 %2540
    %v2542 = vsel %vm177, %v2539, 0
    %v2544 = vsel %vm177, %v2541, 0
    %2546 = vmatprep.subr.mxu0 0.0
    %2547 = vmatpush1.xpose.msra.mxu0 %v2544
    %2548 = vmatprep.subr.mxu0 0.0
    %2549 = vmatpush1.xpose.msra.mxu0 0.0
    %2550 = vmatprep.subr.mxu0 0.0
    %2551 = vmatpush1.xpose.msra.mxu0 0.0
    %2552 = vmatprep.subr.mxu0 0.0
    %2553 = vmatpush1.xpose.msra.mxu0 0.0
    %2554 = vmatprep.subr.mxu0 0.0
    %2555 = vmatpush1.xpose.msra.mxu0 0.0
    %2556 = vmatprep.subr.mxu0 0.0
    %2557 = vmatpush1.xpose.msra.mxu0 0.0
    %2558 = vmatprep.subr.mxu0 0.0
    %2559 = vmatpush1.xpose.msra.mxu0 0.0
    %2560 = vmatprep.subr.mxu0 0.0
    %2561 = vmatpush1.xpose.msra.mxu0 0.0
    %2562 = vmatprep.subr.mxu0 0.0
    %2563 = vmatpush1.xpose.msra.mxu0 0.0
    %2564 = vmatprep.subr.mxu0 0.0
    %2565 = vmatpush1.xpose.msra.mxu0 0.0
    %2566 = vmatprep.subr.mxu0 0.0
    %2567 = vmatpush1.xpose.msra.mxu0 0.0
    %2568 = vmatprep.subr.mxu0 0.0
    %2569 = vmatpush1.xpose.msra.mxu0 0.0
    %2570 = vmatprep.subr.mxu0 0.0
    %2571 = vmatpush1.xpose.msra.mxu0 0.0
    %2572 = vmatprep.subr.mxu0 0.0
    %2573 = vmatpush1.xpose.msra.mxu0 0.0
    %2574 = vmatprep.subr.mxu0 0.0
    %2575 = vmatpush1.xpose.msra.mxu0 0.0
    %2576 = vmatprep.subr.mxu0 0.0
    %2577 = vmatpush1.xpose.msra.mxu0 0.0
    %2578 = vmatprep.subr.mxu0 0.0
    %2579 = vmatpush1.xpose.msra.mxu0 0.0
    %2580 = vmatprep.subr.mxu0 0.0
    %2581 = vmatpush1.xpose.msra.mxu0 0.0
    %2582 = vmatprep.subr.mxu0 0.0
    %2583 = vmatpush1.xpose.msra.mxu0 0.0
    %2584 = vmatprep.subr.mxu0 0.0
    %2585 = vmatpush1.xpose.msra.mxu0 0.0
    %2586 = vmatprep.subr.mxu0 0.0
    %2587 = vmatpush1.xpose.msra.mxu0 0.0
    %2588 = vmatprep.subr.mxu0 0.0
    %2589 = vmatpush1.xpose.msra.mxu0 0.0
    %2590 = vmatprep.subr.mxu0 0.0
    %2591 = vmatpush1.xpose.msra.mxu0 0.0
    %2592 = vmatprep.subr.mxu0 0.0
    %2593 = vmatpush1.xpose.msra.mxu0 0.0
    %2594 = vmatprep.subr.mxu0 0.0
    %2595 = vmatpush1.xpose.msra.mxu0 0.0
    %2596 = vmatprep.subr.mxu0 0.0
    %2597 = vmatpush1.xpose.msra.mxu0 0.0
    %2598 = vmatprep.subr.mxu0 0.0
    %2599 = vmatpush1.xpose.msra.mxu0 0.0
    %2600 = vmatprep.subr.mxu0 0.0
    %2601 = vmatpush1.xpose.msra.mxu0 0.0
    %2602 = vmatprep.subr.mxu0 0.0
    %2603 = vmatpush1.xpose.msra.mxu0 0.0
    %2604 = vmatprep.subr.mxu0 0.0
    %2605 = vmatpush1.xpose.msra.mxu0 0.0
    %2606 = vmatprep.subr.mxu0 0.0
    %2607 = vmatpush1.xpose.msra.mxu0 0.0
    %2608 = vmatprep.subr.mxu0 0.0
    %2609 = vmatpush1.xpose.msra.mxu0 0.0
    %2610 = vmatprep.mubr.f32.mxu0 0.0
    %2611 = vmatmul.mubr.f32.gmra.mrb[0].mxu0 %v2542
    %v2612 = vpop.f32.mrb[0].mxu0
    %v2613 = vadd.f32 0.0, %v2612
    %v2614 = vpop.f32.mrb[0].mxu0
    %2615 = vdwg.mxu0
    %2616 = vrot.lane.b32.xlu0 %v2198, 120
    %v2617 = vpop.permute.xlu0 %2616
    %2618 = vrot.lane.b32.xlu0 %v2198, 88
    %v2619 = vpop.permute.xlu0 %2618
    %v2620 = vsel %vm177, %v2617, 0
    %v2622 = vsel %vm177, %v2619, 0
    %2624 = vmatprep.subr.mxu0 0.0
    %2625 = vmatpush1.xpose.msra.mxu0 %v2622
    %2626 = vmatprep.subr.mxu0 0.0
    %2627 = vmatpush1.xpose.msra.mxu0 0.0
    %2628 = vmatprep.subr.mxu0 0.0
    %2629 = vmatpush1.xpose.msra.mxu0 0.0
    %2630 = vmatprep.subr.mxu0 0.0
    %2631 = vmatpush1.xpose.msra.mxu0 0.0
    %2632 = vmatprep.subr.mxu0 0.0
    %2633 = vmatpush1.xpose.msra.mxu0 0.0
    %2634 = vmatprep.subr.mxu0 0.0
    %2635 = vmatpush1.xpose.msra.mxu0 0.0
    %2636 = vmatprep.subr.mxu0 0.0
    %2637 = vmatpush1.xpose.msra.mxu0 0.0
    %2638 = vmatprep.subr.mxu0 0.0
    %2639 = vmatpush1.xpose.msra.mxu0 0.0
    %2640 = vmatprep.subr.mxu0 0.0
    %2641 = vmatpush1.xpose.msra.mxu0 0.0
    %2642 = vmatprep.subr.mxu0 0.0
    %2643 = vmatpush1.xpose.msra.mxu0 0.0
    %2644 = vmatprep.subr.mxu0 0.0
    %2645 = vmatpush1.xpose.msra.mxu0 0.0
    %2646 = vmatprep.subr.mxu0 0.0
    %2647 = vmatpush1.xpose.msra.mxu0 0.0
    %2648 = vmatprep.subr.mxu0 0.0
    %2649 = vmatpush1.xpose.msra.mxu0 0.0
    %2650 = vmatprep.subr.mxu0 0.0
    %2651 = vmatpush1.xpose.msra.mxu0 0.0
    %2652 = vmatprep.subr.mxu0 0.0
    %2653 = vmatpush1.xpose.msra.mxu0 0.0
    %2654 = vmatprep.subr.mxu0 0.0
    %2655 = vmatpush1.xpose.msra.mxu0 0.0
    %2656 = vmatprep.subr.mxu0 0.0
    %2657 = vmatpush1.xpose.msra.mxu0 0.0
    %2658 = vmatprep.subr.mxu0 0.0
    %2659 = vmatpush1.xpose.msra.mxu0 0.0
    %2660 = vmatprep.subr.mxu0 0.0
    %2661 = vmatpush1.xpose.msra.mxu0 0.0
    %2662 = vmatprep.subr.mxu0 0.0
    %2663 = vmatpush1.xpose.msra.mxu0 0.0
    %2664 = vmatprep.subr.mxu0 0.0
    %2665 = vmatpush1.xpose.msra.mxu0 0.0
    %2666 = vmatprep.subr.mxu0 0.0
    %2667 = vmatpush1.xpose.msra.mxu0 0.0
    %2668 = vmatprep.subr.mxu0 0.0
    %2669 = vmatpush1.xpose.msra.mxu0 0.0
    %2670 = vmatprep.subr.mxu0 0.0
    %2671 = vmatpush1.xpose.msra.mxu0 0.0
    %2672 = vmatprep.subr.mxu0 0.0
    %2673 = vmatpush1.xpose.msra.mxu0 0.0
    %2674 = vmatprep.subr.mxu0 0.0
    %2675 = vmatpush1.xpose.msra.mxu0 0.0
    %2676 = vmatprep.subr.mxu0 0.0
    %2677 = vmatpush1.xpose.msra.mxu0 0.0
    %2678 = vmatprep.subr.mxu0 0.0
    %2679 = vmatpush1.xpose.msra.mxu0 0.0
    %2680 = vmatprep.subr.mxu0 0.0
    %2681 = vmatpush1.xpose.msra.mxu0 0.0
    %2682 = vmatprep.subr.mxu0 0.0
    %2683 = vmatpush1.xpose.msra.mxu0 0.0
    %2684 = vmatprep.subr.mxu0 0.0
    %2685 = vmatpush1.xpose.msra.mxu0 0.0
    %2686 = vmatprep.subr.mxu0 0.0
    %2687 = vmatpush1.xpose.msra.mxu0 0.0
    %2688 = vmatprep.mubr.f32.mxu0 0.0
    %2689 = vmatmul.mubr.f32.gmra.mrb[0].mxu0 %v2620
    %v2690 = vpop.f32.mrb[0].mxu0
    %v2691 = vadd.f32 0.0, %v2690
    %v2692 = vpop.f32.mrb[0].mxu0
    %2693 = vdwg.mxu0
    %v2694 = vmul.f32 %v2613, 0.35355338
    %v2695 = vmul.f32 %v2691, 0.35355338
    %v2696 = vadd.f32 %v2694, %v72
    %v2697 = vadd.f32 %v2695, %v76
    %v2698 = vsel %vm177, %v2696, -inf
    %2699 = vmax.xlane.f32.xlu0 %v2698
    %v2700 = vpop.xlane.xlu0 %2699
    %v2701 = vsel %vm177, %v2697, -inf
    %2702 = vmax.xlane.f32.xlu0 %v2701
    %v2703 = vpop.xlane.xlu0 %2702
    %v2704 = vsub.f32 %v2696, %v2700
    %v2705 = vsub.f32 %v2697, %v2703
    %v2706 = vmul.f32 %v2704, 1.442695
    %v2707 = vpow.pop %v2706
    %v2708 = vmul.f32 %v2705, 1.442695
    %v2709 = vpow.pop %v2708
    %v2710 = vsel %vm177, %v2707, 0.0
    %2711 = vadd.xlane.f32.xlu0 %v2710
    %v2712 = vpop.xlane.xlu0 %2711
    %v2713 = vsel %vm177, %v2709, 0.0
    %2714 = vadd.xlane.f32.xlu0 %v2713
    %v2715 = vpop.xlane.xlu0 %2714
    %v2716 = vrcp.pop %v2712
    %v2717 = vrcp.pop %v2715
    %v2718 = vmul.f32 %v2707, %v2716
    %v2719 = vmul.f32 %v2709, %v2717
    %2720 = vrot.lane.b32.xlu0 %v2193, 56
    %v2721 = vpop.permute.xlu0 %2720
    %v2724 = vsel %vm177, %v2718, 0
    %2726 = vmatprep.subr.mxu0 0.0
    %2727 = vmatpush1.msra.mxu0 %v2721
    %2728 = vmatprep.subr.mxu0 0.0
    %2729 = vmatpush1.msra.mxu0 0.0
    %2730 = vmatprep.subr.mxu0 0.0
    %2731 = vmatpush1.msra.mxu0 0.0
    %2732 = vmatprep.subr.mxu0 0.0
    %2733 = vmatpush1.msra.mxu0 0.0
    %2734 = vmatprep.subr.mxu0 0.0
    %2735 = vmatpush1.msra.mxu0 0.0
    %2736 = vmatprep.subr.mxu0 0.0
    %2737 = vmatpush1.msra.mxu0 0.0
    %2738 = vmatprep.subr.mxu0 0.0
    %2739 = vmatpush1.msra.mxu0 0.0
    %2740 = vmatprep.subr.mxu0 0.0
    %2741 = vmatpush1.msra.mxu0 0.0
    %2742 = vmatprep.subr.mxu0 0.0
    %2743 = vmatpush1.msra.mxu0 0.0
    %2744 = vmatprep.subr.mxu0 0.0
    %2745 = vmatpush1.msra.mxu0 0.0
    %2746 = vmatprep.subr.mxu0 0.0
    %2747 = vmatpush1.msra.mxu0 0.0
    %2748 = vmatprep.subr.mxu0 0.0
    %2749 = vmatpush1.msra.mxu0 0.0
    %2750 = vmatprep.subr.mxu0 0.0
    %2751 = vmatpush1.msra.mxu0 0.0
    %2752 = vmatprep.subr.mxu0 0.0
    %2753 = vmatpush1.msra.mxu0 0.0
    %2754 = vmatprep.subr.mxu0 0.0
    %2755 = vmatpush1.msra.mxu0 0.0
    %2756 = vmatprep.subr.mxu0 0.0
    %2757 = vmatpush1.msra.mxu0 0.0
    %2758 = vmatprep.subr.mxu0 0.0
    %2759 = vmatpush1.msra.mxu0 0.0
    %2760 = vmatprep.subr.mxu0 0.0
    %2761 = vmatpush1.msra.mxu0 0.0
    %2762 = vmatprep.subr.mxu0 0.0
    %2763 = vmatpush1.msra.mxu0 0.0
    %2764 = vmatprep.subr.mxu0 0.0
    %2765 = vmatpush1.msra.mxu0 0.0
    %2766 = vmatprep.subr.mxu0 0.0
    %2767 = vmatpush1.msra.mxu0 0.0
    %2768 = vmatprep.subr.mxu0 0.0
    %2769 = vmatpush1.msra.mxu0 0.0
    %2770 = vmatprep.subr.mxu0 0.0
    %2771 = vmatpush1.msra.mxu0 0.0
    %2772 = vmatprep.subr.mxu0 0.0
    %2773 = vmatpush1.msra.mxu0 0.0
    %2774 = vmatprep.subr.mxu0 0.0
    %2775 = vmatpush1.msra.mxu0 0.0
    %2776 = vmatprep.subr.mxu0 0.0
    %2777 = vmatpush1.msra.mxu0 0.0
    %2778 = vmatprep.subr.mxu0 0.0
    %2779 = vmatpush1.msra.mxu0 0.0
    %2780 = vmatprep.subr.mxu0 0.0
    %2781 = vmatpush1.msra.mxu0 0.0
    %2782 = vmatprep.subr.mxu0 0.0
    %2783 = vmatpush1.msra.mxu0 0.0
    %2784 = vmatprep.subr.mxu0 0.0
    %2785 = vmatpush1.msra.mxu0 0.0
    %2786 = vmatprep.subr.mxu0 0.0
    %2787 = vmatpush1.msra.mxu0 0.0
    %2788 = vmatprep.subr.mxu0 0.0
    %2789 = vmatpush1.msra.mxu0 0.0
    %2790 = vmatprep.mubr.f32.mxu0 0.0
    %2791 = vmatmul.mubr.f32.gmra.mrb[0].mxu0 %v2724
    %v2792 = vpop.f32.mrb[0].mxu0
    %v2793 = vadd.f32 0.0, %v2792
    %v2794 = vpop.f32.mrb[0].mxu0
    %2795 = vdwg.mxu0
    %2796 = vrot.lane.b32.xlu0 %v2198, 56
    %v2797 = vpop.permute.xlu0 %2796
    %v2800 = vsel %vm177, %v2719, 0
    %2802 = vmatprep.subr.mxu0 0.0
    %2803 = vmatpush1.msra.mxu0 %v2797
    %2804 = vmatprep.subr.mxu0 0.0
    %2805 = vmatpush1.msra.mxu0 0.0
    %2806 = vmatprep.subr.mxu0 0.0
    %2807 = vmatpush1.msra.mxu0 0.0
    %2808 = vmatprep.subr.mxu0 0.0
    %2809 = vmatpush1.msra.mxu0 0.0
    %2810 = vmatprep.subr.mxu0 0.0
    %2811 = vmatpush1.msra.mxu0 0.0
    %2812 = vmatprep.subr.mxu0 0.0
    %2813 = vmatpush1.msra.mxu0 0.0
    %2814 = vmatprep.subr.mxu0 0.0
    %2815 = vmatpush1.msra.mxu0 0.0
    %2816 = vmatprep.subr.mxu0 0.0
    %2817 = vmatpush1.msra.mxu0 0.0
    %2818 = vmatprep.subr.mxu0 0.0
    %2819 = vmatpush1.msra.mxu0 0.0
    %2820 = vmatprep.subr.mxu0 0.0
    %2821 = vmatpush1.msra.mxu0 0.0
    %2822 = vmatprep.subr.mxu0 0.0
    %2823 = vmatpush1.msra.mxu0 0.0
    %2824 = vmatprep.subr.mxu0 0.0
    %2825 = vmatpush1.msra.mxu0 0.0
    %2826 = vmatprep.subr.mxu0 0.0
    %2827 = vmatpush1.msra.mxu0 0.0
    %2828 = vmatprep.subr.mxu0 0.0
    %2829 = vmatpush1.msra.mxu0 0.0
    %2830 = vmatprep.subr.mxu0 0.0
    %2831 = vmatpush1.msra.mxu0 0.0
    %2832 = vmatprep.subr.mxu0 0.0
    %2833 = vmatpush1.msra.mxu0 0.0
    %2834 = vmatprep.subr.mxu0 0.0
    %2835 = vmatpush1.msra.mxu0 0.0
    %2836 = vmatprep.subr.mxu0 0.0
    %2837 = vmatpush1.msra.mxu0 0.0
    %2838 = vmatprep.subr.mxu0 0.0
    %2839 = vmatpush1.msra.mxu0 0.0
    %2840 = vmatprep.subr.mxu0 0.0
    %2841 = vmatpush1.msra.mxu0 0.0
    %2842 = vmatprep.subr.mxu0 0.0
    %2843 = vmatpush1.msra.mxu0 0.0
    %2844 = vmatprep.subr.mxu0 0.0
    %2845 = vmatpush1.msra.mxu0 0.0
    %2846 = vmatprep.subr.mxu0 0.0
    %2847 = vmatpush1.msra.mxu0 0.0
    %2848 = vmatprep.subr.mxu0 0.0
    %2849 = vmatpush1.msra.mxu0 0.0
    %2850 = vmatprep.subr.mxu0 0.0
    %2851 = vmatpush1.msra.mxu0 0.0
    %2852 = vmatprep.subr.mxu0 0.0
    %2853 = vmatpush1.msra.mxu0 0.0
    %2854 = vmatprep.subr.mxu0 0.0
    %2855 = vmatpush1.msra.mxu0 0.0
    %2856 = vmatprep.subr.mxu0 0.0
    %2857 = vmatpush1.msra.mxu0 0.0
    %2858 = vmatprep.subr.mxu0 0.0
    %2859 = vmatpush1.msra.mxu0 0.0
    %2860 = vmatprep.subr.mxu0 0.0
    %2861 = vmatpush1.msra.mxu0 0.0
    %2862 = vmatprep.subr.mxu0 0.0
    %2863 = vmatpush1.msra.mxu0 0.0
    %2864 = vmatprep.subr.mxu0 0.0
    %2865 = vmatpush1.msra.mxu0 0.0
    %2866 = vmatprep.mubr.f32.mxu0 0.0
    %2867 = vmatmul.mubr.f32.gmra.mrb[0].mxu0 %v2800
    %v2868 = vpop.f32.mrb[0].mxu0
    %v2869 = vadd.f32 0.0, %v2868
    %v2870 = vpop.f32.mrb[0].mxu0
    %2871 = vdwg.mxu0
    %v2873 = vsel %vm177, %v2793, 0
    %v2876 = vsel %vm177, %v2869, 0
    %2878 = vmatprep.subr.mxu0 0.0
    %2879 = vmatpush1.msra.mxu0 %v2203
    %2880 = vmatprep.subr.mxu0 0.0
    %2881 = vmatpush1.msra.mxu0 0.0
    %2882 = vmatprep.subr.mxu0 0.0
    %2883 = vmatpush1.msra.mxu0 0.0
    %2884 = vmatprep.subr.mxu0 0.0
    %2885 = vmatpush1.msra.mxu0 0.0
    %2886 = vmatprep.subr.mxu0 0.0
    %2887 = vmatpush1.msra.mxu0 0.0
    %2888 = vmatprep.subr.mxu0 0.0
    %2889 = vmatpush1.msra.mxu0 0.0
    %2890 = vmatprep.subr.mxu0 0.0
    %2891 = vmatpush1.msra.mxu0 0.0
    %2892 = vmatprep.subr.mxu0 0.0
    %2893 = vmatpush1.msra.mxu0 0.0
    %2894 = vmatprep.subr.mxu0 0.0
    %2895 = vmatpush1.msra.mxu0 0.0
    %2896 = vmatprep.subr.mxu0 0.0
    %2897 = vmatpush1.msra.mxu0 0.0
    %2898 = vmatprep.subr.mxu0 0.0
    %2899 = vmatpush1.msra.mxu0 0.0
    %2900 = vmatprep.subr.mxu0 0.0
    %2901 = vmatpush1.msra.mxu0 0.0
    %2902 = vmatprep.subr.mxu0 0.0
    %2903 = vmatpush1.msra.mxu0 0.0
    %2904 = vmatprep.subr.mxu0 0.0
    %2905 = vmatpush1.msra.mxu0 0.0
    %2906 = vmatprep.subr.mxu0 0.0
    %2907 = vmatpush1.msra.mxu0 0.0
    %2908 = vmatprep.subr.mxu0 0.0
    %2909 = vmatpush1.msra.mxu0 0.0
    %2910 = vmatprep.subr.mxu0 0.0
    %2911 = vmatpush1.msra.mxu0 0.0
    %2912 = vmatprep.subr.mxu0 0.0
    %2913 = vmatpush1.msra.mxu0 0.0
    %2914 = vmatprep.subr.mxu0 0.0
    %2915 = vmatpush1.msra.mxu0 0.0
    %2916 = vmatprep.subr.mxu0 0.0
    %2917 = vmatpush1.msra.mxu0 0.0
    %2918 = vmatprep.subr.mxu0 0.0
    %2919 = vmatpush1.msra.mxu0 0.0
    %2920 = vmatprep.subr.mxu0 0.0
    %2921 = vmatpush1.msra.mxu0 0.0
    %2922 = vmatprep.subr.mxu0 0.0
    %2923 = vmatpush1.msra.mxu0 0.0
    %2924 = vmatprep.subr.mxu0 0.0
    %2925 = vmatpush1.msra.mxu0 0.0
    %2926 = vmatprep.subr.mxu0 0.0
    %2927 = vmatpush1.msra.mxu0 0.0
    %2928 = vmatprep.subr.mxu0 0.0
    %2929 = vmatpush1.msra.mxu0 0.0
    %2930 = vmatprep.subr.mxu0 0.0
    %2931 = vmatpush1.msra.mxu0 0.0
    %2932 = vmatprep.subr.mxu0 0.0
    %2933 = vmatpush1.msra.mxu0 0.0
    %2934 = vmatprep.subr.mxu0 0.0
    %2935 = vmatpush1.msra.mxu0 0.0
    %2936 = vmatprep.subr.mxu0 0.0
    %2937 = vmatpush1.msra.mxu0 0.0
    %2938 = vmatprep.subr.mxu0 0.0
    %2939 = vmatpush1.msra.mxu0 0.0
    %2940 = vmatprep.subr.mxu0 0.0
    %2941 = vmatpush1.msra.mxu0 0.0
    %2942 = vmatprep.mubr.f32.mxu0 0.0
    %2943 = vmatmul.mubr.f32.gmra.mrb[0].mxu0 %v2873
    %v2944 = vpop.f32.mrb[0].mxu0
    %v2945 = vadd.f32 0.0, %v2944
    %v2946 = vpop.f32.mrb[0].mxu0
    %2947 = vmatprep.mubr.f32.mxu0 0.0
    %2948 = vmatmul.mubr.f32.gmra.mrb[0].mxu0 %v2876
    %v2949 = vpop.f32.mrb[0].mxu0
    %v2950 = vadd.f32 0.0, %v2949
    %v2951 = vpop.f32.mrb[0].mxu0
    %2952 = vdwg.mxu0
    %v2954 = vsel %vm177, %v2459, 0
    %v2957 = vsel %vm177, %v2535, 0
    %2959 = vmatprep.subr.mxu0 0.0
    %2960 = vmatpush1.msra.mxu0 %v2202
    %2961 = vmatprep.subr.mxu0 0.0
    %2962 = vmatpush1.msra.mxu0 0.0
    %2963 = vmatprep.subr.mxu0 0.0
    %2964 = vmatpush1.msra.mxu0 0.0
    %2965 = vmatprep.subr.mxu0 0.0
    %2966 = vmatpush1.msra.mxu0 0.0
    %2967 = vmatprep.subr.mxu0 0.0
    %2968 = vmatpush1.msra.mxu0 0.0
    %2969 = vmatprep.subr.mxu0 0.0
    %2970 = vmatpush1.msra.mxu0 0.0
    %2971 = vmatprep.subr.mxu0 0.0
    %2972 = vmatpush1.msra.mxu0 0.0
    %2973 = vmatprep.subr.mxu0 0.0
    %2974 = vmatpush1.msra.mxu0 0.0
    %2975 = vmatprep.subr.mxu0 0.0
    %2976 = vmatpush1.msra.mxu0 0.0
    %2977 = vmatprep.subr.mxu0 0.0
    %2978 = vmatpush1.msra.mxu0 0.0
    %2979 = vmatprep.subr.mxu0 0.0
    %2980 = vmatpush1.msra.mxu0 0.0
    %2981 = vmatprep.subr.mxu0 0.0
    %2982 = vmatpush1.msra.mxu0 0.0
    %2983 = vmatprep.subr.mxu0 0.0
    %2984 = vmatpush1.msra.mxu0 0.0
    %2985 = vmatprep.subr.mxu0 0.0
    %2986 = vmatpush1.msra.mxu0 0.0
    %2987 = vmatprep.subr.mxu0 0.0
    %2988 = vmatpush1.msra.mxu0 0.0
    %2989 = vmatprep.subr.mxu0 0.0
    %2990 = vmatpush1.msra.mxu0 0.0
    %2991 = vmatprep.subr.mxu0 0.0
    %2992 = vmatpush1.msra.mxu0 0.0
    %2993 = vmatprep.subr.mxu0 0.0
    %2994 = vmatpush1.msra.mxu0 0.0
    %2995 = vmatprep.subr.mxu0 0.0
    %2996 = vmatpush1.msra.mxu0 0.0
    %2997 = vmatprep.subr.mxu0 0.0
    %2998 = vmatpush1.msra.mxu0 0.0
    %2999 = vmatprep.subr.mxu0 0.0
    %3000 = vmatpush1.msra.mxu0 0.0
    %3001 = vmatprep.subr.mxu0 0.0
    %3002 = vmatpush1.msra.mxu0 0.0
    %3003 = vmatprep.subr.mxu0 0.0
    %3004 = vmatpush1.msra.mxu0 0.0
    %3005 = vmatprep.subr.mxu0 0.0
    %3006 = vmatpush1.msra.mxu0 0.0
    %3007 = vmatprep.subr.mxu0 0.0
    %3008 = vmatpush1.msra.mxu0 0.0
    %3009 = vmatprep.subr.mxu0 0.0
    %3010 = vmatpush1.msra.mxu0 0.0
    %3011 = vmatprep.subr.mxu0 0.0
    %3012 = vmatpush1.msra.mxu0 0.0
    %3013 = vmatprep.subr.mxu0 0.0
    %3014 = vmatpush1.msra.mxu0 0.0
    %3015 = vmatprep.subr.mxu0 0.0
    %3016 = vmatpush1.msra.mxu0 0.0
    %3017 = vmatprep.subr.mxu0 0.0
    %3018 = vmatpush1.msra.mxu0 0.0
    %3019 = vmatprep.subr.mxu0 0.0
    %3020 = vmatpush1.msra.mxu0 0.0
    %3021 = vmatprep.subr.mxu0 0.0
    %3022 = vmatpush1.msra.mxu0 0.0
    %3023 = vmatprep.mubr.f32.mxu0 0.0
    %3024 = vmatmul.mubr.f32.gmra.mrb[0].mxu0 %v2954
    %v3025 = vpop.f32.mrb[0].mxu0
    %v3026 = vadd.f32 %v2945, %v3025
    %v3027 = vpop.f32.mrb[0].mxu0
    %3028 = vmatprep.mubr.f32.mxu0 0.0
    %3029 = vmatmul.mubr.f32.gmra.mrb[0].mxu0 %v2957
    %v3030 = vpop.f32.mrb[0].mxu0
    %v3031 = vadd.f32 %v2950, %v3030
    %v3032 = vpop.f32.mrb[0].mxu0
    %3033 = vdwg.mxu0
    %3034 = vrot.lane.b32.xlu0 %v2193, 112
    %v3035 = vpop.permute.xlu0 %3034
    %3036 = vrot.lane.b32.xlu0 %v2193, 80
    %v3037 = vpop.permute.xlu0 %3036
    %v3038 = vsel %vm177, %v3035, 0
    %v3040 = vsel %vm177, %v3037, 0
    %3042 = vmatprep.subr.mxu0 0.0
    %3043 = vmatpush1.xpose.msra.mxu0 %v3040
    %3044 = vmatprep.subr.mxu0 0.0
    %3045 = vmatpush1.xpose.msra.mxu0 0.0
    %3046 = vmatprep.subr.mxu0 0.0
    %3047 = vmatpush1.xpose.msra.mxu0 0.0
    %3048 = vmatprep.subr.mxu0 0.0
    %3049 = vmatpush1.xpose.msra.mxu0 0.0
    %3050 = vmatprep.subr.mxu0 0.0
    %3051 = vmatpush1.xpose.msra.mxu0 0.0
    %3052 = vmatprep.subr.mxu0 0.0
    %3053 = vmatpush1.xpose.msra.mxu0 0.0
    %3054 = vmatprep.subr.mxu0 0.0
    %3055 = vmatpush1.xpose.msra.mxu0 0.0
    %3056 = vmatprep.subr.mxu0 0.0
    %3057 = vmatpush1.xpose.msra.mxu0 0.0
    %3058 = vmatprep.subr.mxu0 0.0
    %3059 = vmatpush1.xpose.msra.mxu0 0.0
    %3060 = vmatprep.subr.mxu0 0.0
    %3061 = vmatpush1.xpose.msra.mxu0 0.0
    %3062 = vmatprep.subr.mxu0 0.0
    %3063 = vmatpush1.xpose.msra.mxu0 0.0
    %3064 = vmatprep.subr.mxu0 0.0
    %3065 = vmatpush1.xpose.msra.mxu0 0.0
    %3066 = vmatprep.subr.mxu0 0.0
    %3067 = vmatpush1.xpose.msra.mxu0 0.0
    %3068 = vmatprep.subr.mxu0 0.0
    %3069 = vmatpush1.xpose.msra.mxu0 0.0
    %3070 = vmatprep.subr.mxu0 0.0
    %3071 = vmatpush1.xpose.msra.mxu0 0.0
    %3072 = vmatprep.subr.mxu0 0.0
    %3073 = vmatpush1.xpose.msra.mxu0 0.0
    %3074 = vmatprep.subr.mxu0 0.0
    %3075 = vmatpush1.xpose.msra.mxu0 0.0
    %3076 = vmatprep.subr.mxu0 0.0
    %3077 = vmatpush1.xpose.msra.mxu0 0.0
    %3078 = vmatprep.subr.mxu0 0.0
    %3079 = vmatpush1.xpose.msra.mxu0 0.0
    %3080 = vmatprep.subr.mxu0 0.0
    %3081 = vmatpush1.xpose.msra.mxu0 0.0
    %3082 = vmatprep.subr.mxu0 0.0
    %3083 = vmatpush1.xpose.msra.mxu0 0.0
    %3084 = vmatprep.subr.mxu0 0.0
    %3085 = vmatpush1.xpose.msra.mxu0 0.0
    %3086 = vmatprep.subr.mxu0 0.0
    %3087 = vmatpush1.xpose.msra.mxu0 0.0
    %3088 = vmatprep.subr.mxu0 0.0
    %3089 = vmatpush1.xpose.msra.mxu0 0.0
    %3090 = vmatprep.subr.mxu0 0.0
    %3091 = vmatpush1.xpose.msra.mxu0 0.0
    %3092 = vmatprep.subr.mxu0 0.0
    %3093 = vmatpush1.xpose.msra.mxu0 0.0
    %3094 = vmatprep.subr.mxu0 0.0
    %3095 = vmatpush1.xpose.msra.mxu0 0.0
    %3096 = vmatprep.subr.mxu0 0.0
    %3097 = vmatpush1.xpose.msra.mxu0 0.0
    %3098 = vmatprep.subr.mxu0 0.0
    %3099 = vmatpush1.xpose.msra.mxu0 0.0
    %3100 = vmatprep.subr.mxu0 0.0
    %3101 = vmatpush1.xpose.msra.mxu0 0.0
    %3102 = vmatprep.subr.mxu0 0.0
    %3103 = vmatpush1.xpose.msra.mxu0 0.0
    %3104 = vmatprep.subr.mxu0 0.0
    %3105 = vmatpush1.xpose.msra.mxu0 0.0
    %3106 = vmatprep.mubr.f32.mxu0 0.0
    %3107 = vmatmul.mubr.f32.gmra.mrb[0].mxu0 %v3038
    %v3108 = vpop.f32.mrb[0].mxu0
    %v3109 = vadd.f32 0.0, %v3108
    %v3110 = vpop.f32.mrb[0].mxu0
    %3111 = vdwg.mxu0
    %3112 = vrot.lane.b32.xlu0 %v2198, 112
    %v3113 = vpop.permute.xlu0 %3112
    %3114 = vrot.lane.b32.xlu0 %v2198, 80
    %v3115 = vpop.permute.xlu0 %3114
    %v3116 = vsel %vm177, %v3113, 0
    %v3118 = vsel %vm177, %v3115, 0
    %3120 = vmatprep.subr.mxu0 0.0
    %3121 = vmatpush1.xpose.msra.mxu0 %v3118
    %3122 = vmatprep.subr.mxu0 0.0
    %3123 = vmatpush1.xpose.msra.mxu0 0.0
    %3124 = vmatprep.subr.mxu0 0.0
    %3125 = vmatpush1.xpose.msra.mxu0 0.0
    %3126 = vmatprep.subr.mxu0 0.0
    %3127 = vmatpush1.xpose.msra.mxu0 0.0
    %3128 = vmatprep.subr.mxu0 0.0
    %3129 = vmatpush1.xpose.msra.mxu0 0.0
    %3130 = vmatprep.subr.mxu0 0.0
    %3131 = vmatpush1.xpose.msra.mxu0 0.0
    %3132 = vmatprep.subr.mxu0 0.0
    %3133 = vmatpush1.xpose.msra.mxu0 0.0
    %3134 = vmatprep.subr.mxu0 0.0
    %3135 = vmatpush1.xpose.msra.mxu0 0.0
    %3136 = vmatprep.subr.mxu0 0.0
    %3137 = vmatpush1.xpose.msra.mxu0 0.0
    %3138 = vmatprep.subr.mxu0 0.0
    %3139 = vmatpush1.xpose.msra.mxu0 0.0
    %3140 = vmatprep.subr.mxu0 0.0
    %3141 = vmatpush1.xpose.msra.mxu0 0.0
    %3142 = vmatprep.subr.mxu0 0.0
    %3143 = vmatpush1.xpose.msra.mxu0 0.0
    %3144 = vmatprep.subr.mxu0 0.0
    %3145 = vmatpush1.xpose.msra.mxu0 0.0
    %3146 = vmatprep.subr.mxu0 0.0
    %3147 = vmatpush1.xpose.msra.mxu0 0.0
    %3148 = vmatprep.subr.mxu0 0.0
    %3149 = vmatpush1.xpose.msra.mxu0 0.0
    %3150 = vmatprep.subr.mxu0 0.0
    %3151 = vmatpush1.xpose.msra.mxu0 0.0
    %3152 = vmatprep.subr.mxu0 0.0
    %3153 = vmatpush1.xpose.msra.mxu0 0.0
    %3154 = vmatprep.subr.mxu0 0.0
    %3155 = vmatpush1.xpose.msra.mxu0 0.0
    %3156 = vmatprep.subr.mxu0 0.0
    %3157 = vmatpush1.xpose.msra.mxu0 0.0
    %3158 = vmatprep.subr.mxu0 0.0
    %3159 = vmatpush1.xpose.msra.mxu0 0.0
    %3160 = vmatprep.subr.mxu0 0.0
    %3161 = vmatpush1.xpose.msra.mxu0 0.0
    %3162 = vmatprep.subr.mxu0 0.0
    %3163 = vmatpush1.xpose.msra.mxu0 0.0
    %3164 = vmatprep.subr.mxu0 0.0
    %3165 = vmatpush1.xpose.msra.mxu0 0.0
    %3166 = vmatprep.subr.mxu0 0.0
    %3167 = vmatpush1.xpose.msra.mxu0 0.0
    %3168 = vmatprep.subr.mxu0 0.0
    %3169 = vmatpush1.xpose.msra.mxu0 0.0
    %3170 = vmatprep.subr.mxu0 0.0
    %3171 = vmatpush1.xpose.msra.mxu0 0.0
    %3172 = vmatprep.subr.mxu0 0.0
    %3173 = vmatpush1.xpose.msra.mxu0 0.0
    %3174 = vmatprep.subr.mxu0 0.0
    %3175 = vmatpush1.xpose.msra.mxu0 0.0
    %3176 = vmatprep.subr.mxu0 0.0
    %3177 = vmatpush1.xpose.msra.mxu0 0.0
    %3178 = vmatprep.subr.mxu0 0.0
    %3179 = vmatpush1.xpose.msra.mxu0 0.0
    %3180 = vmatprep.subr.mxu0 0.0
    %3181 = vmatpush1.xpose.msra.mxu0 0.0
    %3182 = vmatprep.subr.mxu0 0.0
    %3183 = vmatpush1.xpose.msra.mxu0 0.0
    %3184 = vmatprep.mubr.f32.mxu0 0.0
    %3185 = vmatmul.mubr.f32.gmra.mrb[0].mxu0 %v3116
    %v3186 = vpop.f32.mrb[0].mxu0
    %v3187 = vadd.f32 0.0, %v3186
    %v3188 = vpop.f32.mrb[0].mxu0
    %3189 = vdwg.mxu0
    %v3190 = vmul.f32 %v3109, 0.35355338
    %v3191 = vmul.f32 %v3187, 0.35355338
    %v3192 = vadd.f32 %v3190, %v72
    %v3193 = vadd.f32 %v3191, %v76
    %v3194 = vsel %vm177, %v3192, -inf
    %3195 = vmax.xlane.f32.xlu0 %v3194
    %v3196 = vpop.xlane.xlu0 %3195
    %v3197 = vsel %vm177, %v3193, -inf
    %3198 = vmax.xlane.f32.xlu0 %v3197
    %v3199 = vpop.xlane.xlu0 %3198
    %v3200 = vsub.f32 %v3192, %v3196
    %v3201 = vsub.f32 %v3193, %v3199
    %v3202 = vmul.f32 %v3200, 1.442695
    %v3203 = vpow.pop %v3202
    %v3204 = vmul.f32 %v3201, 1.442695
    %v3205 = vpow.pop %v3204
    %v3206 = vsel %vm177, %v3203, 0.0
    %3207 = vadd.xlane.f32.xlu0 %v3206
    %v3208 = vpop.xlane.xlu0 %3207
    %v3209 = vsel %vm177, %v3205, 0.0
    %3210 = vadd.xlane.f32.xlu0 %v3209
    %v3211 = vpop.xlane.xlu0 %3210
    %v3212 = vrcp.pop %v3208
    %v3213 = vrcp.pop %v3211
    %v3214 = vmul.f32 %v3203, %v3212
    %v3215 = vmul.f32 %v3205, %v3213
    %3216 = vrot.lane.b32.xlu0 %v2193, 48
    %v3217 = vpop.permute.xlu0 %3216
    %v3220 = vsel %vm177, %v3214, 0
    %3222 = vmatprep.subr.mxu0 0.0
    %3223 = vmatpush1.msra.mxu0 %v3217
    %3224 = vmatprep.subr.mxu0 0.0
    %3225 = vmatpush1.msra.mxu0 0.0
    %3226 = vmatprep.subr.mxu0 0.0
    %3227 = vmatpush1.msra.mxu0 0.0
    %3228 = vmatprep.subr.mxu0 0.0
    %3229 = vmatpush1.msra.mxu0 0.0
    %3230 = vmatprep.subr.mxu0 0.0
    %3231 = vmatpush1.msra.mxu0 0.0
    %3232 = vmatprep.subr.mxu0 0.0
    %3233 = vmatpush1.msra.mxu0 0.0
    %3234 = vmatprep.subr.mxu0 0.0
    %3235 = vmatpush1.msra.mxu0 0.0
    %3236 = vmatprep.subr.mxu0 0.0
    %3237 = vmatpush1.msra.mxu0 0.0
    %3238 = vmatprep.subr.mxu0 0.0
    %3239 = vmatpush1.msra.mxu0 0.0
    %3240 = vmatprep.subr.mxu0 0.0
    %3241 = vmatpush1.msra.mxu0 0.0
    %3242 = vmatprep.subr.mxu0 0.0
    %3243 = vmatpush1.msra.mxu0 0.0
    %3244 = vmatprep.subr.mxu0 0.0
    %3245 = vmatpush1.msra.mxu0 0.0
    %3246 = vmatprep.subr.mxu0 0.0
    %3247 = vmatpush1.msra.mxu0 0.0
    %3248 = vmatprep.subr.mxu0 0.0
    %3249 = vmatpush1.msra.mxu0 0.0
    %3250 = vmatprep.subr.mxu0 0.0
    %3251 = vmatpush1.msra.mxu0 0.0
    %3252 = vmatprep.subr.mxu0 0.0
    %3253 = vmatpush1.msra.mxu0 0.0
    %3254 = vmatprep.subr.mxu0 0.0
    %3255 = vmatpush1.msra.mxu0 0.0
    %3256 = vmatprep.subr.mxu0 0.0
    %3257 = vmatpush1.msra.mxu0 0.0
    %3258 = vmatprep.subr.mxu0 0.0
    %3259 = vmatpush1.msra.mxu0 0.0
    %3260 = vmatprep.subr.mxu0 0.0
    %3261 = vmatpush1.msra.mxu0 0.0
    %3262 = vmatprep.subr.mxu0 0.0
    %3263 = vmatpush1.msra.mxu0 0.0
    %3264 = vmatprep.subr.mxu0 0.0
    %3265 = vmatpush1.msra.mxu0 0.0
    %3266 = vmatprep.subr.mxu0 0.0
    %3267 = vmatpush1.msra.mxu0 0.0
    %3268 = vmatprep.subr.mxu0 0.0
    %3269 = vmatpush1.msra.mxu0 0.0
    %3270 = vmatprep.subr.mxu0 0.0
    %3271 = vmatpush1.msra.mxu0 0.0
    %3272 = vmatprep.subr.mxu0 0.0
    %3273 = vmatpush1.msra.mxu0 0.0
    %3274 = vmatprep.subr.mxu0 0.0
    %3275 = vmatpush1.msra.mxu0 0.0
    %3276 = vmatprep.subr.mxu0 0.0
    %3277 = vmatpush1.msra.mxu0 0.0
    %3278 = vmatprep.subr.mxu0 0.0
    %3279 = vmatpush1.msra.mxu0 0.0
    %3280 = vmatprep.subr.mxu0 0.0
    %3281 = vmatpush1.msra.mxu0 0.0
    %3282 = vmatprep.subr.mxu0 0.0
    %3283 = vmatpush1.msra.mxu0 0.0
    %3284 = vmatprep.subr.mxu0 0.0
    %3285 = vmatpush1.msra.mxu0 0.0
    %3286 = vmatprep.mubr.f32.mxu0 0.0
    %3287 = vmatmul.mubr.f32.gmra.mrb[0].mxu0 %v3220
    %v3288 = vpop.f32.mrb[0].mxu0
    %v3289 = vadd.f32 0.0, %v3288
    %v3290 = vpop.f32.mrb[0].mxu0
    %3291 = vdwg.mxu0
    %3292 = vrot.lane.b32.xlu0 %v2198, 48
    %v3293 = vpop.permute.xlu0 %3292
    %v3296 = vsel %vm177, %v3215, 0
    %3298 = vmatprep.subr.mxu0 0.0
    %3299 = vmatpush1.msra.mxu0 %v3293
    %3300 = vmatprep.subr.mxu0 0.0
    %3301 = vmatpush1.msra.mxu0 0.0
    %3302 = vmatprep.subr.mxu0 0.0
    %3303 = vmatpush1.msra.mxu0 0.0
    %3304 = vmatprep.subr.mxu0 0.0
    %3305 = vmatpush1.msra.mxu0 0.0
    %3306 = vmatprep.subr.mxu0 0.0
    %3307 = vmatpush1.msra.mxu0 0.0
    %3308 = vmatprep.subr.mxu0 0.0
    %3309 = vmatpush1.msra.mxu0 0.0
    %3310 = vmatprep.subr.mxu0 0.0
    %3311 = vmatpush1.msra.mxu0 0.0
    %3312 = vmatprep.subr.mxu0 0.0
    %3313 = vmatpush1.msra.mxu0 0.0
    %3314 = vmatprep.subr.mxu0 0.0
    %3315 = vmatpush1.msra.mxu0 0.0
    %3316 = vmatprep.subr.mxu0 0.0
    %3317 = vmatpush1.msra.mxu0 0.0
    %3318 = vmatprep.subr.mxu0 0.0
    %3319 = vmatpush1.msra.mxu0 0.0
    %3320 = vmatprep.subr.mxu0 0.0
    %3321 = vmatpush1.msra.mxu0 0.0
    %3322 = vmatprep.subr.mxu0 0.0
    %3323 = vmatpush1.msra.mxu0 0.0
    %3324 = vmatprep.subr.mxu0 0.0
    %3325 = vmatpush1.msra.mxu0 0.0
    %3326 = vmatprep.subr.mxu0 0.0
    %3327 = vmatpush1.msra.mxu0 0.0
    %3328 = vmatprep.subr.mxu0 0.0
    %3329 = vmatpush1.msra.mxu0 0.0
    %3330 = vmatprep.subr.mxu0 0.0
    %3331 = vmatpush1.msra.mxu0 0.0
    %3332 = vmatprep.subr.mxu0 0.0
    %3333 = vmatpush1.msra.mxu0 0.0
    %3334 = vmatprep.subr.mxu0 0.0
    %3335 = vmatpush1.msra.mxu0 0.0
    %3336 = vmatprep.subr.mxu0 0.0
    %3337 = vmatpush1.msra.mxu0 0.0
    %3338 = vmatprep.subr.mxu0 0.0
    %3339 = vmatpush1.msra.mxu0 0.0
    %3340 = vmatprep.subr.mxu0 0.0
    %3341 = vmatpush1.msra.mxu0 0.0
    %3342 = vmatprep.subr.mxu0 0.0
    %3343 = vmatpush1.msra.mxu0 0.0
    %3344 = vmatprep.subr.mxu0 0.0
    %3345 = vmatpush1.msra.mxu0 0.0
    %3346 = vmatprep.subr.mxu0 0.0
    %3347 = vmatpush1.msra.mxu0 0.0
    %3348 = vmatprep.subr.mxu0 0.0
    %3349 = vmatpush1.msra.mxu0 0.0
    %3350 = vmatprep.subr.mxu0 0.0
    %3351 = vmatpush1.msra.mxu0 0.0
    %3352 = vmatprep.subr.mxu0 0.0
    %3353 = vmatpush1.msra.mxu0 0.0
    %3354 = vmatprep.subr.mxu0 0.0
    %3355 = vmatpush1.msra.mxu0 0.0
    %3356 = vmatprep.subr.mxu0 0.0
    %3357 = vmatpush1.msra.mxu0 0.0
    %3358 = vmatprep.subr.mxu0 0.0
    %3359 = vmatpush1.msra.mxu0 0.0
    %3360 = vmatprep.subr.mxu0 0.0
    %3361 = vmatpush1.msra.mxu0 0.0
    %3362 = vmatprep.mubr.f32.mxu0 0.0
    %3363 = vmatmul.mubr.f32.gmra.mrb[0].mxu0 %v3296
    %v3364 = vpop.f32.mrb[0].mxu0
    %v3365 = vadd.f32 0.0, %v3364
    %v3366 = vpop.f32.mrb[0].mxu0
    %3367 = vdwg.mxu0
    %v3369 = vsel %vm177, %v3289, 0
    %v3372 = vsel %vm177, %v3365, 0
    %3374 = vmatprep.subr.mxu0 0.0
    %3375 = vmatpush1.msra.mxu0 %v2204
    %3376 = vmatprep.subr.mxu0 0.0
    %3377 = vmatpush1.msra.mxu0 0.0
    %3378 = vmatprep.subr.mxu0 0.0
    %3379 = vmatpush1.msra.mxu0 0.0
    %3380 = vmatprep.subr.mxu0 0.0
    %3381 = vmatpush1.msra.mxu0 0.0
    %3382 = vmatprep.subr.mxu0 0.0
    %3383 = vmatpush1.msra.mxu0 0.0
    %3384 = vmatprep.subr.mxu0 0.0
    %3385 = vmatpush1.msra.mxu0 0.0
    %3386 = vmatprep.subr.mxu0 0.0
    %3387 = vmatpush1.msra.mxu0 0.0
    %3388 = vmatprep.subr.mxu0 0.0
    %3389 = vmatpush1.msra.mxu0 0.0
    %3390 = vmatprep.subr.mxu0 0.0
    %3391 = vmatpush1.msra.mxu0 0.0
    %3392 = vmatprep.subr.mxu0 0.0
    %3393 = vmatpush1.msra.mxu0 0.0
    %3394 = vmatprep.subr.mxu0 0.0
    %3395 = vmatpush1.msra.mxu0 0.0
    %3396 = vmatprep.subr.mxu0 0.0
    %3397 = vmatpush1.msra.mxu0 0.0
    %3398 = vmatprep.subr.mxu0 0.0
    %3399 = vmatpush1.msra.mxu0 0.0
    %3400 = vmatprep.subr.mxu0 0.0
    %3401 = vmatpush1.msra.mxu0 0.0
    %3402 = vmatprep.subr.mxu0 0.0
    %3403 = vmatpush1.msra.mxu0 0.0
    %3404 = vmatprep.subr.mxu0 0.0
    %3405 = vmatpush1.msra.mxu0 0.0
    %3406 = vmatprep.subr.mxu0 0.0
    %3407 = vmatpush1.msra.mxu0 0.0
    %3408 = vmatprep.subr.mxu0 0.0
    %3409 = vmatpush1.msra.mxu0 0.0
    %3410 = vmatprep.subr.mxu0 0.0
    %3411 = vmatpush1.msra.mxu0 0.0
    %3412 = vmatprep.subr.mxu0 0.0
    %3413 = vmatpush1.msra.mxu0 0.0
    %3414 = vmatprep.subr.mxu0 0.0
    %3415 = vmatpush1.msra.mxu0 0.0
    %3416 = vmatprep.subr.mxu0 0.0
    %3417 = vmatpush1.msra.mxu0 0.0
    %3418 = vmatprep.subr.mxu0 0.0
    %3419 = vmatpush1.msra.mxu0 0.0
    %3420 = vmatprep.subr.mxu0 0.0
    %3421 = vmatpush1.msra.mxu0 0.0
    %3422 = vmatprep.subr.mxu0 0.0
    %3423 = vmatpush1.msra.mxu0 0.0
    %3424 = vmatprep.subr.mxu0 0.0
    %3425 = vmatpush1.msra.mxu0 0.0
    %3426 = vmatprep.subr.mxu0 0.0
    %3427 = vmatpush1.msra.mxu0 0.0
    %3428 = vmatprep.subr.mxu0 0.0
    %3429 = vmatpush1.msra.mxu0 0.0
    %3430 = vmatprep.subr.mxu0 0.0
    %3431 = vmatpush1.msra.mxu0 0.0
    %3432 = vmatprep.subr.mxu0 0.0
    %3433 = vmatpush1.msra.mxu0 0.0
    %3434 = vmatprep.subr.mxu0 0.0
    %3435 = vmatpush1.msra.mxu0 0.0
    %3436 = vmatprep.subr.mxu0 0.0
    %3437 = vmatpush1.msra.mxu0 0.0
    %3438 = vmatprep.mubr.f32.mxu0 0.0
    %3439 = vmatmul.mubr.f32.gmra.mrb[0].mxu0 %v3369
    %v3440 = vpop.f32.mrb[0].mxu0
    %v3441 = vadd.f32 0.0, %v3440
    %v3442 = vpop.f32.mrb[0].mxu0
    %3443 = vmatprep.mubr.f32.mxu0 0.0
    %3444 = vmatmul.mubr.f32.gmra.mrb[0].mxu0 %v3372
    %v3445 = vpop.f32.mrb[0].mxu0
    %v3446 = vadd.f32 0.0, %v3445
    %v3447 = vpop.f32.mrb[0].mxu0
    %3448 = vdwg.mxu0
    %v3449 = vadd.f32 %v3026, %v3441
    %v3450 = vadd.f32 %v3031, %v3446
    %3451 = vrot.lane.b32.xlu0 %v2193, 104
    %v3452 = vpop.permute.xlu0 %3451
    %3453 = vrot.lane.b32.xlu0 %v2193, 72
    %v3454 = vpop.permute.xlu0 %3453
    %v3455 = vsel %vm177, %v3452, 0
    %v3457 = vsel %vm177, %v3454, 0
    %3459 = vmatprep.subr.mxu0 0.0
    %3460 = vmatpush1.xpose.msra.mxu0 %v3457
    %3461 = vmatprep.subr.mxu0 0.0
    %3462 = vmatpush1.xpose.msra.mxu0 0.0
    %3463 = vmatprep.subr.mxu0 0.0
    %3464 = vmatpush1.xpose.msra.mxu0 0.0
    %3465 = vmatprep.subr.mxu0 0.0
    %3466 = vmatpush1.xpose.msra.mxu0 0.0
    %3467 = vmatprep.subr.mxu0 0.0
    %3468 = vmatpush1.xpose.msra.mxu0 0.0
    %3469 = vmatprep.subr.mxu0 0.0
    %3470 = vmatpush1.xpose.msra.mxu0 0.0
    %3471 = vmatprep.subr.mxu0 0.0
    %3472 = vmatpush1.xpose.msra.mxu0 0.0
    %3473 = vmatprep.subr.mxu0 0.0
    %3474 = vmatpush1.xpose.msra.mxu0 0.0
    %3475 = vmatprep.subr.mxu0 0.0
    %3476 = vmatpush1.xpose.msra.mxu0 0.0
    %3477 = vmatprep.subr.mxu0 0.0
    %3478 = vmatpush1.xpose.msra.mxu0 0.0
    %3479 = vmatprep.subr.mxu0 0.0
    %3480 = vmatpush1.xpose.msra.mxu0 0.0
    %3481 = vmatprep.subr.mxu0 0.0
    %3482 = vmatpush1.xpose.msra.mxu0 0.0
    %3483 = vmatprep.subr.mxu0 0.0
    %3484 = vmatpush1.xpose.msra.mxu0 0.0
    %3485 = vmatprep.subr.mxu0 0.0
    %3486 = vmatpush1.xpose.msra.mxu0 0.0
    %3487 = vmatprep.subr.mxu0 0.0
    %3488 = vmatpush1.xpose.msra.mxu0 0.0
    %3489 = vmatprep.subr.mxu0 0.0
    %3490 = vmatpush1.xpose.msra.mxu0 0.0
    %3491 = vmatprep.subr.mxu0 0.0
    %3492 = vmatpush1.xpose.msra.mxu0 0.0
    %3493 = vmatprep.subr.mxu0 0.0
    %3494 = vmatpush1.xpose.msra.mxu0 0.0
    %3495 = vmatprep.subr.mxu0 0.0
    %3496 = vmatpush1.xpose.msra.mxu0 0.0
    %3497 = vmatprep.subr.mxu0 0.0
    %3498 = vmatpush1.xpose.msra.mxu0 0.0
    %3499 = vmatprep.subr.mxu0 0.0
    %3500 = vmatpush1.xpose.msra.mxu0 0.0
    %3501 = vmatprep.subr.mxu0 0.0
    %3502 = vmatpush1.xpose.msra.mxu0 0.0
    %3503 = vmatprep.subr.mxu0 0.0
    %3504 = vmatpush1.xpose.msra.mxu0 0.0
    %3505 = vmatprep.subr.mxu0 0.0
    %3506 = vmatpush1.xpose.msra.mxu0 0.0
    %3507 = vmatprep.subr.mxu0 0.0
    %3508 = vmatpush1.xpose.msra.mxu0 0.0
    %3509 = vmatprep.subr.mxu0 0.0
    %3510 = vmatpush1.xpose.msra.mxu0 0.0
    %3511 = vmatprep.subr.mxu0 0.0
    %3512 = vmatpush1.xpose.msra.mxu0 0.0
    %3513 = vmatprep.subr.mxu0 0.0
    %3514 = vmatpush1.xpose.msra.mxu0 0.0
    %3515 = vmatprep.subr.mxu0 0.0
    %3516 = vmatpush1.xpose.msra.mxu0 0.0
    %3517 = vmatprep.subr.mxu0 0.0
    %3518 = vmatpush1.xpose.msra.mxu0 0.0
    %3519 = vmatprep.subr.mxu0 0.0
    %3520 = vmatpush1.xpose.msra.mxu0 0.0
    %3521 = vmatprep.subr.mxu0 0.0
    %3522 = vmatpush1.xpose.msra.mxu0 0.0
    %3523 = vmatprep.mubr.f32.mxu0 0.0
    %3524 = vmatmul.mubr.f32.gmra.mrb[0].mxu0 %v3455
    %v3525 = vpop.f32.mrb[0].mxu0
    %v3526 = vadd.f32 0.0, %v3525
    %v3527 = vpop.f32.mrb[0].mxu0
    %3528 = vdwg.mxu0
    %3529 = vrot.lane.b32.xlu0 %v2198, 104
    %v3530 = vpop.permute.xlu0 %3529
    %3531 = vrot.lane.b32.xlu0 %v2198, 72
    %v3532 = vpop.permute.xlu0 %3531
    %v3533 = vsel %vm177, %v3530, 0
    %v3535 = vsel %vm177, %v3532, 0
    %3537 = vmatprep.subr.mxu0 0.0
    %3538 = vmatpush1.xpose.msra.mxu0 %v3535
    %3539 = vmatprep.subr.mxu0 0.0
    %3540 = vmatpush1.xpose.msra.mxu0 0.0
    %3541 = vmatprep.subr.mxu0 0.0
    %3542 = vmatpush1.xpose.msra.mxu0 0.0
    %3543 = vmatprep.subr.mxu0 0.0
    %3544 = vmatpush1.xpose.msra.mxu0 0.0
    %3545 = vmatprep.subr.mxu0 0.0
    %3546 = vmatpush1.xpose.msra.mxu0 0.0
    %3547 = vmatprep.subr.mxu0 0.0
    %3548 = vmatpush1.xpose.msra.mxu0 0.0
    %3549 = vmatprep.subr.mxu0 0.0
    %3550 = vmatpush1.xpose.msra.mxu0 0.0
    %3551 = vmatprep.subr.mxu0 0.0
    %3552 = vmatpush1.xpose.msra.mxu0 0.0
    %3553 = vmatprep.subr.mxu0 0.0
    %3554 = vmatpush1.xpose.msra.mxu0 0.0
    %3555 = vmatprep.subr.mxu0 0.0
    %3556 = vmatpush1.xpose.msra.mxu0 0.0
    %3557 = vmatprep.subr.mxu0 0.0
    %3558 = vmatpush1.xpose.msra.mxu0 0.0
    %3559 = vmatprep.subr.mxu0 0.0
    %3560 = vmatpush1.xpose.msra.mxu0 0.0
    %3561 = vmatprep.subr.mxu0 0.0
    %3562 = vmatpush1.xpose.msra.mxu0 0.0
    %3563 = vmatprep.subr.mxu0 0.0
    %3564 = vmatpush1.xpose.msra.mxu0 0.0
    %3565 = vmatprep.subr.mxu0 0.0
    %3566 = vmatpush1.xpose.msra.mxu0 0.0
    %3567 = vmatprep.subr.mxu0 0.0
    %3568 = vmatpush1.xpose.msra.mxu0 0.0
    %3569 = vmatprep.subr.mxu0 0.0
    %3570 = vmatpush1.xpose.msra.mxu0 0.0
    %3571 = vmatprep.subr.mxu0 0.0
    %3572 = vmatpush1.xpose.msra.mxu0 0.0
    %3573 = vmatprep.subr.mxu0 0.0
    %3574 = vmatpush1.xpose.msra.mxu0 0.0
    %3575 = vmatprep.subr.mxu0 0.0
    %3576 = vmatpush1.xpose.msra.mxu0 0.0
    %3577 = vmatprep.subr.mxu0 0.0
    %3578 = vmatpush1.xpose.msra.mxu0 0.0
    %3579 = vmatprep.subr.mxu0 0.0
    %3580 = vmatpush1.xpose.msra.mxu0 0.0
    %3581 = vmatprep.subr.mxu0 0.0
    %3582 = vmatpush1.xpose.msra.mxu0 0.0
    %3583 = vmatprep.subr.mxu0 0.0
    %3584 = vmatpush1.xpose.msra.mxu0 0.0
    %3585 = vmatprep.subr.mxu0 0.0
    %3586 = vmatpush1.xpose.msra.mxu0 0.0
    %3587 = vmatprep.subr.mxu0 0.0
    %3588 = vmatpush1.xpose.msra.mxu0 0.0
    %3589 = vmatprep.subr.mxu0 0.0
    %3590 = vmatpush1.xpose.msra.mxu0 0.0
    %3591 = vmatprep.subr.mxu0 0.0
    %3592 = vmatpush1.xpose.msra.mxu0 0.0
    %3593 = vmatprep.subr.mxu0 0.0
    %3594 = vmatpush1.xpose.msra.mxu0 0.0
    %3595 = vmatprep.subr.mxu0 0.0
    %3596 = vmatpush1.xpose.msra.mxu0 0.0
    %3597 = vmatprep.subr.mxu0 0.0
    %3598 = vmatpush1.xpose.msra.mxu0 0.0
    %3599 = vmatprep.subr.mxu0 0.0
    %3600 = vmatpush1.xpose.msra.mxu0 0.0
    %3601 = vmatprep.mubr.f32.mxu0 0.0
    %3602 = vmatmul.mubr.f32.gmra.mrb[0].mxu0 %v3533
    %v3603 = vpop.f32.mrb[0].mxu0
    %v3604 = vadd.f32 0.0, %v3603
    %v3605 = vpop.f32.mrb[0].mxu0
    %3606 = vdwg.mxu0
    %v3607 = vmul.f32 %v3526, 0.35355338
    %v3608 = vmul.f32 %v3604, 0.35355338
    %v3609 = vadd.f32 %v3607, %v72
    %v3610 = vadd.f32 %v3608, %v76
    %v3611 = vsel %vm177, %v3609, -inf
    %3612 = vmax.xlane.f32.xlu0 %v3611
    %v3613 = vpop.xlane.xlu0 %3612
    %v3614 = vsel %vm177, %v3610, -inf
    %3615 = vmax.xlane.f32.xlu0 %v3614
    %v3616 = vpop.xlane.xlu0 %3615
    %v3617 = vsub.f32 %v3609, %v3613
    %v3618 = vsub.f32 %v3610, %v3616
    %v3619 = vmul.f32 %v3617, 1.442695
    %v3620 = vpow.pop %v3619
    %v3621 = vmul.f32 %v3618, 1.442695
    %v3622 = vpow.pop %v3621
    %v3623 = vsel %vm177, %v3620, 0.0
    %3624 = vadd.xlane.f32.xlu0 %v3623
    %v3625 = vpop.xlane.xlu0 %3624
    %v3626 = vsel %vm177, %v3622, 0.0
    %3627 = vadd.xlane.f32.xlu0 %v3626
    %v3628 = vpop.xlane.xlu0 %3627
    %v3629 = vrcp.pop %v3625
    %v3630 = vrcp.pop %v3628
    %v3631 = vmul.f32 %v3620, %v3629
    %v3632 = vmul.f32 %v3622, %v3630
    %3633 = vrot.lane.b32.xlu0 %v2193, 40
    %v3634 = vpop.permute.xlu0 %3633
    %v3637 = vsel %vm177, %v3631, 0
    %3639 = vmatprep.subr.mxu0 0.0
    %3640 = vmatpush1.msra.mxu0 %v3634
    %3641 = vmatprep.subr.mxu0 0.0
    %3642 = vmatpush1.msra.mxu0 0.0
    %3643 = vmatprep.subr.mxu0 0.0
    %3644 = vmatpush1.msra.mxu0 0.0
    %3645 = vmatprep.subr.mxu0 0.0
    %3646 = vmatpush1.msra.mxu0 0.0
    %3647 = vmatprep.subr.mxu0 0.0
    %3648 = vmatpush1.msra.mxu0 0.0
    %3649 = vmatprep.subr.mxu0 0.0
    %3650 = vmatpush1.msra.mxu0 0.0
    %3651 = vmatprep.subr.mxu0 0.0
    %3652 = vmatpush1.msra.mxu0 0.0
    %3653 = vmatprep.subr.mxu0 0.0
    %3654 = vmatpush1.msra.mxu0 0.0
    %3655 = vmatprep.subr.mxu0 0.0
    %3656 = vmatpush1.msra.mxu0 0.0
    %3657 = vmatprep.subr.mxu0 0.0
    %3658 = vmatpush1.msra.mxu0 0.0
    %3659 = vmatprep.subr.mxu0 0.0
    %3660 = vmatpush1.msra.mxu0 0.0
    %3661 = vmatprep.subr.mxu0 0.0
    %3662 = vmatpush1.msra.mxu0 0.0
    %3663 = vmatprep.subr.mxu0 0.0
    %3664 = vmatpush1.msra.mxu0 0.0
    %3665 = vmatprep.subr.mxu0 0.0
    %3666 = vmatpush1.msra.mxu0 0.0
    %3667 = vmatprep.subr.mxu0 0.0
    %3668 = vmatpush1.msra.mxu0 0.0
    %3669 = vmatprep.subr.mxu0 0.0
    %3670 = vmatpush1.msra.mxu0 0.0
    %3671 = vmatprep.subr.mxu0 0.0
    %3672 = vmatpush1.msra.mxu0 0.0
    %3673 = vmatprep.subr.mxu0 0.0
    %3674 = vmatpush1.msra.mxu0 0.0
    %3675 = vmatprep.subr.mxu0 0.0
    %3676 = vmatpush1.msra.mxu0 0.0
    %3677 = vmatprep.subr.mxu0 0.0
    %3678 = vmatpush1.msra.mxu0 0.0
    %3679 = vmatprep.subr.mxu0 0.0
    %3680 = vmatpush1.msra.mxu0 0.0
    %3681 = vmatprep.subr.mxu0 0.0
    %3682 = vmatpush1.msra.mxu0 0.0
    %3683 = vmatprep.subr.mxu0 0.0
    %3684 = vmatpush1.msra.mxu0 0.0
    %3685 = vmatprep.subr.mxu0 0.0
    %3686 = vmatpush1.msra.mxu0 0.0
    %3687 = vmatprep.subr.mxu0 0.0
    %3688 = vmatpush1.msra.mxu0 0.0
    %3689 = vmatprep.subr.mxu0 0.0
    %3690 = vmatpush1.msra.mxu0 0.0
    %3691 = vmatprep.subr.mxu0 0.0
    %3692 = vmatpush1.msra.mxu0 0.0
    %3693 = vmatprep.subr.mxu0 0.0
    %3694 = vmatpush1.msra.mxu0 0.0
    %3695 = vmatprep.subr.mxu0 0.0
    %3696 = vmatpush1.msra.mxu0 0.0
    %3697 = vmatprep.subr.mxu0 0.0
    %3698 = vmatpush1.msra.mxu0 0.0
    %3699 = vmatprep.subr.mxu0 0.0
    %3700 = vmatpush1.msra.mxu0 0.0
    %3701 = vmatprep.subr.mxu0 0.0
    %3702 = vmatpush1.msra.mxu0 0.0
    %3703 = vmatprep.mubr.f32.mxu0 0.0
    %3704 = vmatmul.mubr.f32.gmra.mrb[0].mxu0 %v3637
    %v3705 = vpop.f32.mrb[0].mxu0
    %v3706 = vadd.f32 0.0, %v3705
    %v3707 = vpop.f32.mrb[0].mxu0
    %3708 = vdwg.mxu0
    %3709 = vrot.lane.b32.xlu0 %v2198, 40
    %v3710 = vpop.permute.xlu0 %3709
    %v3713 = vsel %vm177, %v3632, 0
    %3715 = vmatprep.subr.mxu0 0.0
    %3716 = vmatpush1.msra.mxu0 %v3710
    %3717 = vmatprep.subr.mxu0 0.0
    %3718 = vmatpush1.msra.mxu0 0.0
    %3719 = vmatprep.subr.mxu0 0.0
    %3720 = vmatpush1.msra.mxu0 0.0
    %3721 = vmatprep.subr.mxu0 0.0
    %3722 = vmatpush1.msra.mxu0 0.0
    %3723 = vmatprep.subr.mxu0 0.0
    %3724 = vmatpush1.msra.mxu0 0.0
    %3725 = vmatprep.subr.mxu0 0.0
    %3726 = vmatpush1.msra.mxu0 0.0
    %3727 = vmatprep.subr.mxu0 0.0
    %3728 = vmatpush1.msra.mxu0 0.0
    %3729 = vmatprep.subr.mxu0 0.0
    %3730 = vmatpush1.msra.mxu0 0.0
    %3731 = vmatprep.subr.mxu0 0.0
    %3732 = vmatpush1.msra.mxu0 0.0
    %3733 = vmatprep.subr.mxu0 0.0
    %3734 = vmatpush1.msra.mxu0 0.0
    %3735 = vmatprep.subr.mxu0 0.0
    %3736 = vmatpush1.msra.mxu0 0.0
    %3737 = vmatprep.subr.mxu0 0.0
    %3738 = vmatpush1.msra.mxu0 0.0
    %3739 = vmatprep.subr.mxu0 0.0
    %3740 = vmatpush1.msra.mxu0 0.0
    %3741 = vmatprep.subr.mxu0 0.0
    %3742 = vmatpush1.msra.mxu0 0.0
    %3743 = vmatprep.subr.mxu0 0.0
    %3744 = vmatpush1.msra.mxu0 0.0
    %3745 = vmatprep.subr.mxu0 0.0
    %3746 = vmatpush1.msra.mxu0 0.0
    %3747 = vmatprep.subr.mxu0 0.0
    %3748 = vmatpush1.msra.mxu0 0.0
    %3749 = vmatprep.subr.mxu0 0.0
    %3750 = vmatpush1.msra.mxu0 0.0
    %3751 = vmatprep.subr.mxu0 0.0
    %3752 = vmatpush1.msra.mxu0 0.0
    %3753 = vmatprep.subr.mxu0 0.0
    %3754 = vmatpush1.msra.mxu0 0.0
    %3755 = vmatprep.subr.mxu0 0.0
    %3756 = vmatpush1.msra.mxu0 0.0
    %3757 = vmatprep.subr.mxu0 0.0
    %3758 = vmatpush1.msra.mxu0 0.0
    %3759 = vmatprep.subr.mxu0 0.0
    %3760 = vmatpush1.msra.mxu0 0.0
    %3761 = vmatprep.subr.mxu0 0.0
    %3762 = vmatpush1.msra.mxu0 0.0
    %3763 = vmatprep.subr.mxu0 0.0
    %3764 = vmatpush1.msra.mxu0 0.0
    %3765 = vmatprep.subr.mxu0 0.0
    %3766 = vmatpush1.msra.mxu0 0.0
    %3767 = vmatprep.subr.mxu0 0.0
    %3768 = vmatpush1.msra.mxu0 0.0
    %3769 = vmatprep.subr.mxu0 0.0
    %3770 = vmatpush1.msra.mxu0 0.0
    %3771 = vmatprep.subr.mxu0 0.0
    %3772 = vmatpush1.msra.mxu0 0.0
    %3773 = vmatprep.subr.mxu0 0.0
    %3774 = vmatpush1.msra.mxu0 0.0
    %3775 = vmatprep.subr.mxu0 0.0
    %3776 = vmatpush1.msra.mxu0 0.0
    %3777 = vmatprep.subr.mxu0 0.0
    %3778 = vmatpush1.msra.mxu0 0.0
    %3779 = vmatprep.mubr.f32.mxu0 0.0
    %3780 = vmatmul.mubr.f32.gmra.mrb[0].mxu0 %v3713
    %v3781 = vpop.f32.mrb[0].mxu0
    %v3782 = vadd.f32 0.0, %v3781
    %v3783 = vpop.f32.mrb[0].mxu0
    %3784 = vdwg.mxu0
    %v3786 = vsel %vm177, %v3706, 0
    %v3789 = vsel %vm177, %v3782, 0
    %3791 = vmatprep.subr.mxu0 0.0
    %3792 = vmatpush1.msra.mxu0 %v2205
    %3793 = vmatprep.subr.mxu0 0.0
    %3794 = vmatpush1.msra.mxu0 0.0
    %3795 = vmatprep.subr.mxu0 0.0
    %3796 = vmatpush1.msra.mxu0 0.0
    %3797 = vmatprep.subr.mxu0 0.0
    %3798 = vmatpush1.msra.mxu0 0.0
    %3799 = vmatprep.subr.mxu0 0.0
    %3800 = vmatpush1.msra.mxu0 0.0
    %3801 = vmatprep.subr.mxu0 0.0
    %3802 = vmatpush1.msra.mxu0 0.0
    %3803 = vmatprep.subr.mxu0 0.0
    %3804 = vmatpush1.msra.mxu0 0.0
    %3805 = vmatprep.subr.mxu0 0.0
    %3806 = vmatpush1.msra.mxu0 0.0
    %3807 = vmatprep.subr.mxu0 0.0
    %3808 = vmatpush1.msra.mxu0 0.0
    %3809 = vmatprep.subr.mxu0 0.0
    %3810 = vmatpush1.msra.mxu0 0.0
    %3811 = vmatprep.subr.mxu0 0.0
    %3812 = vmatpush1.msra.mxu0 0.0
    %3813 = vmatprep.subr.mxu0 0.0
    %3814 = vmatpush1.msra.mxu0 0.0
    %3815 = vmatprep.subr.mxu0 0.0
    %3816 = vmatpush1.msra.mxu0 0.0
    %3817 = vmatprep.subr.mxu0 0.0
    %3818 = vmatpush1.msra.mxu0 0.0
    %3819 = vmatprep.subr.mxu0 0.0
    %3820 = vmatpush1.msra.mxu0 0.0
    %3821 = vmatprep.subr.mxu0 0.0
    %3822 = vmatpush1.msra.mxu0 0.0
    %3823 = vmatprep.subr.mxu0 0.0
    %3824 = vmatpush1.msra.mxu0 0.0
    %3825 = vmatprep.subr.mxu0 0.0
    %3826 = vmatpush1.msra.mxu0 0.0
    %3827 = vmatprep.subr.mxu0 0.0
    %3828 = vmatpush1.msra.mxu0 0.0
    %3829 = vmatprep.subr.mxu0 0.0
    %3830 = vmatpush1.msra.mxu0 0.0
    %3831 = vmatprep.subr.mxu0 0.0
    %3832 = vmatpush1.msra.mxu0 0.0
    %3833 = vmatprep.subr.mxu0 0.0
    %3834 = vmatpush1.msra.mxu0 0.0
    %3835 = vmatprep.subr.mxu0 0.0
    %3836 = vmatpush1.msra.mxu0 0.0
    %3837 = vmatprep.subr.mxu0 0.0
    %3838 = vmatpush1.msra.mxu0 0.0
    %3839 = vmatprep.subr.mxu0 0.0
    %3840 = vmatpush1.msra.mxu0 0.0
    %3841 = vmatprep.subr.mxu0 0.0
    %3842 = vmatpush1.msra.mxu0 0.0
    %3843 = vmatprep.subr.mxu0 0.0
    %3844 = vmatpush1.msra.mxu0 0.0
    %3845 = vmatprep.subr.mxu0 0.0
    %3846 = vmatpush1.msra.mxu0 0.0
    %3847 = vmatprep.subr.mxu0 0.0
    %3848 = vmatpush1.msra.mxu0 0.0
    %3849 = vmatprep.subr.mxu0 0.0
    %3850 = vmatpush1.msra.mxu0 0.0
    %3851 = vmatprep.subr.mxu0 0.0
    %3852 = vmatpush1.msra.mxu0 0.0
    %3853 = vmatprep.subr.mxu0 0.0
    %3854 = vmatpush1.msra.mxu0 0.0
    %3855 = vmatprep.mubr.f32.mxu0 0.0
    %3856 = vmatmul.mubr.f32.gmra.mrb[0].mxu0 %v3786
    %v3857 = vpop.f32.mrb[0].mxu0
    %v3858 = vadd.f32 0.0, %v3857
    %v3859 = vpop.f32.mrb[0].mxu0
    %3860 = vmatprep.mubr.f32.mxu0 0.0
    %3861 = vmatmul.mubr.f32.gmra.mrb[0].mxu0 %v3789
    %v3862 = vpop.f32.mrb[0].mxu0
    %v3863 = vadd.f32 0.0, %v3862
    %v3864 = vpop.f32.mrb[0].mxu0
    %3865 = vdwg.mxu0
    %v3866 = vadd.f32 %v3449, %v3858
    %v3867 = vadd.f32 %v3450, %v3863
    %v3868 = vlaneseq
    %v3869 = vshrl.u32 %v3868, 7
    %v3870 = vsub.s32 1, %v3869
    %v3871 = vrot.slane %v2110, %v3870
    %v3872 = vadd.f32 %v3866, %v3871
    %v3873 = vadd.f32 %v3867, %v3871
    %v3874 = vadd.f32 %v2107, %v3872
    %v3875 = vadd.f32 %v2108, %v3873
    %v3876 = vsel %vm88, %v3874, 0.0
    %3877 = vadd.xlane.f32.xlu0 %v3876
    %v3878 = vpop.xlane.xlu0 %3877
    %v3879 = vsel %vm88, %v3875, 0.0
    %3880 = vadd.xlane.f32.xlu0 %v3879
    %v3881 = vpop.xlane.xlu0 %3880
    %v3882 = vmul.f32 %v3878, %v1851
    %v3883 = vmul.f32 %v3881, %v1851
    %v3884 = vsub.f32 %v3874, %v3882
    %v3885 = vsub.f32 %v3875, %v3883
    %v3886 = vmul.f32 %v3884, %v3884
    %v3887 = vmul.f32 %v3885, %v3885
    %v3888 = vsel %vm88, %v3886, 0.0
    %3889 = vadd.xlane.f32.xlu0 %v3888
    %v3890 = vpop.xlane.xlu0 %3889
    %v3891 = vsel %vm88, %v3887, 0.0
    %3892 = vadd.xlane.f32.xlu0 %v3891
    %v3893 = vpop.xlane.xlu0 %3892
    %v3894 = vmul.f32 %v3890, %v1851
    %v3895 = vmul.f32 %v3893, %v1851
    %v3896 = vadd.f32 %v3894, 1e-05
    %v3897 = vadd.f32 %v3895, 1e-05
    %v3898 = vrsqrt.pop %v3896
    %v3899 = vrsqrt.pop %v3897
    %v3900 = vmul.f32 %v3884, %v3898
    %v3901 = vmul.f32 %v3885, %v3899
    %v3902 = vlaneseq
    %v3903 = vshrl.u32 %v3902, 7
    %v3904 = vsub.s32 4, %v3903
    %v3905 = vrot.slane %v2110, %v3904
    %v3906 = vmul.f32 %v3900, %v3905
    %v3907 = vmul.f32 %v3901, %v3905
    %v3908 = vlaneseq
    %v3909 = vshrl.u32 %v3908, 7
    %v3910 = vsub.s32 5, %v3909
    %v3911 = vrot.slane %v2110, %v3910
    %v3912 = vadd.f32 %v3906, %v3911
    %v3913 = vadd.f32 %v3907, %v3911
    %s3914 = scalar_lea.vmem %s4, 32
    %v3915 = vld [vmem:[%s3914] sm:$0xff]
    %v3916 = vld [vmem:[%s3914 + $0x8] sm:$0xff]
    %v3917 = vld [vmem:[%s3914 + $0x10] sm:$0xff]
    %v3918 = vld [vmem:[%s3914 + $0x18] sm:$0xff]
    %v3919 = vlaneseq
    %v3920 = vshrl.u32 %v3919, 7
    %v3921 = vsub.s32 2, %v3920
    %v3922 = vrot.slane %v2110, %v3921
    %v3924 = vsel %vm88, %v3912, 0
    %v3927 = vsel %vm88, %v3913, 0
    %3929 = vmatprep.subr.mxu0 0.0
    %3930 = vmatpush1.msra.mxu0 %v3915
    %3931 = vmatprep.subr.mxu0 0.0
    %3932 = vmatpush1.msra.mxu0 %v3916
    %3933 = vmatprep.subr.mxu0 0.0
    %3934 = vmatpush1.msra.mxu0 %v3917
    %3935 = vmatprep.subr.mxu0 0.0
    %3936 = vmatpush1.msra.mxu0 %v3918
    %3937 = vmatprep.subr.mxu0 0.0
    %3938 = vmatpush1.msra.mxu0 0.0
    %3939 = vmatprep.subr.mxu0 0.0
    %3940 = vmatpush1.msra.mxu0 0.0
    %3941 = vmatprep.subr.mxu0 0.0
    %3942 = vmatpush1.msra.mxu0 0.0
    %3943 = vmatprep.subr.mxu0 0.0
    %3944 = vmatpush1.msra.mxu0 0.0
    %3945 = vmatprep.subr.mxu0 0.0
    %3946 = vmatpush1.msra.mxu0 0.0
    %3947 = vmatprep.subr.mxu0 0.0
    %3948 = vmatpush1.msra.mxu0 0.0
    %3949 = vmatprep.subr.mxu0 0.0
    %3950 = vmatpush1.msra.mxu0 0.0
    %3951 = vmatprep.subr.mxu0 0.0
    %3952 = vmatpush1.msra.mxu0 0.0
    %3953 = vmatprep.subr.mxu0 0.0
    %3954 = vmatpush1.msra.mxu0 0.0
    %3955 = vmatprep.subr.mxu0 0.0
    %3956 = vmatpush1.msra.mxu0 0.0
    %3957 = vmatprep.subr.mxu0 0.0
    %3958 = vmatpush1.msra.mxu0 0.0
    %3959 = vmatprep.subr.mxu0 0.0
    %3960 = vmatpush1.msra.mxu0 0.0
    %3961 = vmatprep.subr.mxu0 0.0
    %3962 = vmatpush1.msra.mxu0 0.0
    %3963 = vmatprep.subr.mxu0 0.0
    %3964 = vmatpush1.msra.mxu0 0.0
    %3965 = vmatprep.subr.mxu0 0.0
    %3966 = vmatpush1.msra.mxu0 0.0
    %3967 = vmatprep.subr.mxu0 0.0
    %3968 = vmatpush1.msra.mxu0 0.0
    %3969 = vmatprep.subr.mxu0 0.0
    %3970 = vmatpush1.msra.mxu0 0.0
    %3971 = vmatprep.subr.mxu0 0.0
    %3972 = vmatpush1.msra.mxu0 0.0
    %3973 = vmatprep.subr.mxu0 0.0
    %3974 = vmatpush1.msra.mxu0 0.0
    %3975 = vmatprep.subr.mxu0 0.0
    %3976 = vmatpush1.msra.mxu0 0.0
    %3977 = vmatprep.subr.mxu0 0.0
    %3978 = vmatpush1.msra.mxu0 0.0
    %3979 = vmatprep.subr.mxu0 0.0
    %3980 = vmatpush1.msra.mxu0 0.0
    %3981 = vmatprep.subr.mxu0 0.0
    %3982 = vmatpush1.msra.mxu0 0.0
    %3983 = vmatprep.subr.mxu0 0.0
    %3984 = vmatpush1.msra.mxu0 0.0
    %3985 = vmatprep.subr.mxu0 0.0
    %3986 = vmatpush1.msra.mxu0 0.0
    %3987 = vmatprep.subr.mxu0 0.0
    %3988 = vmatpush1.msra.mxu0 0.0
    %3989 = vmatprep.subr.mxu0 0.0
    %3990 = vmatpush1.msra.mxu0 0.0
    %3991 = vmatprep.subr.mxu0 0.0
    %3992 = vmatpush1.msra.mxu0 0.0
    %3993 = vmatprep.mubr.f32.mxu0 0.0
    %3994 = vmatmul.mubr.f32.gmra.mrb[0].mxu0 %v3924
    %v3995 = vpop.f32.mrb[0].mxu0
    %v3996 = vadd.f32 %v3922, %v3995
    %v3997 = vpop.f32.mrb[0].mxu0
    %3998 = vmatprep.mubr.f32.mxu0 0.0
    %3999 = vmatmul.mubr.f32.gmra.mrb[0].mxu0 %v3927
    %v4000 = vpop.f32.mrb[0].mxu0
    %v4001 = vadd.f32 %v3922, %v4000
    %v4002 = vpop.f32.mrb[0].mxu0
    %4003 = vdwg.mxu0
    %v4004 = vmax.f32 %v3996, 0.0
    %v4005 = vmax.f32 %v4001, 0.0
    %s4006 = scalar_lea.vmem %s5, 64
    %v4007 = vld [vmem:[%s4006] sm:$0xff]
    %v4008 = vld [vmem:[%s4006 + $0x8] sm:$0xff]
    %v4009 = vld [vmem:[%s4006 + $0x10] sm:$0xff]
    %v4010 = vld [vmem:[%s4006 + $0x18] sm:$0xff]
    %v4011 = vld [vmem:[%s4006 + $0x20] sm:$0xff]
    %v4012 = vld [vmem:[%s4006 + $0x28] sm:$0xff]
    %v4013 = vld [vmem:[%s4006 + $0x30] sm:$0xff]
    %v4014 = vld [vmem:[%s4006 + $0x38] sm:$0xff]
    %v4015 = vlaneseq
    %v4016 = vshrl.u32 %v4015, 7
    %v4017 = vsub.s32 3, %v4016
    %v4018 = vrot.slane %v2110, %v4017
    %v4020 = vsel %vm1987, %v4004, 0
    %v4023 = vsel %vm1987, %v4005, 0
    %4025 = vmatprep.subr.mxu0 0.0
    %4026 = vmatpush1.msra.mxu0 %v4007
    %4027 = vmatprep.subr.mxu0 0.0
    %4028 = vmatpush1.msra.mxu0 %v4008
    %4029 = vmatprep.subr.mxu0 0.0
    %4030 = vmatpush1.msra.mxu0 %v4009
    %4031 = vmatprep.subr.mxu0 0.0
    %4032 = vmatpush1.msra.mxu0 %v4010
    %4033 = vmatprep.subr.mxu0 0.0
    %4034 = vmatpush1.msra.mxu0 %v4011
    %4035 = vmatprep.subr.mxu0 0.0
    %4036 = vmatpush1.msra.mxu0 %v4012
    %4037 = vmatprep.subr.mxu0 0.0
    %4038 = vmatpush1.msra.mxu0 %v4013
    %4039 = vmatprep.subr.mxu0 0.0
    %4040 = vmatpush1.msra.mxu0 %v4014
    %4041 = vmatprep.subr.mxu0 0.0
    %4042 = vmatpush1.msra.mxu0 0.0
    %4043 = vmatprep.subr.mxu0 0.0
    %4044 = vmatpush1.msra.mxu0 0.0
    %4045 = vmatprep.subr.mxu0 0.0
    %4046 = vmatpush1.msra.mxu0 0.0
    %4047 = vmatprep.subr.mxu0 0.0
    %4048 = vmatpush1.msra.mxu0 0.0
    %4049 = vmatprep.subr.mxu0 0.0
    %4050 = vmatpush1.msra.mxu0 0.0
    %4051 = vmatprep.subr.mxu0 0.0
    %4052 = vmatpush1.msra.mxu0 0.0
    %4053 = vmatprep.subr.mxu0 0.0
    %4054 = vmatpush1.msra.mxu0 0.0
    %4055 = vmatprep.subr.mxu0 0.0
    %4056 = vmatpush1.msra.mxu0 0.0
    %4057 = vmatprep.subr.mxu0 0.0
    %4058 = vmatpush1.msra.mxu0 0.0
    %4059 = vmatprep.subr.mxu0 0.0
    %4060 = vmatpush1.msra.mxu0 0.0
    %4061 = vmatprep.subr.mxu0 0.0
    %4062 = vmatpush1.msra.mxu0 0.0
    %4063 = vmatprep.subr.mxu0 0.0
    %4064 = vmatpush1.msra.mxu0 0.0
    %4065 = vmatprep.subr.mxu0 0.0
    %4066 = vmatpush1.msra.mxu0 0.0
    %4067 = vmatprep.subr.mxu0 0.0
    %4068 = vmatpush1.msra.mxu0 0.0
    %4069 = vmatprep.subr.mxu0 0.0
    %4070 = vmatpush1.msra.mxu0 0.0
    %4071 = vmatprep.subr.mxu0 0.0
    %4072 = vmatpush1.msra.mxu0 0.0
    %4073 = vmatprep.subr.mxu0 0.0
    %4074 = vmatpush1.msra.mxu0 0.0
    %4075 = vmatprep.subr.mxu0 0.0
    %4076 = vmatpush1.msra.mxu0 0.0
    %4077 = vmatprep.subr.mxu0 0.0
    %4078 = vmatpush1.msra.mxu0 0.0
    %4079 = vmatprep.subr.mxu0 0.0
    %4080 = vmatpush1.msra.mxu0 0.0
    %4081 = vmatprep.subr.mxu0 0.0
    %4082 = vmatpush1.msra.mxu0 0.0
    %4083 = vmatprep.subr.mxu0 0.0
    %4084 = vmatpush1.msra.mxu0 0.0
    %4085 = vmatprep.subr.mxu0 0.0
    %4086 = vmatpush1.msra.mxu0 0.0
    %4087 = vmatprep.subr.mxu0 0.0
    %4088 = vmatpush1.msra.mxu0 0.0
    %4089 = vmatprep.mubr.f32.mxu0 0.0
    %4090 = vmatmul.mubr.f32.gmra.mrb[0].mxu0 %v4020
    %v4091 = vpop.f32.mrb[0].mxu0
    %v4092 = vadd.f32 %v4018, %v4091
    %v4093 = vpop.f32.mrb[0].mxu0
    %4094 = vmatprep.mubr.f32.mxu0 0.0
    %4095 = vmatmul.mubr.f32.gmra.mrb[0].mxu0 %v4023
    %v4096 = vpop.f32.mrb[0].mxu0
    %v4097 = vadd.f32 %v4018, %v4096
    %v4098 = vpop.f32.mrb[0].mxu0
    %4099 = vdwg.mxu0
    %v4100 = vadd.f32 %v3912, %v4092
    %v4101 = vadd.f32 %v3913, %v4097
    %v4102 = vsel %vm88, %v4100, 0.0
    %4103 = vadd.xlane.f32.xlu0 %v4102
    %v4104 = vpop.xlane.xlu0 %4103
    %v4105 = vsel %vm88, %v4101, 0.0
    %4106 = vadd.xlane.f32.xlu0 %v4105
    %v4107 = vpop.xlane.xlu0 %4106
    %v4108 = vmul.f32 %v4104, %v1851
    %v4109 = vmul.f32 %v4107, %v1851
    %v4110 = vsub.f32 %v4100, %v4108
    %v4111 = vsub.f32 %v4101, %v4109
    %v4112 = vmul.f32 %v4110, %v4110
    %v4113 = vmul.f32 %v4111, %v4111
    %v4114 = vsel %vm88, %v4112, 0.0
    %4115 = vadd.xlane.f32.xlu0 %v4114
    %v4116 = vpop.xlane.xlu0 %4115
    %v4117 = vsel %vm88, %v4113, 0.0
    %4118 = vadd.xlane.f32.xlu0 %v4117
    %v4119 = vpop.xlane.xlu0 %4118
    %v4120 = vmul.f32 %v4116, %v1851
    %v4121 = vmul.f32 %v4119, %v1851
    %v4122 = vadd.f32 %v4120, 1e-05
    %v4123 = vadd.f32 %v4121, 1e-05
    %v4124 = vrsqrt.pop %v4122
    %v4125 = vrsqrt.pop %v4123
    %v4126 = vmul.f32 %v4110, %v4124
    %v4127 = vmul.f32 %v4111, %v4125
    %v4128 = vlaneseq
    %v4129 = vshrl.u32 %v4128, 7
    %v4130 = vsub.s32 6, %v4129
    %v4131 = vrot.slane %v2110, %v4130
    %v4132 = vmul.f32 %v4126, %v4131
    %v4133 = vmul.f32 %v4127, %v4131
    %v4134 = vlaneseq
    %v4135 = vshrl.u32 %v4134, 7
    %v4136 = vsub.s32 7, %v4135
    %v4137 = vrot.slane %v2110, %v4136
    %v4138 = vadd.f32 %v4132, %v4137
    %v4139 = vadd.f32 %v4133, %v4137
    %v4140 = vld [vmem:[#allocation5] sm:$0xff]
    %v4141 = vld [vmem:[#allocation5 + $0x8] sm:$0xff]
    %v4142 = vld [vmem:[#allocation5 + $0x10] sm:$0xff]
    %v4143 = vld [vmem:[#allocation5 + $0x18] sm:$0xff]
    %v4144 = vld [vmem:[%s8] sm:$0x1]
    %v4146 = vlaneseq
    %v4147 = vshrl.u32 %v4146, 7
    %v4148 = vsub.s32 0, %v4147
    %v4149 = vrot.slane %v4144, %v4148
    %v4152 = vsel %vm88, %v4138, 0
    %v4155 = vsel %vm88, %v4139, 0
    %4157 = vmatprep.subr.mxu0 0.0
    %4158 = vmatpush1.msra.mxu0 %v4140
    %4159 = vmatprep.subr.mxu0 0.0
    %4160 = vmatpush1.msra.mxu0 %v4141
    %4161 = vmatprep.subr.mxu0 0.0
    %4162 = vmatpush1.msra.mxu0 %v4142
    %4163 = vmatprep.subr.mxu0 0.0
    %4164 = vmatpush1.msra.mxu0 %v4143
    %4165 = vmatprep.subr.mxu0 0.0
    %4166 = vmatpush1.msra.mxu0 0.0
    %4167 = vmatprep.subr.mxu0 0.0
    %4168 = vmatpush1.msra.mxu0 0.0
    %4169 = vmatprep.subr.mxu0 0.0
    %4170 = vmatpush1.msra.mxu0 0.0
    %4171 = vmatprep.subr.mxu0 0.0
    %4172 = vmatpush1.msra.mxu0 0.0
    %4173 = vmatprep.subr.mxu0 0.0
    %4174 = vmatpush1.msra.mxu0 0.0
    %4175 = vmatprep.subr.mxu0 0.0
    %4176 = vmatpush1.msra.mxu0 0.0
    %4177 = vmatprep.subr.mxu0 0.0
    %4178 = vmatpush1.msra.mxu0 0.0
    %4179 = vmatprep.subr.mxu0 0.0
    %4180 = vmatpush1.msra.mxu0 0.0
    %4181 = vmatprep.subr.mxu0 0.0
    %4182 = vmatpush1.msra.mxu0 0.0
    %4183 = vmatprep.subr.mxu0 0.0
    %4184 = vmatpush1.msra.mxu0 0.0
    %4185 = vmatprep.subr.mxu0 0.0
    %4186 = vmatpush1.msra.mxu0 0.0
    %4187 = vmatprep.subr.mxu0 0.0
    %4188 = vmatpush1.msra.mxu0 0.0
    %4189 = vmatprep.subr.mxu0 0.0
    %4190 = vmatpush1.msra.mxu0 0.0
    %4191 = vmatprep.subr.mxu0 0.0
    %4192 = vmatpush1.msra.mxu0 0.0
    %4193 = vmatprep.subr.mxu0 0.0
    %4194 = vmatpush1.msra.mxu0 0.0
    %4195 = vmatprep.subr.mxu0 0.0
    %4196 = vmatpush1.msra.mxu0 0.0
    %4197 = vmatprep.subr.mxu0 0.0
    %4198 = vmatpush1.msra.mxu0 0.0
    %4199 = vmatprep.subr.mxu0 0.0
    %4200 = vmatpush1.msra.mxu0 0.0
    %4201 = vmatprep.subr.mxu0 0.0
    %4202 = vmatpush1.msra.mxu0 0.0
    %4203 = vmatprep.subr.mxu0 0.0
    %4204 = vmatpush1.msra.mxu0 0.0
    %4205 = vmatprep.subr.mxu0 0.0
    %4206 = vmatpush1.msra.mxu0 0.0
    %4207 = vmatprep.subr.mxu0 0.0
    %4208 = vmatpush1.msra.mxu0 0.0
    %4209 = vmatprep.subr.mxu0 0.0
    %4210 = vmatpush1.msra.mxu0 0.0
    %4211 = vmatprep.subr.mxu0 0.0
    %4212 = vmatpush1.msra.mxu0 0.0
    %4213 = vmatprep.subr.mxu0 0.0
    %4214 = vmatpush1.msra.mxu0 0.0
    %4215 = vmatprep.subr.mxu0 0.0
    %4216 = vmatpush1.msra.mxu0 0.0
    %4217 = vmatprep.subr.mxu0 0.0
    %4218 = vmatpush1.msra.mxu0 0.0
    %4219 = vmatprep.subr.mxu0 0.0
    %4220 = vmatpush1.msra.mxu0 0.0
    %4221 = vmatprep.mubr.f32.mxu0 0.0
    %4222 = vmatmul.mubr.f32.gmra.mrb[0].mxu0 %v4152
    %v4223 = vpop.f32.mrb[0].mxu0
    %v4224 = vadd.f32 %v4149, %v4223
    %v4225 = vpop.f32.mrb[0].mxu0
    %4226 = vmatprep.mubr.f32.mxu0 0.0
    %4227 = vmatmul.mubr.f32.gmra.mrb[0].mxu0 %v4155
    %v4228 = vpop.f32.mrb[0].mxu0
    %v4229 = vadd.f32 %v4149, %v4228
    %v4230 = vpop.f32.mrb[0].mxu0
    %4231 = vdwg.mxu0
    %4232 = vst [vmem:[#allocation7] sm:$0xff] %v4224
    %4233 = vst [vmem:[#allocation7 + $0x8] sm:$0xff] %v4229
    // Predicated region
    $region46: #{tpu_custom_call.1} parent=1 // pred_check
      _
    $region47: #{tpu_custom_call.1} parent=1 // pred_check_branch
      %4235 = sbr.rel (0) target = $region49
    $region48: #{tpu_custom_call.1} parent=1 // pred_region
      %s4237 = ssub.s32 256, 256
      %4238 = vsyncadd [#allocation4], %s4237
      %s4239 = sshll.u32 [#allocation7], 4
      %s4240 = int_to_ptr.vmem [resolvable:$true] %s4239
      %4245 = dma.vmem_to_hbm [thread:$0]  %s4240, 256, %s9, [#allocation4], 128, 128, 8
    $region49: #{tpu_custom_call.1} parent=1 // pred_fallthru
      _
    // Predicated region
    $region50: #{tpu_custom_call.1} parent=1 // pred_check
      _
    $region51: #{tpu_custom_call.1} parent=1 // pred_check_branch
      %4247 = sbr.rel (0) target = $region53
    $region52: #{tpu_custom_call.1} parent=1 // pred_region
      %4248 = dma.done [#allocation4], 256
    $region53: #{tpu_custom_call.1} parent=1 // pred_fallthru
      _
    %4249 = vsyncpa [#allocation3], 1
    %4250 = vsyncpa [#allocation6], 1
    %4251 = vsyncpa [#allocation4], 1

</llo_original>
